<compile_context>
chip_gen: v7x
topology: tpu7x:2x2x1
jax: 0.10.0
libtpu: 0.0.40
codegen_flags: <defaults>
</compile_context>

<pallas_src>
import functools
import math

import jax
import jax.numpy as jnp
from jax.experimental import pallas as pl
from jax.experimental.pallas import tpu as pltpu

_LN_EPS = 1e-10


# ----------------------------------------------------------------------------- kernels
def _mha_head_kernel(x_ref, wq_ref, bq_ref, wk_ref, bk_ref, wv_ref, bv_ref, o_ref):
    """One (batch, head) self-attention: softmax((xWq)(xWk)^T / sqrt(d)) (xWv)."""
    x = x_ref[0].astype(jnp.float32)                                    # (K, M)
    q = jnp.dot(x, wq_ref[0], preferred_element_type=jnp.float32) + bq_ref[0]
    k = jnp.dot(x, wk_ref[0], preferred_element_type=jnp.float32) + bk_ref[0]
    v = jnp.dot(x, wv_ref[0], preferred_element_type=jnp.float32) + bv_ref[0]
    d = q.shape[-1]                                                     # static head dim
    s = jnp.dot(q, k.T, preferred_element_type=jnp.float32) * (1.0 / math.sqrt(d))
    s = s - jnp.max(s, axis=-1, keepdims=True)                          # stable softmax
    p = jnp.exp(s)
    p = p / jnp.sum(p, axis=-1, keepdims=True)
    o = jnp.dot(p, v, preferred_element_type=jnp.float32)               # (K, Dh)
    o_ref[0, 0] = o.astype(o_ref.dtype)


def _post_attention_kernel(attn_ref, x_ref, wo_ref, bo_ref, g1_ref, s1_ref,
                           w1_ref, b1_ref, w2_ref, b2_ref, g2_ref, s2_ref,
                           o_ref, *, eps):
    """Fused: out-proj + residual + LN1 + FFN(linear-ReLU-linear) + residual + LN2."""
    f32 = jnp.float32
    attn = attn_ref[...].astype(f32)                                    # (tm, M) head concat
    x = x_ref[...].astype(f32)                                          # (tm, M) residual input

    # MultiHeadAttention output projection + residual.
    h = jnp.dot(attn, wo_ref[...], preferred_element_type=f32) + bo_ref[...]
    h = h + x

    # LayerNorm 1  (torch semantics: scale*(x-mean)/(std+eps)+shift, population std).
    mu = jnp.mean(h, axis=-1, keepdims=True)
    sd = jnp.sqrt(jnp.mean((h - mu) * (h - mu), axis=-1, keepdims=True))
    ln1 = g1_ref[...] * (h - mu) / (sd + eps) + s1_ref[...]
    # TODO(synk): nn.Dropout is applied as inference-mode identity; training-mode
    #             stochastic dropout would use pltpu.prng_seed / pltpu.prng_random_bits.

    # FeedForward: linear -> ReLU -> linear, f32 accumulation on the MXU.
    ff = jnp.dot(ln1.astype(w1_ref.dtype), w1_ref[...],
                 preferred_element_type=f32) + b1_ref[...]
    ff = jnp.maximum(ff, 0.0)
    ff = jnp.dot(ff.astype(w2_ref.dtype), w2_ref[...],
                 preferred_element_type=f32) + b2_ref[...]

    # Residual + LayerNorm 2 (+ identity dropout).
    h2 = ln1 + ff
    mu2 = jnp.mean(h2, axis=-1, keepdims=True)
    sd2 = jnp.sqrt(jnp.mean((h2 - mu2) * (h2 - mu2), axis=-1, keepdims=True))
    ln2 = g2_ref[...] * (h2 - mu2) / (sd2 + eps) + s2_ref[...]
    o_ref[...] = ln2.astype(o_ref.dtype)


# ----------------------------------------------------------------------------- wrappers
def _const_spec(shape, single_buffer):
    """BlockSpec for an operand whose block index never changes across the grid."""
    n = len(shape)

    def index_map(i):
        return (0,) * n

    if single_buffer:
        # Constant-index operands don't need double-buffering; halves their VMEM.
        return pl.BlockSpec(shape, index_map, pipeline_mode=pl.Buffered(1))
    return pl.BlockSpec(shape, index_map)


@functools.partial(jax.jit, static_argnames=("tm", "single_buffer_weights"))
def _encoder_forward(x, params, tm, single_buffer_weights):
    N, K, M = x.shape
    H, _, Dh = params["wq"].shape
    F = params["w1"].shape[1]

    # ---- Kernel 1: per-(batch, head) self-attention --------------------------------
    heads = pl.pallas_call(
        _mha_head_kernel,
        out_shape=jax.ShapeDtypeStruct((N, H, K, Dh), x.dtype),
        grid_spec=pltpu.PrefetchScalarGridSpec(
            num_scalar_prefetch=0,
            grid=(N, H),
            in_specs=[
                pl.BlockSpec((1, K, M), lambda n, h: (n, 0, 0)),    # x (per batch)
                pl.BlockSpec((1, M, Dh), lambda n, h: (h, 0, 0)),   # Wq^T (per head)
                pl.BlockSpec((1, 1, Dh), lambda n, h: (h, 0, 0)),   # bq
                pl.BlockSpec((1, M, Dh), lambda n, h: (h, 0, 0)),   # Wk^T
                pl.BlockSpec((1, 1, Dh), lambda n, h: (h, 0, 0)),   # bk
                pl.BlockSpec((1, M, Dh), lambda n, h: (h, 0, 0)),   # Wv^T
                pl.BlockSpec((1, 1, Dh), lambda n, h: (h, 0, 0)),   # bv
            ],
            out_specs=pl.BlockSpec((1, 1, K, Dh), lambda n, h: (n, h, 0, 0)),
        ),
        compiler_params=pltpu.CompilerParams(
            dimension_semantics=("parallel", "parallel")),
    )(x, params["wq"], params["bq"], params["wk"], params["bk"],
      params["wv"], params["bv"])

    # Head concat along the embedding dim -> lane-dense (R, M) layout for kernel 2.
    attn2d = heads.transpose(0, 2, 1, 3).reshape(N * K, H * Dh)
    x2d = x.reshape(N * K, M)

    # ---- Kernel 2: out-proj + residual + LN1 + FFN + residual + LN2 -----------------
    R = N * K
    tm_eff = min(tm, R)                       # big row tile (256 default), clipped to R
    grid = (pl.cdiv(R, tm_eff),)

    # Explicit VMEM budget: resident weights (+ buffering), streamed row tiles,
    # f32 FFN intermediate, plus headroom.
    weight_bytes = 4 * (M * M + M * F + F * M + 2 * F + 6 * M)
    stream_bytes = 2 * 4 * tm_eff * (3 * M)   # double-buffered attn + x in, out
    inter_bytes = 4 * tm_eff * F
    buf_mult = 1 if single_buffer_weights else 2
    vmem_limit = buf_mult * weight_bytes + stream_bytes + inter_bytes + (8 << 20)
    vmem_limit = int(min(100 << 20, max(32 << 20, vmem_limit)))

    row_spec = pl.BlockSpec((tm_eff, M), lambda i: (i, 0))
    out2d = pl.pallas_call(
        functools.partial(_post_attention_kernel, eps=_LN_EPS),
        out_shape=jax.ShapeDtypeStruct((R, M), x.dtype),
        grid_spec=pltpu.PrefetchScalarGridSpec(
            num_scalar_prefetch=0,
            grid=grid,
            in_specs=[
                row_spec,                                        # attn concat tile
                row_spec,                                        # residual x tile
                _const_spec((M, M), single_buffer_weights),      # Wo^T
                _const_spec((1, M), single_buffer_weights),      # bo
                _const_spec((1, M), single_buffer_weights),      # LN1 scale
                _const_spec((1, M), single_buffer_weights),      # LN1 shift
                _const_spec((M, F), single_buffer_weights),      # W1^T
                _const_spec((1, F), single_buffer_weights),      # b1
                _const_spec((F, M), single_buffer_weights),      # W2^T
                _const_spec((1, M), single_buffer_weights),      # b2
                _const_spec((1, M), single_buffer_weights),      # LN2 scale
                _const_spec((1, M), single_buffer_weights),      # LN2 shift
            ],
            out_specs=row_spec,
        ),
        compiler_params=pltpu.CompilerParams(
            dimension_semantics=("parallel",),
            vmem_limit_bytes=vmem_limit),
    )(attn2d, x2d, params["wo"], params["bo"], params["g1"], params["s1"],
      params["w1"], params["b1"], params["w2"], params["b2"],
      params["g2"], params["s2"])

    return out2d.reshape(N, K, M)


def encoder_block(x, params, *, tm=256):
    """EncoderBlock forward. Tries single-buffered (pl.Buffered(1)) weight specs first
    to save VMEM; falls back to default double-buffering if the installed Pallas
    version rejects pipeline_mode on pallas_call BlockSpecs."""
    try:
        return jax.block_until_ready(
            _encoder_forward(x, params, tm=tm, single_buffer_weights=True))
    except Exception:
        return jax.block_until_ready(
            _encoder_forward(x, params, tm=tm, single_buffer_weights=False))


# ----------------------------------------------------------------------------- init / reference
def _xavier_uniform_t(key, fan_out, fan_in, dtype=jnp.float32):
    # torch layout is (out, in); return the pre-transposed (in, out) copy for x @ W.
    limit = math.sqrt(6.0 / (fan_in + fan_out))
    w = jax.random.uniform(key, (fan_out, fan_in), dtype, minval=-limit, maxval=limit)
    return w.T


def _linear_bias(key, fan_in, n, dtype=jnp.float32):
    bound = 1.0 / math.sqrt(fan_in)
    return jax.random.uniform(key, (n,), dtype, minval=-bound, maxval=bound)


def init_encoder_params(key, num_heads, emb_dim, feedforward_dim, dtype=jnp.float32):
    assert emb_dim % num_heads == 0
    dh = emb_dim // num_heads
    keys = jax.random.split(key, 6 * num_heads + 6)
    it = iter(keys)
    wq, bq, wk, bk, wv, bv = [], [], [], [], [], []
    for _ in range(num_heads):
        wq.append(_xavier_uniform_t(next(it), dh, emb_dim, dtype))
        bq.append(_linear_bias(next(it), emb_dim, dh, dtype))
        wk.append(_xavier_uniform_t(next(it), dh, emb_dim, dtype))
        bk.append(_linear_bias(next(it), emb_dim, dh, dtype))
        wv.append(_xavier_uniform_t(next(it), dh, emb_dim, dtype))
        bv.append(_linear_bias(next(it), emb_dim, dh, dtype))
    params = {
        "wq": jnp.stack(wq), "bq": jnp.stack(bq).reshape(num_heads, 1, dh),
        "wk": jnp.stack(wk), "bk": jnp.stack(bk).reshape(num_heads, 1, dh),
        "wv": jnp.stack(wv), "bv": jnp.stack(bv).reshape(num_heads, 1, dh),
        "wo": _xavier_uniform_t(next(it), emb_dim, num_heads * dh, dtype),
        "bo": _linear_bias(next(it), num_heads * dh, emb_dim, dtype).reshape(1, emb_dim),
        "w1": _xavier_uniform_t(next(it), feedforward_dim, emb_dim, dtype),
        "b1": _linear_bias(next(it), emb_dim, feedforward_dim, dtype).reshape(1, feedforward_dim),
        "w2": _xavier_uniform_t(next(it), emb_dim, feedforward_dim, dtype),
        "b2": _linear_bias(next(it), feedforward_dim, emb_dim, dtype).reshape(1, emb_dim),
        "g1": jnp.ones((1, emb_dim), dtype), "s1": jnp.zeros((1, emb_dim), dtype),
        "g2": jnp.ones((1, emb_dim), dtype), "s2": jnp.zeros((1, emb_dim), dtype),
    }
    return params


def reference_forward(x, p, eps=_LN_EPS):
    """Plain-JAX replica of the PyTorch EncoderBlock forward (eval-mode dropout)."""
    num_heads = p["wq"].shape[0]
    heads = []
    for h in range(num_heads):
        q = x @ p["wq"][h] + p["bq"][h]
        k = x @ p["wk"][h] + p["bk"][h]
        v = x @ p["wv"][h] + p["bv"][h]
        d = q.shape[-1]
        s = jnp.einsum("nkd,nqd->nkq", q, k) / math.sqrt(d)
        w = jax.nn.softmax(s, axis=-1)
        heads.append(jnp.einsum("nkq,nqd->nkd", w, v))
    concat = jnp.concatenate(heads, axis=-1)

    def layernorm(z, g, b):
        mu = z.mean(axis=-1, keepdims=True)
        sd = jnp.sqrt(((z - mu) ** 2).mean(axis=-1, keepdims=True))
        return g[0] * (z - mu) / (sd + eps) + b[0]

    h1 = layernorm(x + concat @ p["wo"] + p["bo"][0], p["g1"], p["s1"])
    ff = jnp.maximum(h1 @ p["w1"] + p["b1"][0], 0.0) @ p["w2"] + p["b2"][0]
    return layernorm(h1 + ff, p["g2"], p["s2"])


# ----------------------------------------------------------------------------- demo
if __name__ == "__main__":
    # Small shapes consistent with EncoderBlock: (N, K, M) input.
    num_heads, emb_dim, feedforward_dim, dropout = 4, 32, 64, 0.1   # dropout -> identity (eval)
    N, K = 2, 8

    key = jax.random.PRNGKey(0)
    kx, kp = jax.random.split(key)
    x = jax.random.normal(kx, (N, K, emb_dim), jnp.float32)
    params = init_encoder_params(kp, num_heads, emb_dim, feedforward_dim)

    y = encoder_block(x, params, tm=256)

    ref = reference_forward(x, params)
    assert y.shape == (N, K, emb_dim)
    assert jnp.allclose(y, ref, atol=1e-4, rtol=1e-4), float(jnp.max(jnp.abs(y - ref)))

    print("KERNEL_OK")
</pallas_src>

<mosaic_0001>
module attributes {stable_mosaic.version = 11 : i64} {
  func.func @_mha_head_kernel(%arg0: i32, %arg1: i32, %arg2: memref<1x8x32xf32, #tpu.memory_space<vmem>>, %arg3: memref<1x32x8xf32, #tpu.memory_space<vmem>>, %arg4: memref<1x1x8xf32, #tpu.memory_space<vmem>>, %arg5: memref<1x32x8xf32, #tpu.memory_space<vmem>>, %arg6: memref<1x1x8xf32, #tpu.memory_space<vmem>>, %arg7: memref<1x32x8xf32, #tpu.memory_space<vmem>>, %arg8: memref<1x1x8xf32, #tpu.memory_space<vmem>>, %arg9: memref<1x1x8x8xf32, #tpu.memory_space<vmem>>) attributes {dimension_semantics = [#tpu.dimension_semantics<parallel>, #tpu.dimension_semantics<parallel>], iteration_bounds = array<i64: 2, 4>, scalar_prefetch = 0 : i64, scratch_operands = 0 : i64, tpu.core_type = #tpu.core_type<tc>, window_params = [{transform_indices = @transform_0, window_bounds = array<i64: 1, 8, 32>}, {transform_indices = @transform_1, window_bounds = array<i64: 1, 32, 8>}, {transform_indices = @transform_2, window_bounds = array<i64: 1, 1, 8>}, {transform_indices = @transform_3, window_bounds = array<i64: 1, 32, 8>}, {transform_indices = @transform_4, window_bounds = array<i64: 1, 1, 8>}, {transform_indices = @transform_5, window_bounds = array<i64: 1, 32, 8>}, {transform_indices = @transform_6, window_bounds = array<i64: 1, 1, 8>}, {transform_indices = @transform_7, window_bounds = array<i64: 1, 1, 8, 8>}]} {
    %c0 = arith.constant 0 : index
    %c0_0 = arith.constant 0 : index
    %c0_1 = arith.constant 0 : index
    %0 = vector.load %arg2[%c0, %c0_0, %c0_1] : memref<1x8x32xf32, #tpu.memory_space<vmem>>, vector<1x8x32xf32>
    %1 = vector.shape_cast %0 : vector<1x8x32xf32> to vector<8x32xf32>
    %c0_2 = arith.constant 0 : index
    %c0_3 = arith.constant 0 : index
    %c0_4 = arith.constant 0 : index
    %2 = vector.load %arg3[%c0_2, %c0_3, %c0_4] : memref<1x32x8xf32, #tpu.memory_space<vmem>>, vector<1x32x8xf32>
    %3 = vector.shape_cast %2 : vector<1x32x8xf32> to vector<32x8xf32>
    %cst = arith.constant dense<0.000000e+00> : vector<8x8xf32>
    %4 = tpu.matmul %1, %3, %cst {dimension_numbers = #tpu.dot_dimension_numbers<[1], [0], [0], [1], [0, 0, 1, 1], [], []>} : vector<8x32xf32>, vector<32x8xf32>, vector<8x8xf32> -> vector<8x8xf32>
    %c0_5 = arith.constant 0 : index
    %c0_6 = arith.constant 0 : index
    %c0_7 = arith.constant 0 : index
    %5 = vector.load %arg4[%c0_5, %c0_6, %c0_7] : memref<1x1x8xf32, #tpu.memory_space<vmem>>, vector<1x1x8xf32>
    %6 = vector.shape_cast %5 : vector<1x1x8xf32> to vector<1x8xf32>
    %7 = vector.broadcast %6 : vector<1x8xf32> to vector<8x8xf32>
    %8 = arith.addf %4, %7 : vector<8x8xf32>
    %c0_8 = arith.constant 0 : index
    %c0_9 = arith.constant 0 : index
    %c0_10 = arith.constant 0 : index
    %9 = vector.load %arg5[%c0_8, %c0_9, %c0_10] : memref<1x32x8xf32, #tpu.memory_space<vmem>>, vector<1x32x8xf32>
    %10 = vector.shape_cast %9 : vector<1x32x8xf32> to vector<32x8xf32>
    %cst_11 = arith.constant dense<0.000000e+00> : vector<8x8xf32>
    %11 = tpu.matmul %1, %10, %cst_11 {dimension_numbers = #tpu.dot_dimension_numbers<[1], [0], [0], [1], [0, 0, 1, 1], [], []>} : vector<8x32xf32>, vector<32x8xf32>, vector<8x8xf32> -> vector<8x8xf32>
    %c0_12 = arith.constant 0 : index
    %c0_13 = arith.constant 0 : index
    %c0_14 = arith.constant 0 : index
    %12 = vector.load %arg6[%c0_12, %c0_13, %c0_14] : memref<1x1x8xf32, #tpu.memory_space<vmem>>, vector<1x1x8xf32>
    %13 = vector.shape_cast %12 : vector<1x1x8xf32> to vector<1x8xf32>
    %14 = vector.broadcast %13 : vector<1x8xf32> to vector<8x8xf32>
    %15 = arith.addf %11, %14 : vector<8x8xf32>
    %c0_15 = arith.constant 0 : index
    %c0_16 = arith.constant 0 : index
    %c0_17 = arith.constant 0 : index
    %16 = vector.load %arg7[%c0_15, %c0_16, %c0_17] : memref<1x32x8xf32, #tpu.memory_space<vmem>>, vector<1x32x8xf32>
    %17 = vector.shape_cast %16 : vector<1x32x8xf32> to vector<32x8xf32>
    %cst_18 = arith.constant dense<0.000000e+00> : vector<8x8xf32>
    %18 = tpu.matmul %1, %17, %cst_18 {dimension_numbers = #tpu.dot_dimension_numbers<[1], [0], [0], [1], [0, 0, 1, 1], [], []>} : vector<8x32xf32>, vector<32x8xf32>, vector<8x8xf32> -> vector<8x8xf32>
    %c0_19 = arith.constant 0 : index
    %c0_20 = arith.constant 0 : index
    %c0_21 = arith.constant 0 : index
    %19 = vector.load %arg8[%c0_19, %c0_20, %c0_21] : memref<1x1x8xf32, #tpu.memory_space<vmem>>, vector<1x1x8xf32>
    %20 = vector.shape_cast %19 : vector<1x1x8xf32> to vector<1x8xf32>
    %21 = vector.broadcast %20 : vector<1x8xf32> to vector<8x8xf32>
    %22 = arith.addf %18, %21 : vector<8x8xf32>
    %23 = tpu.transpose %15, [1, 0] : vector<8x8xf32> -> vector<8x8xf32>
    %cst_22 = arith.constant dense<0.000000e+00> : vector<8x8xf32>
    %24 = tpu.matmul %8, %23, %cst_22 {dimension_numbers = #tpu.dot_dimension_numbers<[1], [0], [0], [1], [0, 0, 1, 1], [], []>} : vector<8x8xf32>, vector<8x8xf32>, vector<8x8xf32> -> vector<8x8xf32>
    %cst_23 = arith.constant 0.353553385 : f32
    %25 = vector.broadcast %cst_23 : f32 to vector<8x8xf32>
    %26 = arith.mulf %24, %25 : vector<8x8xf32>
    %cst_24 = arith.constant dense<0xFF800000> : vector<8xf32>
    %27 = vector.multi_reduction <maximumf>, %26, %cst_24 [1] : vector<8x8xf32> to vector<8xf32>
    %28 = vector.shape_cast %27 : vector<8xf32> to vector<8x1xf32>
    %29 = vector.broadcast %28 : vector<8x1xf32> to vector<8x8xf32>
    %30 = arith.subf %26, %29 : vector<8x8xf32>
    %31 = math.exp %30 : vector<8x8xf32>
    %cst_25 = arith.constant dense<0.000000e+00> : vector<8xf32>
    %32 = vector.multi_reduction <add>, %31, %cst_25 [1] : vector<8x8xf32> to vector<8xf32>
    %33 = vector.shape_cast %32 : vector<8xf32> to vector<8x1xf32>
    %34 = vector.broadcast %33 : vector<8x1xf32> to vector<8x8xf32>
    %35 = arith.divf %31, %34 : vector<8x8xf32>
    %cst_26 = arith.constant dense<0.000000e+00> : vector<8x8xf32>
    %36 = tpu.matmul %35, %22, %cst_26 {dimension_numbers = #tpu.dot_dimension_numbers<[1], [0], [0], [1], [0, 0, 1, 1], [], []>} : vector<8x8xf32>, vector<8x8xf32>, vector<8x8xf32> -> vector<8x8xf32>
    %c0_27 = arith.constant 0 : index
    %c0_28 = arith.constant 0 : index
    %c0_29 = arith.constant 0 : index
    %c0_30 = arith.constant 0 : index
    %37 = vector.load %arg9[%c0_27, %c0_28, %c0_29, %c0_30] : memref<1x1x8x8xf32, #tpu.memory_space<vmem>>, vector<1x1x8x8xf32>
    %38 = vector.shape_cast %37 : vector<1x1x8x8xf32> to vector<8x8xf32>
    %39 = vector.shape_cast %36 : vector<8x8xf32> to vector<1x1x8x8xf32>
    tpu.vector_store %arg9[%c0_27, %c0_28, %c0_29, %c0_30], %39 {strides = array<i32>} : memref<1x1x8x8xf32, #tpu.memory_space<vmem>>, vector<1x1x8x8xf32>,
    return
  }
  func.func @transform_0(%arg0: i32, %arg1: i32) -> (i32, i32, i32) {
    %c0_i32 = arith.constant 0 : i32
    %c0_i32_0 = arith.constant 0 : i32
    %c0_i32_1 = arith.constant 0 : i32
    return %arg0, %c0_i32, %c0_i32_0 : i32, i32, i32
  }
  func.func @transform_1(%arg0: i32, %arg1: i32) -> (i32, i32, i32) {
    %c0_i32 = arith.constant 0 : i32
    %c0_i32_0 = arith.constant 0 : i32
    %c0_i32_1 = arith.constant 0 : i32
    return %arg1, %c0_i32, %c0_i32_0 : i32, i32, i32
  }
  func.func @transform_2(%arg0: i32, %arg1: i32) -> (i32, i32, i32) {
    %c0_i32 = arith.constant 0 : i32
    %c0_i32_0 = arith.constant 0 : i32
    %c0_i32_1 = arith.constant 0 : i32
    return %arg1, %c0_i32, %c0_i32_0 : i32, i32, i32
  }
  func.func @transform_3(%arg0: i32, %arg1: i32) -> (i32, i32, i32) {
    %c0_i32 = arith.constant 0 : i32
    %c0_i32_0 = arith.constant 0 : i32
    %c0_i32_1 = arith.constant 0 : i32
    return %arg1, %c0_i32, %c0_i32_0 : i32, i32, i32
  }
  func.func @transform_4(%arg0: i32, %arg1: i32) -> (i32, i32, i32) {
    %c0_i32 = arith.constant 0 : i32
    %c0_i32_0 = arith.constant 0 : i32
    %c0_i32_1 = arith.constant 0 : i32
    return %arg1, %c0_i32, %c0_i32_0 : i32, i32, i32
  }
  func.func @transform_5(%arg0: i32, %arg1: i32) -> (i32, i32, i32) {
    %c0_i32 = arith.constant 0 : i32
    %c0_i32_0 = arith.constant 0 : i32
    %c0_i32_1 = arith.constant 0 : i32
    return %arg1, %c0_i32, %c0_i32_0 : i32, i32, i32
  }
  func.func @transform_6(%arg0: i32, %arg1: i32) -> (i32, i32, i32) {
    %c0_i32 = arith.constant 0 : i32
    %c0_i32_0 = arith.constant 0 : i32
    %c0_i32_1 = arith.constant 0 : i32
    return %arg1, %c0_i32, %c0_i32_0 : i32, i32, i32
  }
  func.func @transform_7(%arg0: i32, %arg1: i32) -> (i32, i32, i32, i32) {
    %c0_i32 = arith.constant 0 : i32
    %c0_i32_0 = arith.constant 0 : i32
    %c0_i32_1 = arith.constant 0 : i32
    return %arg0, %arg1, %c0_i32, %c0_i32_0 : i32, i32, i32, i32
  }
}

module attributes {stable_mosaic.version = 11 : i64} {
  func.func @_post_attention_kernel(%arg0: i32, %arg1: memref<16x32xf32, #tpu.memory_space<vmem>>, %arg2: memref<16x32xf32, #tpu.memory_space<vmem>>, %arg3: memref<32x32xf32, #tpu.memory_space<vmem>>, %arg4: memref<1x32xf32, #tpu.memory_space<vmem>>, %arg5: memref<1x32xf32, #tpu.memory_space<vmem>>, %arg6: memref<1x32xf32, #tpu.memory_space<vmem>>, %arg7: memref<32x64xf32, #tpu.memory_space<vmem>>, %arg8: memref<1x64xf32, #tpu.memory_space<vmem>>, %arg9: memref<64x32xf32, #tpu.memory_space<vmem>>, %arg10: memref<1x32xf32, #tpu.memory_space<vmem>>, %arg11: memref<1x32xf32, #tpu.memory_space<vmem>>, %arg12: memref<1x32xf32, #tpu.memory_space<vmem>>, %arg13: memref<16x32xf32, #tpu.memory_space<vmem>>) attributes {dimension_semantics = [#tpu.dimension_semantics<parallel>], iteration_bounds = array<i64: 1>, scalar_prefetch = 0 : i64, scratch_operands = 0 : i64, tpu.core_type = #tpu.core_type<tc>, window_params = [{transform_indices = @transform_0, window_bounds = array<i64: 16, 32>}, {transform_indices = @transform_1, window_bounds = array<i64: 16, 32>}, {pipeline_mode = #tpu.pipeline_mode<synchronous>, transform_indices = @transform_2, window_bounds = array<i64: 32, 32>}, {pipeline_mode = #tpu.pipeline_mode<synchronous>, transform_indices = @transform_3, window_bounds = array<i64: 1, 32>}, {pipeline_mode = #tpu.pipeline_mode<synchronous>, transform_indices = @transform_4, window_bounds = array<i64: 1, 32>}, {pipeline_mode = #tpu.pipeline_mode<synchronous>, transform_indices = @transform_5, window_bounds = array<i64: 1, 32>}, {pipeline_mode = #tpu.pipeline_mode<synchronous>, transform_indices = @transform_6, window_bounds = array<i64: 32, 64>}, {pipeline_mode = #tpu.pipeline_mode<synchronous>, transform_indices = @transform_7, window_bounds = array<i64: 1, 64>}, {pipeline_mode = #tpu.pipeline_mode<synchronous>, transform_indices = @transform_8, window_bounds = array<i64: 64, 32>}, {pipeline_mode = #tpu.pipeline_mode<synchronous>, transform_indices = @transform_9, window_bounds = array<i64: 1, 32>}, {pipeline_mode = #tpu.pipeline_mode<synchronous>, transform_indices = @transform_10, window_bounds = array<i64: 1, 32>}, {pipeline_mode = #tpu.pipeline_mode<synchronous>, transform_indices = @transform_11, window_bounds = array<i64: 1, 32>}, {transform_indices = @transform_12, window_bounds = array<i64: 16, 32>}]} {
    %c0 = arith.constant 0 : index
    %c0_0 = arith.constant 0 : index
    %0 = vector.load %arg1[%c0, %c0_0] : memref<16x32xf32, #tpu.memory_space<vmem>>, vector<16x32xf32>
    %c0_1 = arith.constant 0 : index
    %c0_2 = arith.constant 0 : index
    %1 = vector.load %arg2[%c0_1, %c0_2] : memref<16x32xf32, #tpu.memory_space<vmem>>, vector<16x32xf32>
    %c0_3 = arith.constant 0 : index
    %c0_4 = arith.constant 0 : index
    %2 = vector.load %arg3[%c0_3, %c0_4] : memref<32x32xf32, #tpu.memory_space<vmem>>, vector<32x32xf32>
    %cst = arith.constant dense<0.000000e+00> : vector<16x32xf32>
    %3 = tpu.matmul %0, %2, %cst {dimension_numbers = #tpu.dot_dimension_numbers<[1], [0], [0], [1], [0, 0, 1, 1], [], []>} : vector<16x32xf32>, vector<32x32xf32>, vector<16x32xf32> -> vector<16x32xf32>
    %c0_5 = arith.constant 0 : index
    %c0_6 = arith.constant 0 : index
    %4 = vector.load %arg4[%c0_5, %c0_6] : memref<1x32xf32, #tpu.memory_space<vmem>>, vector<1x32xf32>
    %5 = vector.broadcast %4 : vector<1x32xf32> to vector<16x32xf32>
    %6 = arith.addf %3, %5 : vector<16x32xf32>
    %7 = arith.addf %6, %1 : vector<16x32xf32>
    %cst_7 = arith.constant dense<0.000000e+00> : vector<16xf32>
    %8 = vector.multi_reduction <add>, %7, %cst_7 [1] : vector<16x32xf32> to vector<16xf32>
    %9 = vector.shape_cast %8 : vector<16xf32> to vector<16x1xf32>
    %cst_8 = arith.constant 3.200000e+01 : f32
    %10 = vector.broadcast %cst_8 : f32 to vector<16x1xf32>
    %11 = arith.divf %9, %10 : vector<16x1xf32>
    %12 = vector.broadcast %11 : vector<16x1xf32> to vector<16x32xf32>
    %13 = arith.subf %7, %12 : vector<16x32xf32>
    %14 = vector.broadcast %11 : vector<16x1xf32> to vector<16x32xf32>
    %15 = arith.subf %7, %14 : vector<16x32xf32>
    %16 = arith.mulf %13, %15 : vector<16x32xf32>
    %cst_9 = arith.constant dense<0.000000e+00> : vector<16xf32>
    %17 = vector.multi_reduction <add>, %16, %cst_9 [1] : vector<16x32xf32> to vector<16xf32>
    %18 = vector.shape_cast %17 : vector<16xf32> to vector<16x1xf32>
    %cst_10 = arith.constant 3.200000e+01 : f32
    %19 = vector.broadcast %cst_10 : f32 to vector<16x1xf32>
    %20 = arith.divf %18, %19 : vector<16x1xf32>
    %21 = math.sqrt %20 : vector<16x1xf32>
    %c0_11 = arith.constant 0 : index
    %c0_12 = arith.constant 0 : index
    %22 = vector.load %arg5[%c0_11, %c0_12] : memref<1x32xf32, #tpu.memory_space<vmem>>, vector<1x32xf32>
    %23 = vector.broadcast %11 : vector<16x1xf32> to vector<16x32xf32>
    %24 = arith.subf %7, %23 : vector<16x32xf32>
    %25 = vector.broadcast %22 : vector<1x32xf32> to vector<16x32xf32>
    %26 = arith.mulf %25, %24 : vector<16x32xf32>
    %cst_13 = arith.constant 1.000000e-10 : f32
    %27 = vector.broadcast %cst_13 : f32 to vector<16x1xf32>
    %28 = arith.addf %21, %27 : vector<16x1xf32>
    %29 = vector.broadcast %28 : vector<16x1xf32> to vector<16x32xf32>
    %30 = arith.divf %26, %29 : vector<16x32xf32>
    %c0_14 = arith.constant 0 : index
    %c0_15 = arith.constant 0 : index
    %31 = vector.load %arg6[%c0_14, %c0_15] : memref<1x32xf32, #tpu.memory_space<vmem>>, vector<1x32xf32>
    %32 = vector.broadcast %31 : vector<1x32xf32> to vector<16x32xf32>
    %33 = arith.addf %30, %32 : vector<16x32xf32>
    %c0_16 = arith.constant 0 : index
    %c0_17 = arith.constant 0 : index
    %34 = vector.load %arg7[%c0_16, %c0_17] : memref<32x64xf32, #tpu.memory_space<vmem>>, vector<32x64xf32>
    %cst_18 = arith.constant dense<0.000000e+00> : vector<16x64xf32>
    %35 = tpu.matmul %33, %34, %cst_18 {dimension_numbers = #tpu.dot_dimension_numbers<[1], [0], [0], [1], [0, 0, 1, 1], [], []>} : vector<16x32xf32>, vector<32x64xf32>, vector<16x64xf32> -> vector<16x64xf32>
    %c0_19 = arith.constant 0 : index
    %c0_20 = arith.constant 0 : index
    %36 = vector.load %arg8[%c0_19, %c0_20] : memref<1x64xf32, #tpu.memory_space<vmem>>, vector<1x64xf32>
    %37 = vector.broadcast %36 : vector<1x64xf32> to vector<16x64xf32>
    %38 = arith.addf %35, %37 : vector<16x64xf32>
    %cst_21 = arith.constant 0.000000e+00 : f32
    %39 = vector.broadcast %cst_21 : f32 to vector<16x64xf32>
    %40 = arith.maximumf %38, %39 : vector<16x64xf32>
    %c0_22 = arith.constant 0 : index
    %c0_23 = arith.constant 0 : index
    %41 = vector.load %arg9[%c0_22, %c0_23] : memref<64x32xf32, #tpu.memory_space<vmem>>, vector<64x32xf32>
    %cst_24 = arith.constant dense<0.000000e+00> : vector<16x32xf32>
    %42 = tpu.matmul %40, %41, %cst_24 {dimension_numbers = #tpu.dot_dimension_numbers<[1], [0], [0], [1], [0, 0, 1, 1], [], []>} : vector<16x64xf32>, vector<64x32xf32>, vector<16x32xf32> -> vector<16x32xf32>
    %c0_25 = arith.constant 0 : index
    %c0_26 = arith.constant 0 : index
    %43 = vector.load %arg10[%c0_25, %c0_26] : memref<1x32xf32, #tpu.memory_space<vmem>>, vector<1x32xf32>
    %44 = vector.broadcast %43 : vector<1x32xf32> to vector<16x32xf32>
    %45 = arith.addf %42, %44 : vector<16x32xf32>
    %46 = arith.addf %33, %45 : vector<16x32xf32>
    %cst_27 = arith.constant dense<0.000000e+00> : vector<16xf32>
    %47 = vector.multi_reduction <add>, %46, %cst_27 [1] : vector<16x32xf32> to vector<16xf32>
    %48 = vector.shape_cast %47 : vector<16xf32> to vector<16x1xf32>
    %cst_28 = arith.constant 3.200000e+01 : f32
    %49 = vector.broadcast %cst_28 : f32 to vector<16x1xf32>
    %50 = arith.divf %48, %49 : vector<16x1xf32>
    %51 = vector.broadcast %50 : vector<16x1xf32> to vector<16x32xf32>
    %52 = arith.subf %46, %51 : vector<16x32xf32>
    %53 = vector.broadcast %50 : vector<16x1xf32> to vector<16x32xf32>
    %54 = arith.subf %46, %53 : vector<16x32xf32>
    %55 = arith.mulf %52, %54 : vector<16x32xf32>
    %cst_29 = arith.constant dense<0.000000e+00> : vector<16xf32>
    %56 = vector.multi_reduction <add>, %55, %cst_29 [1] : vector<16x32xf32> to vector<16xf32>
    %57 = vector.shape_cast %56 : vector<16xf32> to vector<16x1xf32>
    %cst_30 = arith.constant 3.200000e+01 : f32
    %58 = vector.broadcast %cst_30 : f32 to vector<16x1xf32>
    %59 = arith.divf %57, %58 : vector<16x1xf32>
    %60 = math.sqrt %59 : vector<16x1xf32>
    %c0_31 = arith.constant 0 : index
    %c0_32 = arith.constant 0 : index
    %61 = vector.load %arg11[%c0_31, %c0_32] : memref<1x32xf32, #tpu.memory_space<vmem>>, vector<1x32xf32>
    %62 = vector.broadcast %50 : vector<16x1xf32> to vector<16x32xf32>
    %63 = arith.subf %46, %62 : vector<16x32xf32>
    %64 = vector.broadcast %61 : vector<1x32xf32> to vector<16x32xf32>
    %65 = arith.mulf %64, %63 : vector<16x32xf32>
    %cst_33 = arith.constant 1.000000e-10 : f32
    %66 = vector.broadcast %cst_33 : f32 to vector<16x1xf32>
    %67 = arith.addf %60, %66 : vector<16x1xf32>
    %68 = vector.broadcast %67 : vector<16x1xf32> to vector<16x32xf32>
    %69 = arith.divf %65, %68 : vector<16x32xf32>
    %c0_34 = arith.constant 0 : index
    %c0_35 = arith.constant 0 : index
    %70 = vector.load %arg12[%c0_34, %c0_35] : memref<1x32xf32, #tpu.memory_space<vmem>>, vector<1x32xf32>
    %71 = vector.broadcast %70 : vector<1x32xf32> to vector<16x32xf32>
    %72 = arith.addf %69, %71 : vector<16x32xf32>
    %c0_36 = arith.constant 0 : index
    %c0_37 = arith.constant 0 : index
    %73 = vector.load %arg13[%c0_36, %c0_37] : memref<16x32xf32, #tpu.memory_space<vmem>>, vector<16x32xf32>
    tpu.vector_store %arg13[%c0_36, %c0_37], %72 {strides = array<i32>} : memref<16x32xf32, #tpu.memory_space<vmem>>, vector<16x32xf32>,
    return
  }
  func.func @transform_0(%arg0: i32) -> (i32, i32) {
    %c0_i32 = arith.constant 0 : i32
    %c0_i32_0 = arith.constant 0 : i32
    return %arg0, %c0_i32 : i32, i32
  }
  func.func @transform_1(%arg0: i32) -> (i32, i32) {
    %c0_i32 = arith.constant 0 : i32
    %c0_i32_0 = arith.constant 0 : i32
    return %arg0, %c0_i32 : i32, i32
  }
  func.func @transform_2(%arg0: i32) -> (i32, i32) {
    %c0_i32 = arith.constant 0 : i32
    %c0_i32_0 = arith.constant 0 : i32
    %c0_i32_1 = arith.constant 0 : i32
    return %c0_i32, %c0_i32_0 : i32, i32
  }
  func.func @transform_3(%arg0: i32) -> (i32, i32) {
    %c0_i32 = arith.constant 0 : i32
    %c0_i32_0 = arith.constant 0 : i32
    %c0_i32_1 = arith.constant 0 : i32
    return %c0_i32, %c0_i32_0 : i32, i32
  }
  func.func @transform_4(%arg0: i32) -> (i32, i32) {
    %c0_i32 = arith.constant 0 : i32
    %c0_i32_0 = arith.constant 0 : i32
    %c0_i32_1 = arith.constant 0 : i32
    return %c0_i32, %c0_i32_0 : i32, i32
  }
  func.func @transform_5(%arg0: i32) -> (i32, i32) {
    %c0_i32 = arith.constant 0 : i32
    %c0_i32_0 = arith.constant 0 : i32
    %c0_i32_1 = arith.constant 0 : i32
    return %c0_i32, %c0_i32_0 : i32, i32
  }
  func.func @transform_6(%arg0: i32) -> (i32, i32) {
    %c0_i32 = arith.constant 0 : i32
    %c0_i32_0 = arith.constant 0 : i32
    %c0_i32_1 = arith.constant 0 : i32
    return %c0_i32, %c0_i32_0 : i32, i32
  }
  func.func @transform_7(%arg0: i32) -> (i32, i32) {
    %c0_i32 = arith.constant 0 : i32
    %c0_i32_0 = arith.constant 0 : i32
    %c0_i32_1 = arith.constant 0 : i32
    return %c0_i32, %c0_i32_0 : i32, i32
  }
  func.func @transform_8(%arg0: i32) -> (i32, i32) {
    %c0_i32 = arith.constant 0 : i32
    %c0_i32_0 = arith.constant 0 : i32
    %c0_i32_1 = arith.constant 0 : i32
    return %c0_i32, %c0_i32_0 : i32, i32
  }
  func.func @transform_9(%arg0: i32) -> (i32, i32) {
    %c0_i32 = arith.constant 0 : i32
    %c0_i32_0 = arith.constant 0 : i32
    %c0_i32_1 = arith.constant 0 : i32
    return %c0_i32, %c0_i32_0 : i32, i32
  }
  func.func @transform_10(%arg0: i32) -> (i32, i32) {
    %c0_i32 = arith.constant 0 : i32
    %c0_i32_0 = arith.constant 0 : i32
    %c0_i32_1 = arith.constant 0 : i32
    return %c0_i32, %c0_i32_0 : i32, i32
  }
  func.func @transform_11(%arg0: i32) -> (i32, i32) {
    %c0_i32 = arith.constant 0 : i32
    %c0_i32_0 = arith.constant 0 : i32
    %c0_i32_1 = arith.constant 0 : i32
    return %c0_i32, %c0_i32_0 : i32, i32
  }
  func.func @transform_12(%arg0: i32) -> (i32, i32) {
    %c0_i32 = arith.constant 0 : i32
    %c0_i32_0 = arith.constant 0 : i32
    return %arg0, %c0_i32 : i32, i32
  }
}

module attributes {stable_mosaic.version = 11 : i64} {
  func.func @_post_attention_kernel(%arg0: i32, %arg1: memref<16x32xf32, #tpu.memory_space<vmem>>, %arg2: memref<16x32xf32, #tpu.memory_space<vmem>>, %arg3: memref<32x32xf32, #tpu.memory_space<vmem>>, %arg4: memref<1x32xf32, #tpu.memory_space<vmem>>, %arg5: memref<1x32xf32, #tpu.memory_space<vmem>>, %arg6: memref<1x32xf32, #tpu.memory_space<vmem>>, %arg7: memref<32x64xf32, #tpu.memory_space<vmem>>, %arg8: memref<1x64xf32, #tpu.memory_space<vmem>>, %arg9: memref<64x32xf32, #tpu.memory_space<vmem>>, %arg10: memref<1x32xf32, #tpu.memory_space<vmem>>, %arg11: memref<1x32xf32, #tpu.memory_space<vmem>>, %arg12: memref<1x32xf32, #tpu.memory_space<vmem>>, %arg13: memref<16x32xf32, #tpu.memory_space<vmem>>) attributes {dimension_semantics = [#tpu.dimension_semantics<parallel>], iteration_bounds = array<i64: 1>, scalar_prefetch = 0 : i64, scratch_operands = 0 : i64, tpu.core_type = #tpu.core_type<tc>, window_params = [{transform_indices = @transform_0, window_bounds = array<i64: 16, 32>}, {transform_indices = @transform_1, window_bounds = array<i64: 16, 32>}, {pipeline_mode = #tpu.pipeline_mode<synchronous>, transform_indices = @transform_2, window_bounds = array<i64: 32, 32>}, {pipeline_mode = #tpu.pipeline_mode<synchronous>, transform_indices = @transform_3, window_bounds = array<i64: 1, 32>}, {pipeline_mode = #tpu.pipeline_mode<synchronous>, transform_indices = @transform_4, window_bounds = array<i64: 1, 32>}, {pipeline_mode = #tpu.pipeline_mode<synchronous>, transform_indices = @transform_5, window_bounds = array<i64: 1, 32>}, {pipeline_mode = #tpu.pipeline_mode<synchronous>, transform_indices = @transform_6, window_bounds = array<i64: 32, 64>}, {pipeline_mode = #tpu.pipeline_mode<synchronous>, transform_indices = @transform_7, window_bounds = array<i64: 1, 64>}, {pipeline_mode = #tpu.pipeline_mode<synchronous>, transform_indices = @transform_8, window_bounds = array<i64: 64, 32>}, {pipeline_mode = #tpu.pipeline_mode<synchronous>, transform_indices = @transform_9, window_bounds = array<i64: 1, 32>}, {pipeline_mode = #tpu.pipeline_mode<synchronous>, transform_indices = @transform_10, window_bounds = array<i64: 1, 32>}, {pipeline_mode = #tpu.pipeline_mode<synchronous>, transform_indices = @transform_11, window_bounds = array<i64: 1, 32>}, {transform_indices = @transform_12, window_bounds = array<i64: 16, 32>}]} {
    %c0 = arith.constant 0 : index
    %c0_0 = arith.constant 0 : index
    %0 = vector.load %arg1[%c0, %c0_0] : memref<16x32xf32, #tpu.memory_space<vmem>>, vector<16x32xf32>
    %c0_1 = arith.constant 0 : index
    %c0_2 = arith.constant 0 : index
    %1 = vector.load %arg2[%c0_1, %c0_2] : memref<16x32xf32, #tpu.memory_space<vmem>>, vector<16x32xf32>
    %c0_3 = arith.constant 0 : index
    %c0_4 = arith.constant 0 : index
    %2 = vector.load %arg3[%c0_3, %c0_4] : memref<32x32xf32, #tpu.memory_space<vmem>>, vector<32x32xf32>
    %cst = arith.constant dense<0.000000e+00> : vector<16x32xf32>
    %3 = tpu.matmul %0, %2, %cst {dimension_numbers = #tpu.dot_dimension_numbers<[1], [0], [0], [1], [0, 0, 1, 1], [], []>} : vector<16x32xf32>, vector<32x32xf32>, vector<16x32xf32> -> vector<16x32xf32>
    %c0_5 = arith.constant 0 : index
    %c0_6 = arith.constant 0 : index
    %4 = vector.load %arg4[%c0_5, %c0_6] : memref<1x32xf32, #tpu.memory_space<vmem>>, vector<1x32xf32>
    %5 = vector.broadcast %4 : vector<1x32xf32> to vector<16x32xf32>
    %6 = arith.addf %3, %5 : vector<16x32xf32>
    %7 = arith.addf %6, %1 : vector<16x32xf32>
    %cst_7 = arith.constant dense<0.000000e+00> : vector<16xf32>
    %8 = vector.multi_reduction <add>, %7, %cst_7 [1] : vector<16x32xf32> to vector<16xf32>
    %9 = vector.shape_cast %8 : vector<16xf32> to vector<16x1xf32>
    %cst_8 = arith.constant 3.200000e+01 : f32
    %10 = vector.broadcast %cst_8 : f32 to vector<16x1xf32>
    %11 = arith.divf %9, %10 : vector<16x1xf32>
    %12 = vector.broadcast %11 : vector<16x1xf32> to vector<16x32xf32>
    %13 = arith.subf %7, %12 : vector<16x32xf32>
    %14 = vector.broadcast %11 : vector<16x1xf32> to vector<16x32xf32>
    %15 = arith.subf %7, %14 : vector<16x32xf32>
    %16 = arith.mulf %13, %15 : vector<16x32xf32>
    %cst_9 = arith.constant dense<0.000000e+00> : vector<16xf32>
    %17 = vector.multi_reduction <add>, %16, %cst_9 [1] : vector<16x32xf32> to vector<16xf32>
    %18 = vector.shape_cast %17 : vector<16xf32> to vector<16x1xf32>
    %cst_10 = arith.constant 3.200000e+01 : f32
    %19 = vector.broadcast %cst_10 : f32 to vector<16x1xf32>
    %20 = arith.divf %18, %19 : vector<16x1xf32>
    %21 = math.sqrt %20 : vector<16x1xf32>
    %c0_11 = arith.constant 0 : index
    %c0_12 = arith.constant 0 : index
    %22 = vector.load %arg5[%c0_11, %c0_12] : memref<1x32xf32, #tpu.memory_space<vmem>>, vector<1x32xf32>
    %23 = vector.broadcast %11 : vector<16x1xf32> to vector<16x32xf32>
    %24 = arith.subf %7, %23 : vector<16x32xf32>
    %25 = vector.broadcast %22 : vector<1x32xf32> to vector<16x32xf32>
    %26 = arith.mulf %25, %24 : vector<16x32xf32>
    %cst_13 = arith.constant 1.000000e-10 : f32
    %27 = vector.broadcast %cst_13 : f32 to vector<16x1xf32>
    %28 = arith.addf %21, %27 : vector<16x1xf32>
    %29 = vector.broadcast %28 : vector<16x1xf32> to vector<16x32xf32>
    %30 = arith.divf %26, %29 : vector<16x32xf32>
    %c0_14 = arith.constant 0 : index
    %c0_15 = arith.constant 0 : index
    %31 = vector.load %arg6[%c0_14, %c0_15] : memref<1x32xf32, #tpu.memory_space<vmem>>, vector<1x32xf32>
    %32 = vector.broadcast %31 : vector<1x32xf32> to vector<16x32xf32>
    %33 = arith.addf %30, %32 : vector<16x32xf32>
    %c0_16 = arith.constant 0 : index
    %c0_17 = arith.constant 0 : index
    %34 = vector.load %arg7[%c0_16, %c0_17] : memref<32x64xf32, #tpu.memory_space<vmem>>, vector<32x64xf32>
    %cst_18 = arith.constant dense<0.000000e+00> : vector<16x64xf32>
    %35 = tpu.matmul %33, %34, %cst_18 {dimension_numbers = #tpu.dot_dimension_numbers<[1], [0], [0], [1], [0, 0, 1, 1], [], []>} : vector<16x32xf32>, vector<32x64xf32>, vector<16x64xf32> -> vector<16x64xf32>
    %c0_19 = arith.constant 0 : index
    %c0_20 = arith.constant 0 : index
    %36 = vector.load %arg8[%c0_19, %c0_20] : memref<1x64xf32, #tpu.memory_space<vmem>>, vector<1x64xf32>
    %37 = vector.broadcast %36 : vector<1x64xf32> to vector<16x64xf32>
    %38 = arith.addf %35, %37 : vector<16x64xf32>
    %cst_21 = arith.constant 0.000000e+00 : f32
    %39 = vector.broadcast %cst_21 : f32 to vector<16x64xf32>
    %40 = arith.maximumf %38, %39 : vector<16x64xf32>
    %c0_22 = arith.constant 0 : index
    %c0_23 = arith.constant 0 : index
    %41 = vector.load %arg9[%c0_22, %c0_23] : memref<64x32xf32, #tpu.memory_space<vmem>>, vector<64x32xf32>
    %cst_24 = arith.constant dense<0.000000e+00> : vector<16x32xf32>
    %42 = tpu.matmul %40, %41, %cst_24 {dimension_numbers = #tpu.dot_dimension_numbers<[1], [0], [0], [1], [0, 0, 1, 1], [], []>} : vector<16x64xf32>, vector<64x32xf32>, vector<16x32xf32> -> vector<16x32xf32>
    %c0_25 = arith.constant 0 : index
    %c0_26 = arith.constant 0 : index
    %43 = vector.load %arg10[%c0_25, %c0_26] : memref<1x32xf32, #tpu.memory_space<vmem>>, vector<1x32xf32>
    %44 = vector.broadcast %43 : vector<1x32xf32> to vector<16x32xf32>
    %45 = arith.addf %42, %44 : vector<16x32xf32>
    %46 = arith.addf %33, %45 : vector<16x32xf32>
    %cst_27 = arith.constant dense<0.000000e+00> : vector<16xf32>
    %47 = vector.multi_reduction <add>, %46, %cst_27 [1] : vector<16x32xf32> to vector<16xf32>
    %48 = vector.shape_cast %47 : vector<16xf32> to vector<16x1xf32>
    %cst_28 = arith.constant 3.200000e+01 : f32
    %49 = vector.broadcast %cst_28 : f32 to vector<16x1xf32>
    %50 = arith.divf %48, %49 : vector<16x1xf32>
    %51 = vector.broadcast %50 : vector<16x1xf32> to vector<16x32xf32>
    %52 = arith.subf %46, %51 : vector<16x32xf32>
    %53 = vector.broadcast %50 : vector<16x1xf32> to vector<16x32xf32>
    %54 = arith.subf %46, %53 : vector<16x32xf32>
    %55 = arith.mulf %52, %54 : vector<16x32xf32>
    %cst_29 = arith.constant dense<0.000000e+00> : vector<16xf32>
    %56 = vector.multi_reduction <add>, %55, %cst_29 [1] : vector<16x32xf32> to vector<16xf32>
    %57 = vector.shape_cast %56 : vector<16xf32> to vector<16x1xf32>
    %cst_30 = arith.constant 3.200000e+01 : f32
    %58 = vector.broadcast %cst_30 : f32 to vector<16x1xf32>
    %59 = arith.divf %57, %58 : vector<16x1xf32>
    %60 = math.sqrt %59 : vector<16x1xf32>
    %c0_31 = arith.constant 0 : index
    %c0_32 = arith.constant 0 : index
    %61 = vector.load %arg11[%c0_31, %c0_32] : memref<1x32xf32, #tpu.memory_space<vmem>>, vector<1x32xf32>
    %62 = vector.broadcast %50 : vector<16x1xf32> to vector<16x32xf32>
    %63 = arith.subf %46, %62 : vector<16x32xf32>
    %64 = vector.broadcast %61 : vector<1x32xf32> to vector<16x32xf32>
    %65 = arith.mulf %64, %63 : vector<16x32xf32>
    %cst_33 = arith.constant 1.000000e-10 : f32
    %66 = vector.broadcast %cst_33 : f32 to vector<16x1xf32>
    %67 = arith.addf %60, %66 : vector<16x1xf32>
    %68 = vector.broadcast %67 : vector<16x1xf32> to vector<16x32xf32>
    %69 = arith.divf %65, %68 : vector<16x32xf32>
    %c0_34 = arith.constant 0 : index
    %c0_35 = arith.constant 0 : index
    %70 = vector.load %arg12[%c0_34, %c0_35] : memref<1x32xf32, #tpu.memory_space<vmem>>, vector<1x32xf32>
    %71 = vector.broadcast %70 : vector<1x32xf32> to vector<16x32xf32>
    %72 = arith.addf %69, %71 : vector<16x32xf32>
    %c0_36 = arith.constant 0 : index
    %c0_37 = arith.constant 0 : index
    %73 = vector.load %arg13[%c0_36, %c0_37] : memref<16x32xf32, #tpu.memory_space<vmem>>, vector<16x32xf32>
    tpu.vector_store %arg13[%c0_36, %c0_37], %72 {strides = array<i32>} : memref<16x32xf32, #tpu.memory_space<vmem>>, vector<16x32xf32>,
    return
  }
  func.func @transform_0(%arg0: i32) -> (i32, i32) {
    %c0_i32 = arith.constant 0 : i32
    %c0_i32_0 = arith.constant 0 : i32
    return %arg0, %c0_i32 : i32, i32
  }
  func.func @transform_1(%arg0: i32) -> (i32, i32) {
    %c0_i32 = arith.constant 0 : i32
    %c0_i32_0 = arith.constant 0 : i32
    return %arg0, %c0_i32 : i32, i32
  }
  func.func @transform_2(%arg0: i32) -> (i32, i32) {
    %c0_i32 = arith.constant 0 : i32
    %c0_i32_0 = arith.constant 0 : i32
    %c0_i32_1 = arith.constant 0 : i32
    return %c0_i32, %c0_i32_0 : i32, i32
  }
  func.func @transform_3(%arg0: i32) -> (i32, i32) {
    %c0_i32 = arith.constant 0 : i32
    %c0_i32_0 = arith.constant 0 : i32
    %c0_i32_1 = arith.constant 0 : i32
    return %c0_i32, %c0_i32_0 : i32, i32
  }
  func.func @transform_4(%arg0: i32) -> (i32, i32) {
    %c0_i32 = arith.constant 0 : i32
    %c0_i32_0 = arith.constant 0 : i32
    %c0_i32_1 = arith.constant 0 : i32
    return %c0_i32, %c0_i32_0 : i32, i32
  }
  func.func @transform_5(%arg0: i32) -> (i32, i32) {
    %c0_i32 = arith.constant 0 : i32
    %c0_i32_0 = arith.constant 0 : i32
    %c0_i32_1 = arith.constant 0 : i32
    return %c0_i32, %c0_i32_0 : i32, i32
  }
  func.func @transform_6(%arg0: i32) -> (i32, i32) {
    %c0_i32 = arith.constant 0 : i32
    %c0_i32_0 = arith.constant 0 : i32
    %c0_i32_1 = arith.constant 0 : i32
    return %c0_i32, %c0_i32_0 : i32, i32
  }
  func.func @transform_7(%arg0: i32) -> (i32, i32) {
    %c0_i32 = arith.constant 0 : i32
    %c0_i32_0 = arith.constant 0 : i32
    %c0_i32_1 = arith.constant 0 : i32
    return %c0_i32, %c0_i32_0 : i32, i32
  }
  func.func @transform_8(%arg0: i32) -> (i32, i32) {
    %c0_i32 = arith.constant 0 : i32
    %c0_i32_0 = arith.constant 0 : i32
    %c0_i32_1 = arith.constant 0 : i32
    return %c0_i32, %c0_i32_0 : i32, i32
  }
  func.func @transform_9(%arg0: i32) -> (i32, i32) {
    %c0_i32 = arith.constant 0 : i32
    %c0_i32_0 = arith.constant 0 : i32
    %c0_i32_1 = arith.constant 0 : i32
    return %c0_i32, %c0_i32_0 : i32, i32
  }
  func.func @transform_10(%arg0: i32) -> (i32, i32) {
    %c0_i32 = arith.constant 0 : i32
    %c0_i32_0 = arith.constant 0 : i32
    %c0_i32_1 = arith.constant 0 : i32
    return %c0_i32, %c0_i32_0 : i32, i32
  }
  func.func @transform_11(%arg0: i32) -> (i32, i32) {
    %c0_i32 = arith.constant 0 : i32
    %c0_i32_0 = arith.constant 0 : i32
    %c0_i32_1 = arith.constant 0 : i32
    return %c0_i32, %c0_i32_0 : i32, i32
  }
  func.func @transform_12(%arg0: i32) -> (i32, i32) {
    %c0_i32 = arith.constant 0 : i32
    %c0_i32_0 = arith.constant 0 : i32
    return %arg0, %c0_i32 : i32, i32
  }
}

module attributes {stable_mosaic.version = 11 : i64} {
  func.func @_mha_head_kernel(%arg0: i32, %arg1: i32, %arg2: memref<1x8x32xf32, #tpu.memory_space<vmem>>, %arg3: memref<1x32x8xf32, #tpu.memory_space<vmem>>, %arg4: memref<1x1x8xf32, #tpu.memory_space<vmem>>, %arg5: memref<1x32x8xf32, #tpu.memory_space<vmem>>, %arg6: memref<1x1x8xf32, #tpu.memory_space<vmem>>, %arg7: memref<1x32x8xf32, #tpu.memory_space<vmem>>, %arg8: memref<1x1x8xf32, #tpu.memory_space<vmem>>, %arg9: memref<1x1x8x8xf32, #tpu.memory_space<vmem>>) attributes {dimension_semantics = [#tpu.dimension_semantics<parallel>, #tpu.dimension_semantics<parallel>], iteration_bounds = array<i64: 2, 4>, scalar_prefetch = 0 : i64, scratch_operands = 0 : i64, tpu.core_type = #tpu.core_type<tc>, window_params = [{transform_indices = @transform_0, window_bounds = array<i64: 1, 8, 32>}, {transform_indices = @transform_1, window_bounds = array<i64: 1, 32, 8>}, {transform_indices = @transform_2, window_bounds = array<i64: 1, 1, 8>}, {transform_indices = @transform_3, window_bounds = array<i64: 1, 32, 8>}, {transform_indices = @transform_4, window_bounds = array<i64: 1, 1, 8>}, {transform_indices = @transform_5, window_bounds = array<i64: 1, 32, 8>}, {transform_indices = @transform_6, window_bounds = array<i64: 1, 1, 8>}, {transform_indices = @transform_7, window_bounds = array<i64: 1, 1, 8, 8>}]} {
    %c0 = arith.constant 0 : index
    %c0_0 = arith.constant 0 : index
    %c0_1 = arith.constant 0 : index
    %0 = vector.load %arg2[%c0, %c0_0, %c0_1] : memref<1x8x32xf32, #tpu.memory_space<vmem>>, vector<1x8x32xf32>
    %1 = vector.shape_cast %0 : vector<1x8x32xf32> to vector<8x32xf32>
    %c0_2 = arith.constant 0 : index
    %c0_3 = arith.constant 0 : index
    %c0_4 = arith.constant 0 : index
    %2 = vector.load %arg3[%c0_2, %c0_3, %c0_4] : memref<1x32x8xf32, #tpu.memory_space<vmem>>, vector<1x32x8xf32>
    %3 = vector.shape_cast %2 : vector<1x32x8xf32> to vector<32x8xf32>
    %cst = arith.constant dense<0.000000e+00> : vector<8x8xf32>
    %4 = tpu.matmul %1, %3, %cst {dimension_numbers = #tpu.dot_dimension_numbers<[1], [0], [0], [1], [0, 0, 1, 1], [], []>} : vector<8x32xf32>, vector<32x8xf32>, vector<8x8xf32> -> vector<8x8xf32>
    %c0_5 = arith.constant 0 : index
    %c0_6 = arith.constant 0 : index
    %c0_7 = arith.constant 0 : index
    %5 = vector.load %arg4[%c0_5, %c0_6, %c0_7] : memref<1x1x8xf32, #tpu.memory_space<vmem>>, vector<1x1x8xf32>
    %6 = vector.shape_cast %5 : vector<1x1x8xf32> to vector<1x8xf32>
    %7 = vector.broadcast %6 : vector<1x8xf32> to vector<8x8xf32>
    %8 = arith.addf %4, %7 : vector<8x8xf32>
    %c0_8 = arith.constant 0 : index
    %c0_9 = arith.constant 0 : index
    %c0_10 = arith.constant 0 : index
    %9 = vector.load %arg5[%c0_8, %c0_9, %c0_10] : memref<1x32x8xf32, #tpu.memory_space<vmem>>, vector<1x32x8xf32>
    %10 = vector.shape_cast %9 : vector<1x32x8xf32> to vector<32x8xf32>
    %cst_11 = arith.constant dense<0.000000e+00> : vector<8x8xf32>
    %11 = tpu.matmul %1, %10, %cst_11 {dimension_numbers = #tpu.dot_dimension_numbers<[1], [0], [0], [1], [0, 0, 1, 1], [], []>} : vector<8x32xf32>, vector<32x8xf32>, vector<8x8xf32> -> vector<8x8xf32>
    %c0_12 = arith.constant 0 : index
    %c0_13 = arith.constant 0 : index
    %c0_14 = arith.constant 0 : index
    %12 = vector.load %arg6[%c0_12, %c0_13, %c0_14] : memref<1x1x8xf32, #tpu.memory_space<vmem>>, vector<1x1x8xf32>
    %13 = vector.shape_cast %12 : vector<1x1x8xf32> to vector<1x8xf32>
    %14 = vector.broadcast %13 : vector<1x8xf32> to vector<8x8xf32>
    %15 = arith.addf %11, %14 : vector<8x8xf32>
    %c0_15 = arith.constant 0 : index
    %c0_16 = arith.constant 0 : index
    %c0_17 = arith.constant 0 : index
    %16 = vector.load %arg7[%c0_15, %c0_16, %c0_17] : memref<1x32x8xf32, #tpu.memory_space<vmem>>, vector<1x32x8xf32>
    %17 = vector.shape_cast %16 : vector<1x32x8xf32> to vector<32x8xf32>
    %cst_18 = arith.constant dense<0.000000e+00> : vector<8x8xf32>
    %18 = tpu.matmul %1, %17, %cst_18 {dimension_numbers = #tpu.dot_dimension_numbers<[1], [0], [0], [1], [0, 0, 1, 1], [], []>} : vector<8x32xf32>, vector<32x8xf32>, vector<8x8xf32> -> vector<8x8xf32>
    %c0_19 = arith.constant 0 : index
    %c0_20 = arith.constant 0 : index
    %c0_21 = arith.constant 0 : index
    %19 = vector.load %arg8[%c0_19, %c0_20, %c0_21] : memref<1x1x8xf32, #tpu.memory_space<vmem>>, vector<1x1x8xf32>
    %20 = vector.shape_cast %19 : vector<1x1x8xf32> to vector<1x8xf32>
    %21 = vector.broadcast %20 : vector<1x8xf32> to vector<8x8xf32>
    %22 = arith.addf %18, %21 : vector<8x8xf32>
    %23 = tpu.transpose %15, [1, 0] : vector<8x8xf32> -> vector<8x8xf32>
    %cst_22 = arith.constant dense<0.000000e+00> : vector<8x8xf32>
    %24 = tpu.matmul %8, %23, %cst_22 {dimension_numbers = #tpu.dot_dimension_numbers<[1], [0], [0], [1], [0, 0, 1, 1], [], []>} : vector<8x8xf32>, vector<8x8xf32>, vector<8x8xf32> -> vector<8x8xf32>
    %cst_23 = arith.constant 0.353553385 : f32
    %25 = vector.broadcast %cst_23 : f32 to vector<8x8xf32>
    %26 = arith.mulf %24, %25 : vector<8x8xf32>
    %cst_24 = arith.constant dense<0xFF800000> : vector<8xf32>
    %27 = vector.multi_reduction <maximumf>, %26, %cst_24 [1] : vector<8x8xf32> to vector<8xf32>
    %28 = vector.shape_cast %27 : vector<8xf32> to vector<8x1xf32>
    %29 = vector.broadcast %28 : vector<8x1xf32> to vector<8x8xf32>
    %30 = arith.subf %26, %29 : vector<8x8xf32>
    %31 = math.exp %30 : vector<8x8xf32>
    %cst_25 = arith.constant dense<0.000000e+00> : vector<8xf32>
    %32 = vector.multi_reduction <add>, %31, %cst_25 [1] : vector<8x8xf32> to vector<8xf32>
    %33 = vector.shape_cast %32 : vector<8xf32> to vector<8x1xf32>
    %34 = vector.broadcast %33 : vector<8x1xf32> to vector<8x8xf32>
    %35 = arith.divf %31, %34 : vector<8x8xf32>
    %cst_26 = arith.constant dense<0.000000e+00> : vector<8x8xf32>
    %36 = tpu.matmul %35, %22, %cst_26 {dimension_numbers = #tpu.dot_dimension_numbers<[1], [0], [0], [1], [0, 0, 1, 1], [], []>} : vector<8x8xf32>, vector<8x8xf32>, vector<8x8xf32> -> vector<8x8xf32>
    %c0_27 = arith.constant 0 : index
    %c0_28 = arith.constant 0 : index
    %c0_29 = arith.constant 0 : index
    %c0_30 = arith.constant 0 : index
    %37 = vector.load %arg9[%c0_27, %c0_28, %c0_29, %c0_30] : memref<1x1x8x8xf32, #tpu.memory_space<vmem>>, vector<1x1x8x8xf32>
    %38 = vector.shape_cast %37 : vector<1x1x8x8xf32> to vector<8x8xf32>
    %39 = vector.shape_cast %36 : vector<8x8xf32> to vector<1x1x8x8xf32>
    tpu.vector_store %arg9[%c0_27, %c0_28, %c0_29, %c0_30], %39 {strides = array<i32>} : memref<1x1x8x8xf32, #tpu.memory_space<vmem>>, vector<1x1x8x8xf32>,
    return
  }
  func.func @transform_0(%arg0: i32, %arg1: i32) -> (i32, i32, i32) {
    %c0_i32 = arith.constant 0 : i32
    %c0_i32_0 = arith.constant 0 : i32
    %c0_i32_1 = arith.constant 0 : i32
    return %arg0, %c0_i32, %c0_i32_0 : i32, i32, i32
  }
  func.func @transform_1(%arg0: i32, %arg1: i32) -> (i32, i32, i32) {
    %c0_i32 = arith.constant 0 : i32
    %c0_i32_0 = arith.constant 0 : i32
    %c0_i32_1 = arith.constant 0 : i32
    return %arg1, %c0_i32, %c0_i32_0 : i32, i32, i32
  }
  func.func @transform_2(%arg0: i32, %arg1: i32) -> (i32, i32, i32) {
    %c0_i32 = arith.constant 0 : i32
    %c0_i32_0 = arith.constant 0 : i32
    %c0_i32_1 = arith.constant 0 : i32
    return %arg1, %c0_i32, %c0_i32_0 : i32, i32, i32
  }
  func.func @transform_3(%arg0: i32, %arg1: i32) -> (i32, i32, i32) {
    %c0_i32 = arith.constant 0 : i32
    %c0_i32_0 = arith.constant 0 : i32
    %c0_i32_1 = arith.constant 0 : i32
    return %arg1, %c0_i32, %c0_i32_0 : i32, i32, i32
  }
  func.func @transform_4(%arg0: i32, %arg1: i32) -> (i32, i32, i32) {
    %c0_i32 = arith.constant 0 : i32
    %c0_i32_0 = arith.constant 0 : i32
    %c0_i32_1 = arith.constant 0 : i32
    return %arg1, %c0_i32, %c0_i32_0 : i32, i32, i32
  }
  func.func @transform_5(%arg0: i32, %arg1: i32) -> (i32, i32, i32) {
    %c0_i32 = arith.constant 0 : i32
    %c0_i32_0 = arith.constant 0 : i32
    %c0_i32_1 = arith.constant 0 : i32
    return %arg1, %c0_i32, %c0_i32_0 : i32, i32, i32
  }
  func.func @transform_6(%arg0: i32, %arg1: i32) -> (i32, i32, i32) {
    %c0_i32 = arith.constant 0 : i32
    %c0_i32_0 = arith.constant 0 : i32
    %c0_i32_1 = arith.constant 0 : i32
    return %arg1, %c0_i32, %c0_i32_0 : i32, i32, i32
  }
  func.func @transform_7(%arg0: i32, %arg1: i32) -> (i32, i32, i32, i32) {
    %c0_i32 = arith.constant 0 : i32
    %c0_i32_0 = arith.constant 0 : i32
    %c0_i32_1 = arith.constant 0 : i32
    return %arg0, %arg1, %c0_i32, %c0_i32_0 : i32, i32, i32, i32
  }
}

</mosaic_0001>

<llo_original>
// kernel: _encoder_forward.2
$region0: #{_encoder_forward.2}
  #allocation0 [shape = 'u32[]', space=smem, size = 0x4, offset = 0x4, fixed_abs, tag = 'smem constant byte address 0x4 - core index']
  #allocation1 [shape = 'u32[144,128]{1,0:T(1,128)}', space=vmem, size = 0x12000, scoped, tag = 'internal scratch']
  %s0 = inlined_call_operand.vmem [shape: f32[2,8,32], index: 0, kind: input, shape index: {}]
  %s1 = inlined_call_operand.vmem [shape: f32[4,32,8], index: 1, kind: input, shape index: {}]
  %s2 = inlined_call_operand.vmem [shape: f32[4,1,8], index: 2, kind: input, shape index: {}]
  %s3 = inlined_call_operand.vmem [shape: f32[4,32,8], index: 3, kind: input, shape index: {}]
  %s4 = inlined_call_operand.vmem [shape: f32[4,1,8], index: 4, kind: input, shape index: {}]
  %s5 = inlined_call_operand.vmem [shape: f32[4,32,8], index: 5, kind: input, shape index: {}]
  %s6 = inlined_call_operand.vmem [shape: f32[4,1,8], index: 6, kind: input, shape index: {}]
  %s7 = inlined_call_operand.vmem [shape: f32[2,4,8,8], index: 7, kind: output, shape index: {}]
  %s8 = sld [smem:[#allocation0]]
  $region61: #{_encoder_forward.2} parent=0
    _
  %s10 = ssub.s32 1, %s8
  %s11 = scalar_select 0, %s10, %s8
  loop: start=0, step=1, limit=10
  $region2: #{_encoder_forward.2} parent=0 // loop_pre_header
    _
  $region3: #{_encoder_forward.2} parent=0 // loop_header
    %s13 = sphi 0, %s17
    %p14 = scmp.ge.s32.totalorder %s13, 10
    %s20 = sphi 0, %s32
    %s21 = sphi 0, %s28
    %s22 = sphi 0, %s20
    %s23 = sphi 0, %s21
    %s24 = sphi 0, %s22
    %s25 = sphi 0, %s23
    %s35 = sphi 0, %s37
    %s38 = sphi 0, %s35
    %s39 = sphi 0, %s38
    %s55 = sphi 0, %s39
    %s61 = sphi 0, %s63
    %s64 = sphi 0, %s61
    %s65 = sphi 0, %s64
    %s81 = sphi 0, %s65
    %s87 = sphi 0, %s89
    %s90 = sphi 0, %s87
    %s91 = sphi 0, %s90
    %s107 = sphi 0, %s91
    %s113 = sphi 0, %s115
    %s116 = sphi 0, %s113
    %s117 = sphi 0, %s116
    %s133 = sphi 0, %s117
    %s139 = sphi 0, %s141
    %s142 = sphi 0, %s139
    %s143 = sphi 0, %s142
    %s159 = sphi 0, %s143
    %s165 = sphi 0, %s167
    %s168 = sphi 0, %s165
    %s169 = sphi 0, %s168
    %s185 = sphi 0, %s169
    %s191 = sphi 0, %s193
    %s194 = sphi 0, %s191
    %s195 = sphi 0, %s194
    %s211 = sphi 0, %s195
    %s219 = sphi 0, %s221
    %s222 = sphi 0, %s219
    %s223 = sphi 0, %s222
    %s239 = sphi 0, %s223
  $region4: #{_encoder_forward.2} parent=0 // loop_header_branch
    %16 = sbr.rel (%p14) target = $region8
  $region5: #{_encoder_forward.2} parent=0 // loop_body
    %s18 = ssub.s32 %s13, 1
    %s19 = ssub.s32 %s13, 2
    %s26 = sadd.s32 1, %s21
    %p27 = scmp.ge.s32.totalorder %s26, 4
    %s28 = scalar_select %p27, 0, %s26
    %s29 = sadd.s32 1, %s20
    %s30 = scalar_select %p27, %s29, %s20
    %p31 = scmp.ge.s32.totalorder %s30, 2
    %s32 = scalar_select %p31, 0, %s30
    %s33 = ssub.s32 %s20, %s32
    %p34 = scmp.eq.s32.totalorder %s33, 0
    %s36 = sadd.s32 %s35, 1
    %s37 = scalar_select %p34, %s35, %s36
    %p40 = pneg %p34
    %p41 = scmp.eq.s32.totalorder %s13, 7
    %p42 = por %p40, %p41
    %p43 = scmp.ne.s32.totalorder %s35, %s38
    %p44 = scmp.eq.s32.totalorder %s13, 0
    %p45 = por %p43, %p44
    %p46 = scmp.ne.s32.totalorder %s35, %s38
    %p47 = scmp.eq.s32.totalorder %s18, 7
    %p48 = por %p46, %p47
    %p49 = scmp.ne.s32.totalorder %s38, %s39
    %p50 = scmp.eq.s32.totalorder %s18, 0
    %p51 = por %p49, %p50
    %p52 = scmp.ne.s32.totalorder %s38, %s39
    %p53 = scmp.eq.s32.totalorder %s19, 7
    %p54 = por %p52, %p53
    %p56 = scmp.ne.s32.totalorder %s39, %s55
    %p57 = scmp.eq.s32.totalorder %s19, 0
    %p58 = por %p56, %p57
    %s59 = ssub.s32 %s21, %s28
    %p60 = scmp.eq.s32.totalorder %s59, 0
    %s62 = sadd.s32 %s61, 1
    %s63 = scalar_select %p60, %s61, %s62
    %p66 = pneg %p60
    %p67 = scmp.eq.s32.totalorder %s13, 7
    %p68 = por %p66, %p67
    %p69 = scmp.ne.s32.totalorder %s61, %s64
    %p70 = scmp.eq.s32.totalorder %s13, 0
    %p71 = por %p69, %p70
    %p72 = scmp.ne.s32.totalorder %s61, %s64
    %p73 = scmp.eq.s32.totalorder %s18, 7
    %p74 = por %p72, %p73
    %p75 = scmp.ne.s32.totalorder %s64, %s65
    %p76 = scmp.eq.s32.totalorder %s18, 0
    %p77 = por %p75, %p76
    %p78 = scmp.ne.s32.totalorder %s64, %s65
    %p79 = scmp.eq.s32.totalorder %s19, 7
    %p80 = por %p78, %p79
    %p82 = scmp.ne.s32.totalorder %s65, %s81
    %p83 = scmp.eq.s32.totalorder %s19, 0
    %p84 = por %p82, %p83
    %s85 = ssub.s32 %s21, %s28
    %p86 = scmp.eq.s32.totalorder %s85, 0
    %s88 = sadd.s32 %s87, 1
    %s89 = scalar_select %p86, %s87, %s88
    %p92 = pneg %p86
    %p93 = scmp.eq.s32.totalorder %s13, 7
    %p94 = por %p92, %p93
    %p95 = scmp.ne.s32.totalorder %s87, %s90
    %p96 = scmp.eq.s32.totalorder %s13, 0
    %p97 = por %p95, %p96
    %p98 = scmp.ne.s32.totalorder %s87, %s90
    %p99 = scmp.eq.s32.totalorder %s18, 7
    %p100 = por %p98, %p99
    %p101 = scmp.ne.s32.totalorder %s90, %s91
    %p102 = scmp.eq.s32.totalorder %s18, 0
    %p103 = por %p101, %p102
    %p104 = scmp.ne.s32.totalorder %s90, %s91
    %p105 = scmp.eq.s32.totalorder %s19, 7
    %p106 = por %p104, %p105
    %p108 = scmp.ne.s32.totalorder %s91, %s107
    %p109 = scmp.eq.s32.totalorder %s19, 0
    %p110 = por %p108, %p109
    %s111 = ssub.s32 %s21, %s28
    %p112 = scmp.eq.s32.totalorder %s111, 0
    %s114 = sadd.s32 %s113, 1
    %s115 = scalar_select %p112, %s113, %s114
    %p118 = pneg %p112
    %p119 = scmp.eq.s32.totalorder %s13, 7
    %p120 = por %p118, %p119
    %p121 = scmp.ne.s32.totalorder %s113, %s116
    %p122 = scmp.eq.s32.totalorder %s13, 0
    %p123 = por %p121, %p122
    %p124 = scmp.ne.s32.totalorder %s113, %s116
    %p125 = scmp.eq.s32.totalorder %s18, 7
    %p126 = por %p124, %p125
    %p127 = scmp.ne.s32.totalorder %s116, %s117
    %p128 = scmp.eq.s32.totalorder %s18, 0
    %p129 = por %p127, %p128
    %p130 = scmp.ne.s32.totalorder %s116, %s117
    %p131 = scmp.eq.s32.totalorder %s19, 7
    %p132 = por %p130, %p131
    %p134 = scmp.ne.s32.totalorder %s117, %s133
    %p135 = scmp.eq.s32.totalorder %s19, 0
    %p136 = por %p134, %p135
    %s137 = ssub.s32 %s21, %s28
    %p138 = scmp.eq.s32.totalorder %s137, 0
    %s140 = sadd.s32 %s139, 1
    %s141 = scalar_select %p138, %s139, %s140
    %p144 = pneg %p138
    %p145 = scmp.eq.s32.totalorder %s13, 7
    %p146 = por %p144, %p145
    %p147 = scmp.ne.s32.totalorder %s139, %s142
    %p148 = scmp.eq.s32.totalorder %s13, 0
    %p149 = por %p147, %p148
    %p150 = scmp.ne.s32.totalorder %s139, %s142
    %p151 = scmp.eq.s32.totalorder %s18, 7
    %p152 = por %p150, %p151
    %p153 = scmp.ne.s32.totalorder %s142, %s143
    %p154 = scmp.eq.s32.totalorder %s18, 0
    %p155 = por %p153, %p154
    %p156 = scmp.ne.s32.totalorder %s142, %s143
    %p157 = scmp.eq.s32.totalorder %s19, 7
    %p158 = por %p156, %p157
    %p160 = scmp.ne.s32.totalorder %s143, %s159
    %p161 = scmp.eq.s32.totalorder %s19, 0
    %p162 = por %p160, %p161
    %s163 = ssub.s32 %s21, %s28
    %p164 = scmp.eq.s32.totalorder %s163, 0
    %s166 = sadd.s32 %s165, 1
    %s167 = scalar_select %p164, %s165, %s166
    %p170 = pneg %p164
    %p171 = scmp.eq.s32.totalorder %s13, 7
    %p172 = por %p170, %p171
    %p173 = scmp.ne.s32.totalorder %s165, %s168
    %p174 = scmp.eq.s32.totalorder %s13, 0
    %p175 = por %p173, %p174
    %p176 = scmp.ne.s32.totalorder %s165, %s168
    %p177 = scmp.eq.s32.totalorder %s18, 7
    %p178 = por %p176, %p177
    %p179 = scmp.ne.s32.totalorder %s168, %s169
    %p180 = scmp.eq.s32.totalorder %s18, 0
    %p181 = por %p179, %p180
    %p182 = scmp.ne.s32.totalorder %s168, %s169
    %p183 = scmp.eq.s32.totalorder %s19, 7
    %p184 = por %p182, %p183
    %p186 = scmp.ne.s32.totalorder %s169, %s185
    %p187 = scmp.eq.s32.totalorder %s19, 0
    %p188 = por %p186, %p187
    %s189 = ssub.s32 %s21, %s28
    %p190 = scmp.eq.s32.totalorder %s189, 0
    %s192 = sadd.s32 %s191, 1
    %s193 = scalar_select %p190, %s191, %s192
    %p196 = pneg %p190
    %p197 = scmp.eq.s32.totalorder %s13, 7
    %p198 = por %p196, %p197
    %p199 = scmp.ne.s32.totalorder %s191, %s194
    %p200 = scmp.eq.s32.totalorder %s13, 0
    %p201 = por %p199, %p200
    %p202 = scmp.ne.s32.totalorder %s191, %s194
    %p203 = scmp.eq.s32.totalorder %s18, 7
    %p204 = por %p202, %p203
    %p205 = scmp.ne.s32.totalorder %s194, %s195
    %p206 = scmp.eq.s32.totalorder %s18, 0
    %p207 = por %p205, %p206
    %p208 = scmp.ne.s32.totalorder %s194, %s195
    %p209 = scmp.eq.s32.totalorder %s19, 7
    %p210 = por %p208, %p209
    %p212 = scmp.ne.s32.totalorder %s195, %s211
    %p213 = scmp.eq.s32.totalorder %s19, 0
    %p214 = por %p212, %p213
    %s215 = ssub.s32 %s20, %s32
    %s216 = ssub.s32 %s21, %s28
    %s217 = sor.u32 %s215, %s216
    %p218 = scmp.eq.s32.totalorder %s217, 0
    %s220 = sadd.s32 %s219, 1
    %s221 = scalar_select %p218, %s219, %s220
    %p224 = pneg %p218
    %p225 = scmp.eq.s32.totalorder %s13, 7
    %p226 = por %p224, %p225
    %p227 = scmp.ne.s32.totalorder %s219, %s222
    %p228 = scmp.eq.s32.totalorder %s13, 0
    %p229 = por %p227, %p228
    %p230 = scmp.ne.s32.totalorder %s219, %s222
    %p231 = scmp.eq.s32.totalorder %s18, 7
    %p232 = por %p230, %p231
    %p233 = scmp.ne.s32.totalorder %s222, %s223
    %p234 = scmp.eq.s32.totalorder %s18, 0
    %p235 = por %p233, %p234
    %p236 = scmp.ne.s32.totalorder %s222, %s223
    %p237 = scmp.eq.s32.totalorder %s19, 7
    %p238 = por %p236, %p237
    %p240 = scmp.ne.s32.totalorder %s223, %s239
    %p241 = scmp.eq.s32.totalorder %s19, 0
    %p242 = por %p240, %p241
    %p243 = scmp.le.s32.totalorder 1, %s13
    %p244 = scmp.lt.s32.totalorder %s13, 9
    %p245 = pnand %p243, %p244
    %p246 = pneg %p245
    // Predicated region
    $region9: #{_encoder_forward.2} parent=5 // pred_check
      _
    $region10: #{_encoder_forward.2} parent=5 // pred_check_branch
      %248 = sbr.rel (%p245) target = $region12
    $region11: #{_encoder_forward.2} parent=5 // pred_region
      %s249 = ssub.s32 %s13, 1
    $region12: #{_encoder_forward.2} parent=5 // pred_fallthru
      _
    %p250 = scmp.lt.s32.totalorder %s13, 8
    // Predicated region
    $region13: #{_encoder_forward.2} parent=5 // pred_check
      %p251 = pneg %p250
    $region14: #{_encoder_forward.2} parent=5 // pred_check_branch
      %253 = sbr.rel (%p251) target = $region16
    $region15: #{_encoder_forward.2} parent=5 // pred_region
      // Predicated region
      $region17: #{_encoder_forward.2} parent=15 // pred_check
        %p254 = pneg %p45
      $region18: #{_encoder_forward.2} parent=15 // pred_check_branch
        %256 = sbr.rel (%p254) target = $region20
      $region19: #{_encoder_forward.2} parent=15 // pred_region
        %p257 = scmp.lt.s32.totalorder %s20, 1
        %s258 = scalar_select %p257, %s20, 1
        %s259 = smul.addr %s258, 8
        %s260 = scalar_lea.vmem %s0, %s259
      $region20: #{_encoder_forward.2} parent=15 // pred_fallthru
        _
      // Predicated region
      $region21: #{_encoder_forward.2} parent=15 // pred_check
        %p261 = pneg %p71
      $region22: #{_encoder_forward.2} parent=15 // pred_check_branch
        %263 = sbr.rel (%p261) target = $region24
      $region23: #{_encoder_forward.2} parent=15 // pred_region
        %p264 = scmp.lt.s32.totalorder %s21, 3
        %s265 = scalar_select %p264, %s21, 3
        %s266 = smul.addr %s265, 4
        %s267 = smul.addr %s266, 8
        %s268 = scalar_lea.vmem %s1, %s267
      $region24: #{_encoder_forward.2} parent=15 // pred_fallthru
        _
      // Predicated region
      $region25: #{_encoder_forward.2} parent=15 // pred_check
        %p269 = pneg %p97
      $region26: #{_encoder_forward.2} parent=15 // pred_check_branch
        %271 = sbr.rel (%p269) target = $region28
      $region27: #{_encoder_forward.2} parent=15 // pred_region
        %p272 = scmp.lt.s32.totalorder %s21, 3
        %s273 = scalar_select %p272, %s21, 3
        %s274 = scalar_lea.vmem %s2, %s273
      $region28: #{_encoder_forward.2} parent=15 // pred_fallthru
        _
      // Predicated region
      $region29: #{_encoder_forward.2} parent=15 // pred_check
        %p275 = pneg %p123
      $region30: #{_encoder_forward.2} parent=15 // pred_check_branch
        %277 = sbr.rel (%p275) target = $region32
      $region31: #{_encoder_forward.2} parent=15 // pred_region
        %p278 = scmp.lt.s32.totalorder %s21, 3
        %s279 = scalar_select %p278, %s21, 3
        %s280 = smul.addr %s279, 4
        %s281 = smul.addr %s280, 8
        %s282 = scalar_lea.vmem %s3, %s281
      $region32: #{_encoder_forward.2} parent=15 // pred_fallthru
        _
      // Predicated region
      $region33: #{_encoder_forward.2} parent=15 // pred_check
        %p283 = pneg %p149
      $region34: #{_encoder_forward.2} parent=15 // pred_check_branch
        %285 = sbr.rel (%p283) target = $region36
      $region35: #{_encoder_forward.2} parent=15 // pred_region
        %p286 = scmp.lt.s32.totalorder %s21, 3
        %s287 = scalar_select %p286, %s21, 3
        %s288 = scalar_lea.vmem %s4, %s287
      $region36: #{_encoder_forward.2} parent=15 // pred_fallthru
        _
      // Predicated region
      $region37: #{_encoder_forward.2} parent=15 // pred_check
        %p289 = pneg %p175
      $region38: #{_encoder_forward.2} parent=15 // pred_check_branch
        %291 = sbr.rel (%p289) target = $region40
      $region39: #{_encoder_forward.2} parent=15 // pred_region
        %p292 = scmp.lt.s32.totalorder %s21, 3
        %s293 = scalar_select %p292, %s21, 3
        %s294 = smul.addr %s293, 4
        %s295 = smul.addr %s294, 8
        %s296 = scalar_lea.vmem %s5, %s295
      $region40: #{_encoder_forward.2} parent=15 // pred_fallthru
        _
      // Predicated region
      $region41: #{_encoder_forward.2} parent=15 // pred_check
        %p297 = pneg %p201
      $region42: #{_encoder_forward.2} parent=15 // pred_check_branch
        %299 = sbr.rel (%p297) target = $region44
      $region43: #{_encoder_forward.2} parent=15 // pred_region
        %p300 = scmp.lt.s32.totalorder %s21, 3
        %s301 = scalar_select %p300, %s21, 3
        %s302 = scalar_lea.vmem %s6, %s301
      $region44: #{_encoder_forward.2} parent=15 // pred_fallthru
        _
    $region16: #{_encoder_forward.2} parent=5 // pred_fallthru
      _
    %p303 = scmp.le.s32.totalorder 1, %s13
    %p304 = scmp.lt.s32.totalorder %s13, 9
    %p305 = pnand %p303, %p304
    %p306 = pneg %p305
    // Predicated region
    $region45: #{_encoder_forward.2} parent=5 // pred_check
      _
    $region46: #{_encoder_forward.2} parent=5 // pred_check_branch
      %308 = sbr.rel (%p305) target = $region48
    $region47: #{_encoder_forward.2} parent=5 // pred_region
      %s309 = ssub.s32 %s13, 1
      %p310 = scmp.lt.s32.totalorder %s22, 1
      %s311 = scalar_select %p310, %s22, 1
      %s312 = smul.addr %s311, 8
      %s313 = scalar_lea.vmem %s0, %s312
      %p314 = pneg %p51
      %p315 = pneg %p48
      %p316 = scmp.lt.s32.totalorder %s23, 3
      %s317 = scalar_select %p316, %s23, 3
      %s318 = smul.addr %s317, 4
      %s319 = smul.addr %s318, 8
      %s320 = scalar_lea.vmem %s1, %s319
      %p321 = pneg %p77
      %p322 = pneg %p74
      %p323 = scmp.lt.s32.totalorder %s23, 3
      %s324 = scalar_select %p323, %s23, 3
      %s325 = scalar_lea.vmem %s2, %s324
      %p326 = pneg %p103
      %p327 = pneg %p100
      %p328 = scmp.lt.s32.totalorder %s23, 3
      %s329 = scalar_select %p328, %s23, 3
      %s330 = smul.addr %s329, 4
      %s331 = smul.addr %s330, 8
      %s332 = scalar_lea.vmem %s3, %s331
      %p333 = pneg %p129
      %p334 = pneg %p126
      %p335 = scmp.lt.s32.totalorder %s23, 3
      %s336 = scalar_select %p335, %s23, 3
      %s337 = scalar_lea.vmem %s4, %s336
      %p338 = pneg %p155
      %p339 = pneg %p152
      %p340 = scmp.lt.s32.totalorder %s23, 3
      %s341 = scalar_select %p340, %s23, 3
      %s342 = smul.addr %s341, 4
      %s343 = smul.addr %s342, 8
      %s344 = scalar_lea.vmem %s5, %s343
      %p345 = pneg %p181
      %p346 = pneg %p178
      %p347 = scmp.lt.s32.totalorder %s23, 3
      %s348 = scalar_select %p347, %s23, 3
      %s349 = scalar_lea.vmem %s6, %s348
      %p350 = pneg %p207
      %p351 = pneg %p204
      %p352 = pneg %p235
      %p353 = pneg %p232
      %p354 = scmp.lt.s32.totalorder %s22, 1
      %s355 = scalar_select %p354, %s22, 1
      %p356 = scmp.lt.s32.totalorder %s23, 3
      %s357 = scalar_select %p356, %s23, 3
      %s358 = smul.addr %s355, 4
      %s359 = sadd.s32 %s357, %s358
      %s360 = smul.addr %s359, 8
      %s361 = scalar_lea.vmem %s7, %s360
      %p362 = scmp.lt.s32.totalorder %s22, 1
      %s363 = scalar_select %p362, %s22, 1
      %s364 = smul.addr %s363, 8
      %s365 = scalar_lea.vmem %s0, %s364
      %p366 = scmp.lt.s32.totalorder %s23, 3
      %s367 = scalar_select %p366, %s23, 3
      %s368 = smul.addr %s367, 4
      %s369 = smul.addr %s368, 8
      %s370 = scalar_lea.vmem %s1, %s369
      %p371 = scmp.lt.s32.totalorder %s23, 3
      %s372 = scalar_select %p371, %s23, 3
      %s373 = scalar_lea.vmem %s2, %s372
      %p374 = scmp.lt.s32.totalorder %s23, 3
      %s375 = scalar_select %p374, %s23, 3
      %s376 = smul.addr %s375, 4
      %s377 = smul.addr %s376, 8
      %s378 = scalar_lea.vmem %s3, %s377
      %p379 = scmp.lt.s32.totalorder %s23, 3
      %s380 = scalar_select %p379, %s23, 3
      %s381 = scalar_lea.vmem %s4, %s380
      %p382 = scmp.lt.s32.totalorder %s23, 3
      %s383 = scalar_select %p382, %s23, 3
      %s384 = smul.addr %s383, 4
      %s385 = smul.addr %s384, 8
      %s386 = scalar_lea.vmem %s5, %s385
      %p387 = scmp.lt.s32.totalorder %s23, 3
      %s388 = scalar_select %p387, %s23, 3
      %s389 = scalar_lea.vmem %s6, %s388
      %p390 = scmp.lt.s32.totalorder %s22, 1
      %s391 = scalar_select %p390, %s22, 1
      %p392 = scmp.lt.s32.totalorder %s23, 3
      %s393 = scalar_select %p392, %s23, 3
      %s394 = smul.addr %s391, 4
      %s395 = sadd.s32 %s393, %s394
      %s396 = smul.addr %s395, 8
      %s397 = scalar_lea.vmem %s7, %s396
      %v398 = vld [vmem:[%s365] sm:$0xff]
      %v399 = vld [vmem:[%s370] sm:$0xff]
      %v400 = vld [vmem:[%s370 + $0x8] sm:$0xff]
      %v401 = vld [vmem:[%s370 + $0x10] sm:$0xff]
      %v402 = vld [vmem:[%s370 + $0x18] sm:$0xff]
      %v403 = vld [vmem:[%s373] sm:$0x1]
      %v405 = vlaneseq
      %v406 = vshrl.u32 %v405, 7
      %v407 = vsub.s32 0, %v406
      %v408 = vrot.slane %v403, %v407
      %vm410 = vcmask 261120
      %v412 = vsel %vm410, %v398, 0
      %414 = vmatprep.subr.mxu0 0.0
      %415 = vmatpush1.msra.mxu0 %v399
      %416 = vmatprep.subr.mxu0 0.0
      %417 = vmatpush1.msra.mxu0 %v400
      %418 = vmatprep.subr.mxu0 0.0
      %419 = vmatpush1.msra.mxu0 %v401
      %420 = vmatprep.subr.mxu0 0.0
      %421 = vmatpush1.msra.mxu0 %v402
      %422 = vmatprep.subr.mxu0 0.0
      %423 = vmatpush1.msra.mxu0 0.0
      %424 = vmatprep.subr.mxu0 0.0
      %425 = vmatpush1.msra.mxu0 0.0
      %426 = vmatprep.subr.mxu0 0.0
      %427 = vmatpush1.msra.mxu0 0.0
      %428 = vmatprep.subr.mxu0 0.0
      %429 = vmatpush1.msra.mxu0 0.0
      %430 = vmatprep.subr.mxu0 0.0
      %431 = vmatpush1.msra.mxu0 0.0
      %432 = vmatprep.subr.mxu0 0.0
      %433 = vmatpush1.msra.mxu0 0.0
      %434 = vmatprep.subr.mxu0 0.0
      %435 = vmatpush1.msra.mxu0 0.0
      %436 = vmatprep.subr.mxu0 0.0
      %437 = vmatpush1.msra.mxu0 0.0
      %438 = vmatprep.subr.mxu0 0.0
      %439 = vmatpush1.msra.mxu0 0.0
      %440 = vmatprep.subr.mxu0 0.0
      %441 = vmatpush1.msra.mxu0 0.0
      %442 = vmatprep.subr.mxu0 0.0
      %443 = vmatpush1.msra.mxu0 0.0
      %444 = vmatprep.subr.mxu0 0.0
      %445 = vmatpush1.msra.mxu0 0.0
      %446 = vmatprep.subr.mxu0 0.0
      %447 = vmatpush1.msra.mxu0 0.0
      %448 = vmatprep.subr.mxu0 0.0
      %449 = vmatpush1.msra.mxu0 0.0
      %450 = vmatprep.subr.mxu0 0.0
      %451 = vmatpush1.msra.mxu0 0.0
      %452 = vmatprep.subr.mxu0 0.0
      %453 = vmatpush1.msra.mxu0 0.0
      %454 = vmatprep.subr.mxu0 0.0
      %455 = vmatpush1.msra.mxu0 0.0
      %456 = vmatprep.subr.mxu0 0.0
      %457 = vmatpush1.msra.mxu0 0.0
      %458 = vmatprep.subr.mxu0 0.0
      %459 = vmatpush1.msra.mxu0 0.0
      %460 = vmatprep.subr.mxu0 0.0
      %461 = vmatpush1.msra.mxu0 0.0
      %462 = vmatprep.subr.mxu0 0.0
      %463 = vmatpush1.msra.mxu0 0.0
      %464 = vmatprep.subr.mxu0 0.0
      %465 = vmatpush1.msra.mxu0 0.0
      %466 = vmatprep.subr.mxu0 0.0
      %467 = vmatpush1.msra.mxu0 0.0
      %468 = vmatprep.subr.mxu0 0.0
      %469 = vmatpush1.msra.mxu0 0.0
      %470 = vmatprep.subr.mxu0 0.0
      %471 = vmatpush1.msra.mxu0 0.0
      %472 = vmatprep.subr.mxu0 0.0
      %473 = vmatpush1.msra.mxu0 0.0
      %474 = vmatprep.subr.mxu0 0.0
      %475 = vmatpush1.msra.mxu0 0.0
      %476 = vmatprep.subr.mxu0 0.0
      %477 = vmatpush1.msra.mxu0 0.0
      %478 = vmatprep.mubr.f32.mxu0 0.0
      %479 = vmatmul.mubr.f32.gmra.mrb[0].mxu0 %v412
      %v480 = vpop.f32.mrb[0].mxu0
      %v481 = vadd.f32 %v408, %v480
      %v482 = vpop.f32.mrb[0].mxu0
      %483 = vdwg.mxu0
      %v484 = vld [vmem:[%s378] sm:$0xff]
      %v485 = vld [vmem:[%s378 + $0x8] sm:$0xff]
      %v486 = vld [vmem:[%s378 + $0x10] sm:$0xff]
      %v487 = vld [vmem:[%s378 + $0x18] sm:$0xff]
      %v488 = vld [vmem:[%s381] sm:$0x1]
      %v490 = vlaneseq
      %v491 = vshrl.u32 %v490, 7
      %v492 = vsub.s32 0, %v491
      %v493 = vrot.slane %v488, %v492
      %495 = vmatprep.subr.mxu0 0.0
      %496 = vmatpush1.msra.mxu0 %v484
      %497 = vmatprep.subr.mxu0 0.0
      %498 = vmatpush1.msra.mxu0 %v485
      %499 = vmatprep.subr.mxu0 0.0
      %500 = vmatpush1.msra.mxu0 %v486
      %501 = vmatprep.subr.mxu0 0.0
      %502 = vmatpush1.msra.mxu0 %v487
      %503 = vmatprep.subr.mxu0 0.0
      %504 = vmatpush1.msra.mxu0 0.0
      %505 = vmatprep.subr.mxu0 0.0
      %506 = vmatpush1.msra.mxu0 0.0
      %507 = vmatprep.subr.mxu0 0.0
      %508 = vmatpush1.msra.mxu0 0.0
      %509 = vmatprep.subr.mxu0 0.0
      %510 = vmatpush1.msra.mxu0 0.0
      %511 = vmatprep.subr.mxu0 0.0
      %512 = vmatpush1.msra.mxu0 0.0
      %513 = vmatprep.subr.mxu0 0.0
      %514 = vmatpush1.msra.mxu0 0.0
      %515 = vmatprep.subr.mxu0 0.0
      %516 = vmatpush1.msra.mxu0 0.0
      %517 = vmatprep.subr.mxu0 0.0
      %518 = vmatpush1.msra.mxu0 0.0
      %519 = vmatprep.subr.mxu0 0.0
      %520 = vmatpush1.msra.mxu0 0.0
      %521 = vmatprep.subr.mxu0 0.0
      %522 = vmatpush1.msra.mxu0 0.0
      %523 = vmatprep.subr.mxu0 0.0
      %524 = vmatpush1.msra.mxu0 0.0
      %525 = vmatprep.subr.mxu0 0.0
      %526 = vmatpush1.msra.mxu0 0.0
      %527 = vmatprep.subr.mxu0 0.0
      %528 = vmatpush1.msra.mxu0 0.0
      %529 = vmatprep.subr.mxu0 0.0
      %530 = vmatpush1.msra.mxu0 0.0
      %531 = vmatprep.subr.mxu0 0.0
      %532 = vmatpush1.msra.mxu0 0.0
      %533 = vmatprep.subr.mxu0 0.0
      %534 = vmatpush1.msra.mxu0 0.0
      %535 = vmatprep.subr.mxu0 0.0
      %536 = vmatpush1.msra.mxu0 0.0
      %537 = vmatprep.subr.mxu0 0.0
      %538 = vmatpush1.msra.mxu0 0.0
      %539 = vmatprep.subr.mxu0 0.0
      %540 = vmatpush1.msra.mxu0 0.0
      %541 = vmatprep.subr.mxu0 0.0
      %542 = vmatpush1.msra.mxu0 0.0
      %543 = vmatprep.subr.mxu0 0.0
      %544 = vmatpush1.msra.mxu0 0.0
      %545 = vmatprep.subr.mxu0 0.0
      %546 = vmatpush1.msra.mxu0 0.0
      %547 = vmatprep.subr.mxu0 0.0
      %548 = vmatpush1.msra.mxu0 0.0
      %549 = vmatprep.subr.mxu0 0.0
      %550 = vmatpush1.msra.mxu0 0.0
      %551 = vmatprep.subr.mxu0 0.0
      %552 = vmatpush1.msra.mxu0 0.0
      %553 = vmatprep.subr.mxu0 0.0
      %554 = vmatpush1.msra.mxu0 0.0
      %555 = vmatprep.subr.mxu0 0.0
      %556 = vmatpush1.msra.mxu0 0.0
      %557 = vmatprep.subr.mxu0 0.0
      %558 = vmatpush1.msra.mxu0 0.0
      %559 = vmatprep.mubr.f32.mxu0 0.0
      %560 = vmatmul.mubr.f32.gmra.mrb[0].mxu0 %v412
      %v561 = vpop.f32.mrb[0].mxu0
      %v562 = vadd.f32 %v493, %v561
      %v563 = vpop.f32.mrb[0].mxu0
      %564 = vdwg.mxu0
      %v565 = vld [vmem:[%s386] sm:$0xff]
      %v566 = vld [vmem:[%s386 + $0x8] sm:$0xff]
      %v567 = vld [vmem:[%s386 + $0x10] sm:$0xff]
      %v568 = vld [vmem:[%s386 + $0x18] sm:$0xff]
      %v569 = vld [vmem:[%s389] sm:$0x1]
      %v571 = vlaneseq
      %v572 = vshrl.u32 %v571, 7
      %v573 = vsub.s32 0, %v572
      %v574 = vrot.slane %v569, %v573
      %576 = vmatprep.subr.mxu0 0.0
      %577 = vmatpush1.msra.mxu0 %v565
      %578 = vmatprep.subr.mxu0 0.0
      %579 = vmatpush1.msra.mxu0 %v566
      %580 = vmatprep.subr.mxu0 0.0
      %581 = vmatpush1.msra.mxu0 %v567
      %582 = vmatprep.subr.mxu0 0.0
      %583 = vmatpush1.msra.mxu0 %v568
      %584 = vmatprep.subr.mxu0 0.0
      %585 = vmatpush1.msra.mxu0 0.0
      %586 = vmatprep.subr.mxu0 0.0
      %587 = vmatpush1.msra.mxu0 0.0
      %588 = vmatprep.subr.mxu0 0.0
      %589 = vmatpush1.msra.mxu0 0.0
      %590 = vmatprep.subr.mxu0 0.0
      %591 = vmatpush1.msra.mxu0 0.0
      %592 = vmatprep.subr.mxu0 0.0
      %593 = vmatpush1.msra.mxu0 0.0
      %594 = vmatprep.subr.mxu0 0.0
      %595 = vmatpush1.msra.mxu0 0.0
      %596 = vmatprep.subr.mxu0 0.0
      %597 = vmatpush1.msra.mxu0 0.0
      %598 = vmatprep.subr.mxu0 0.0
      %599 = vmatpush1.msra.mxu0 0.0
      %600 = vmatprep.subr.mxu0 0.0
      %601 = vmatpush1.msra.mxu0 0.0
      %602 = vmatprep.subr.mxu0 0.0
      %603 = vmatpush1.msra.mxu0 0.0
      %604 = vmatprep.subr.mxu0 0.0
      %605 = vmatpush1.msra.mxu0 0.0
      %606 = vmatprep.subr.mxu0 0.0
      %607 = vmatpush1.msra.mxu0 0.0
      %608 = vmatprep.subr.mxu0 0.0
      %609 = vmatpush1.msra.mxu0 0.0
      %610 = vmatprep.subr.mxu0 0.0
      %611 = vmatpush1.msra.mxu0 0.0
      %612 = vmatprep.subr.mxu0 0.0
      %613 = vmatpush1.msra.mxu0 0.0
      %614 = vmatprep.subr.mxu0 0.0
      %615 = vmatpush1.msra.mxu0 0.0
      %616 = vmatprep.subr.mxu0 0.0
      %617 = vmatpush1.msra.mxu0 0.0
      %618 = vmatprep.subr.mxu0 0.0
      %619 = vmatpush1.msra.mxu0 0.0
      %620 = vmatprep.subr.mxu0 0.0
      %621 = vmatpush1.msra.mxu0 0.0
      %622 = vmatprep.subr.mxu0 0.0
      %623 = vmatpush1.msra.mxu0 0.0
      %624 = vmatprep.subr.mxu0 0.0
      %625 = vmatpush1.msra.mxu0 0.0
      %626 = vmatprep.subr.mxu0 0.0
      %627 = vmatpush1.msra.mxu0 0.0
      %628 = vmatprep.subr.mxu0 0.0
      %629 = vmatpush1.msra.mxu0 0.0
      %630 = vmatprep.subr.mxu0 0.0
      %631 = vmatpush1.msra.mxu0 0.0
      %632 = vmatprep.subr.mxu0 0.0
      %633 = vmatpush1.msra.mxu0 0.0
      %634 = vmatprep.subr.mxu0 0.0
      %635 = vmatpush1.msra.mxu0 0.0
      %636 = vmatprep.subr.mxu0 0.0
      %637 = vmatpush1.msra.mxu0 0.0
      %638 = vmatprep.subr.mxu0 0.0
      %639 = vmatpush1.msra.mxu0 0.0
      %640 = vmatprep.mubr.f32.mxu0 0.0
      %641 = vmatmul.mubr.f32.gmra.mrb[0].mxu0 %v412
      %v642 = vpop.f32.mrb[0].mxu0
      %v643 = vadd.f32 %v574, %v642
      %v644 = vpop.f32.mrb[0].mxu0
      %645 = vdwg.mxu0
      %vm646 = vcmask 64512
      %v648 = vsel %vm646, %v481, 0
      %v651 = vsel %vm646, %v562, 0
      %653 = vmatprep.subr.mxu0 0.0
      %654 = vmatpush1.xpose.msra.mxu0 %v651
      %655 = vmatprep.subr.mxu0 0.0
      %656 = vmatpush1.xpose.msra.mxu0 0.0
      %657 = vmatprep.subr.mxu0 0.0
      %658 = vmatpush1.xpose.msra.mxu0 0.0
      %659 = vmatprep.subr.mxu0 0.0
      %660 = vmatpush1.xpose.msra.mxu0 0.0
      %661 = vmatprep.subr.mxu0 0.0
      %662 = vmatpush1.xpose.msra.mxu0 0.0
      %663 = vmatprep.subr.mxu0 0.0
      %664 = vmatpush1.xpose.msra.mxu0 0.0
      %665 = vmatprep.subr.mxu0 0.0
      %666 = vmatpush1.xpose.msra.mxu0 0.0
      %667 = vmatprep.subr.mxu0 0.0
      %668 = vmatpush1.xpose.msra.mxu0 0.0
      %669 = vmatprep.subr.mxu0 0.0
      %670 = vmatpush1.xpose.msra.mxu0 0.0
      %671 = vmatprep.subr.mxu0 0.0
      %672 = vmatpush1.xpose.msra.mxu0 0.0
      %673 = vmatprep.subr.mxu0 0.0
      %674 = vmatpush1.xpose.msra.mxu0 0.0
      %675 = vmatprep.subr.mxu0 0.0
      %676 = vmatpush1.xpose.msra.mxu0 0.0
      %677 = vmatprep.subr.mxu0 0.0
      %678 = vmatpush1.xpose.msra.mxu0 0.0
      %679 = vmatprep.subr.mxu0 0.0
      %680 = vmatpush1.xpose.msra.mxu0 0.0
      %681 = vmatprep.subr.mxu0 0.0
      %682 = vmatpush1.xpose.msra.mxu0 0.0
      %683 = vmatprep.subr.mxu0 0.0
      %684 = vmatpush1.xpose.msra.mxu0 0.0
      %685 = vmatprep.subr.mxu0 0.0
      %686 = vmatpush1.xpose.msra.mxu0 0.0
      %687 = vmatprep.subr.mxu0 0.0
      %688 = vmatpush1.xpose.msra.mxu0 0.0
      %689 = vmatprep.subr.mxu0 0.0
      %690 = vmatpush1.xpose.msra.mxu0 0.0
      %691 = vmatprep.subr.mxu0 0.0
      %692 = vmatpush1.xpose.msra.mxu0 0.0
      %693 = vmatprep.subr.mxu0 0.0
      %694 = vmatpush1.xpose.msra.mxu0 0.0
      %695 = vmatprep.subr.mxu0 0.0
      %696 = vmatpush1.xpose.msra.mxu0 0.0
      %697 = vmatprep.subr.mxu0 0.0
      %698 = vmatpush1.xpose.msra.mxu0 0.0
      %699 = vmatprep.subr.mxu0 0.0
      %700 = vmatpush1.xpose.msra.mxu0 0.0
      %701 = vmatprep.subr.mxu0 0.0
      %702 = vmatpush1.xpose.msra.mxu0 0.0
      %703 = vmatprep.subr.mxu0 0.0
      %704 = vmatpush1.xpose.msra.mxu0 0.0
      %705 = vmatprep.subr.mxu0 0.0
      %706 = vmatpush1.xpose.msra.mxu0 0.0
      %707 = vmatprep.subr.mxu0 0.0
      %708 = vmatpush1.xpose.msra.mxu0 0.0
      %709 = vmatprep.subr.mxu0 0.0
      %710 = vmatpush1.xpose.msra.mxu0 0.0
      %711 = vmatprep.subr.mxu0 0.0
      %712 = vmatpush1.xpose.msra.mxu0 0.0
      %713 = vmatprep.subr.mxu0 0.0
      %714 = vmatpush1.xpose.msra.mxu0 0.0
      %715 = vmatprep.subr.mxu0 0.0
      %716 = vmatpush1.xpose.msra.mxu0 0.0
      %717 = vmatprep.mubr.f32.mxu0 0.0
      %718 = vmatmul.mubr.f32.gmra.mrb[0].mxu0 %v648
      %v719 = vpop.f32.mrb[0].mxu0
      %v720 = vadd.f32 0.0, %v719
      %v721 = vpop.f32.mrb[0].mxu0
      %722 = vdwg.mxu0
      %v723 = vmul.f32 %v720, 0.35355338
      %v724 = vsel %vm646, %v723, -inf
      %725 = vmax.xlane.f32.xlu0 %v724
      %v726 = vpop.xlane.xlu0 %725
      %v727 = vsub.f32 %v723, %v726
      %v728 = vmul.f32 %v727, 1.442695
      %v729 = vpow.pop %v728
      %v730 = vsel %vm646, %v729, 0.0
      %731 = vadd.xlane.f32.xlu0 %v730
      %v732 = vpop.xlane.xlu0 %731
      %v733 = vrcp.pop %v732
      %v734 = vmul.f32 %v729, %v733
      %v736 = vsel %vm646, %v734, 0
      %738 = vmatprep.subr.mxu0 0.0
      %739 = vmatpush1.msra.mxu0 %v643
      %740 = vmatprep.subr.mxu0 0.0
      %741 = vmatpush1.msra.mxu0 0.0
      %742 = vmatprep.subr.mxu0 0.0
      %743 = vmatpush1.msra.mxu0 0.0
      %744 = vmatprep.subr.mxu0 0.0
      %745 = vmatpush1.msra.mxu0 0.0
      %746 = vmatprep.subr.mxu0 0.0
      %747 = vmatpush1.msra.mxu0 0.0
      %748 = vmatprep.subr.mxu0 0.0
      %749 = vmatpush1.msra.mxu0 0.0
      %750 = vmatprep.subr.mxu0 0.0
      %751 = vmatpush1.msra.mxu0 0.0
      %752 = vmatprep.subr.mxu0 0.0
      %753 = vmatpush1.msra.mxu0 0.0
      %754 = vmatprep.subr.mxu0 0.0
      %755 = vmatpush1.msra.mxu0 0.0
      %756 = vmatprep.subr.mxu0 0.0
      %757 = vmatpush1.msra.mxu0 0.0
      %758 = vmatprep.subr.mxu0 0.0
      %759 = vmatpush1.msra.mxu0 0.0
      %760 = vmatprep.subr.mxu0 0.0
      %761 = vmatpush1.msra.mxu0 0.0
      %762 = vmatprep.subr.mxu0 0.0
      %763 = vmatpush1.msra.mxu0 0.0
      %764 = vmatprep.subr.mxu0 0.0
      %765 = vmatpush1.msra.mxu0 0.0
      %766 = vmatprep.subr.mxu0 0.0
      %767 = vmatpush1.msra.mxu0 0.0
      %768 = vmatprep.subr.mxu0 0.0
      %769 = vmatpush1.msra.mxu0 0.0
      %770 = vmatprep.subr.mxu0 0.0
      %771 = vmatpush1.msra.mxu0 0.0
      %772 = vmatprep.subr.mxu0 0.0
      %773 = vmatpush1.msra.mxu0 0.0
      %774 = vmatprep.subr.mxu0 0.0
      %775 = vmatpush1.msra.mxu0 0.0
      %776 = vmatprep.subr.mxu0 0.0
      %777 = vmatpush1.msra.mxu0 0.0
      %778 = vmatprep.subr.mxu0 0.0
      %779 = vmatpush1.msra.mxu0 0.0
      %780 = vmatprep.subr.mxu0 0.0
      %781 = vmatpush1.msra.mxu0 0.0
      %782 = vmatprep.subr.mxu0 0.0
      %783 = vmatpush1.msra.mxu0 0.0
      %784 = vmatprep.subr.mxu0 0.0
      %785 = vmatpush1.msra.mxu0 0.0
      %786 = vmatprep.subr.mxu0 0.0
      %787 = vmatpush1.msra.mxu0 0.0
      %788 = vmatprep.subr.mxu0 0.0
      %789 = vmatpush1.msra.mxu0 0.0
      %790 = vmatprep.subr.mxu0 0.0
      %791 = vmatpush1.msra.mxu0 0.0
      %792 = vmatprep.subr.mxu0 0.0
      %793 = vmatpush1.msra.mxu0 0.0
      %794 = vmatprep.subr.mxu0 0.0
      %795 = vmatpush1.msra.mxu0 0.0
      %796 = vmatprep.subr.mxu0 0.0
      %797 = vmatpush1.msra.mxu0 0.0
      %798 = vmatprep.subr.mxu0 0.0
      %799 = vmatpush1.msra.mxu0 0.0
      %800 = vmatprep.subr.mxu0 0.0
      %801 = vmatpush1.msra.mxu0 0.0
      %802 = vmatprep.mubr.f32.mxu0 0.0
      %803 = vmatmul.mubr.f32.gmra.mrb[0].mxu0 %v736
      %v804 = vpop.f32.mrb[0].mxu0
      %v805 = vadd.f32 0.0, %v804
      %v806 = vpop.f32.mrb[0].mxu0
      %807 = vdwg.mxu0
      %808 = vst.msk [vmem:[%s397] sm:$0xff] %vm646, %v805
      %p809 = scmp.lt.s32.totalorder %s22, 1
      %s810 = scalar_select %p809, %s22, 1
      %p811 = scmp.lt.s32.totalorder %s23, 3
      %s812 = scalar_select %p811, %s23, 3
      %s813 = smul.addr %s810, 4
      %s814 = sadd.s32 %s812, %s813
      %s815 = smul.addr %s814, 8
      %s816 = scalar_lea.vmem %s7, %s815
      // Predicated region
      $region49: #{_encoder_forward.2} parent=47 // pred_check
        %p817 = pneg %p232
      $region50: #{_encoder_forward.2} parent=47 // pred_check_branch
        %819 = sbr.rel (%p817) target = $region52
      $region51: #{_encoder_forward.2} parent=47 // pred_region
        _
      $region52: #{_encoder_forward.2} parent=47 // pred_fallthru
        _
    $region48: #{_encoder_forward.2} parent=5 // pred_fallthru
      _
    %p820 = scmp.le.s32.totalorder 2, %s13
    // Predicated region
    $region53: #{_encoder_forward.2} parent=5 // pred_check
      %p821 = pneg %p820
    $region54: #{_encoder_forward.2} parent=5 // pred_check_branch
      %823 = sbr.rel (%p821) target = $region56
    $region55: #{_encoder_forward.2} parent=5 // pred_region
      %s824 = ssub.s32 %s13, 2
      // Predicated region
      $region57: #{_encoder_forward.2} parent=55 // pred_check
        %p825 = pneg %p238
      $region58: #{_encoder_forward.2} parent=55 // pred_check_branch
        %827 = sbr.rel (%p825) target = $region60
      $region59: #{_encoder_forward.2} parent=55 // pred_region
        %p828 = scmp.lt.s32.totalorder %s24, 1
        %s829 = scalar_select %p828, %s24, 1
        %p830 = scmp.lt.s32.totalorder %s25, 3
        %s831 = scalar_select %p830, %s25, 3
        %s832 = smul.addr %s829, 4
        %s833 = sadd.s32 %s831, %s832
        %s834 = smul.addr %s833, 8
        %s835 = scalar_lea.vmem %s7, %s834
      $region60: #{_encoder_forward.2} parent=55 // pred_fallthru
        _
    $region56: #{_encoder_forward.2} parent=5 // pred_fallthru
      _
  $region6: #{_encoder_forward.2} parent=0 // loop_footer
    %s17 = sadd.s32 1, %s13
  $region7: #{_encoder_forward.2} parent=0 // loop_footer_branch
    %12 = sbr.rel target = $region3
  $region8: #{_encoder_forward.2} parent=0 // loop_exit
    _

// kernel: _encoder_forward.3
$region0: #{_encoder_forward.3}
  #allocation0 [shape = 'u32[]', space=smem, size = 0x4, offset = 0x4, fixed_abs, tag = 'smem constant byte address 0x4 - core index']
  #allocation1 [shape = 'u32[144,128]{1,0:T(1,128)}', space=vmem, size = 0x12000, scoped, tag = 'internal scratch']
  %s0 = inlined_call_operand.vmem [shape: f32[16,32], index: 0, kind: input, shape index: {}]
  %s1 = inlined_call_operand.vmem [shape: f32[16,32], index: 1, kind: input, shape index: {}]
  %s2 = inlined_call_operand.vmem [shape: f32[32,32], index: 2, kind: input, shape index: {}]
  %s3 = inlined_call_operand.vmem [shape: f32[1,32], index: 3, kind: input, shape index: {}]
  %s4 = inlined_call_operand.vmem [shape: f32[1,32], index: 4, kind: input, shape index: {}]
  %s5 = inlined_call_operand.vmem [shape: f32[1,32], index: 5, kind: input, shape index: {}]
  %s6 = inlined_call_operand.vmem [shape: f32[32,64], index: 6, kind: input, shape index: {}]
  %s7 = inlined_call_operand.vmem [shape: f32[1,64], index: 7, kind: input, shape index: {}]
  %s8 = inlined_call_operand.vmem [shape: f32[64,32], index: 8, kind: input, shape index: {}]
  %s9 = inlined_call_operand.vmem [shape: f32[1,32], index: 9, kind: input, shape index: {}]
  %s10 = inlined_call_operand.vmem [shape: f32[1,32], index: 10, kind: input, shape index: {}]
  %s11 = inlined_call_operand.vmem [shape: f32[1,32], index: 11, kind: input, shape index: {}]
  %s12 = inlined_call_operand.hbm [shape: f32[16,32], index: 12, kind: output, shape index: {}]
  %s13 = sld [smem:[#allocation0]]
  $region58: #{_encoder_forward.3} parent=0
    _
  %s15 = ssub.s32 1, %s13
  %s16 = scalar_select 0, %s15, %s13
  $region1: #{_encoder_forward.3} parent=0
    #allocation2 [shape = 'u8[8192]{0}', space=vmem, size = 0x2000, scoped, tag = 'output window, operand 0, single buffered']
    #allocation3 [shape = 's32[1]{0}', space=sflag, size = 0x4, scoped, tag = 'scoped memory for _encoder_forward.3']
    %17 = vsyncpa [#allocation3], 0
    // Predicated region
    $region2: #{_encoder_forward.3} parent=1 // pred_check
      _
    $region3: #{_encoder_forward.3} parent=1 // pred_check_branch
      %19 = sbr.rel (0) target = $region5
    $region4: #{_encoder_forward.3} parent=1 // pred_region
      _
    $region5: #{_encoder_forward.3} parent=1 // pred_fallthru
      _
    // Predicated region
    $region6: #{_encoder_forward.3} parent=1 // pred_check
      _
    $region7: #{_encoder_forward.3} parent=1 // pred_check_branch
      %21 = sbr.rel (0) target = $region9
    $region8: #{_encoder_forward.3} parent=1 // pred_region
      _
    $region9: #{_encoder_forward.3} parent=1 // pred_fallthru
      _
    // Predicated region
    $region10: #{_encoder_forward.3} parent=1 // pred_check
      _
    $region11: #{_encoder_forward.3} parent=1 // pred_check_branch
      %23 = sbr.rel (0) target = $region13
    $region12: #{_encoder_forward.3} parent=1 // pred_region
      _
    $region13: #{_encoder_forward.3} parent=1 // pred_fallthru
      _
    // Predicated region
    $region14: #{_encoder_forward.3} parent=1 // pred_check
      _
    $region15: #{_encoder_forward.3} parent=1 // pred_check_branch
      %25 = sbr.rel (0) target = $region17
    $region16: #{_encoder_forward.3} parent=1 // pred_region
      _
    $region17: #{_encoder_forward.3} parent=1 // pred_fallthru
      _
    // Predicated region
    $region18: #{_encoder_forward.3} parent=1 // pred_check
      _
    $region19: #{_encoder_forward.3} parent=1 // pred_check_branch
      %27 = sbr.rel (0) target = $region21
    $region20: #{_encoder_forward.3} parent=1 // pred_region
      _
    $region21: #{_encoder_forward.3} parent=1 // pred_fallthru
      _
    // Predicated region
    $region22: #{_encoder_forward.3} parent=1 // pred_check
      _
    $region23: #{_encoder_forward.3} parent=1 // pred_check_branch
      %29 = sbr.rel (0) target = $region25
    $region24: #{_encoder_forward.3} parent=1 // pred_region
      _
    $region25: #{_encoder_forward.3} parent=1 // pred_fallthru
      _
    // Predicated region
    $region26: #{_encoder_forward.3} parent=1 // pred_check
      _
    $region27: #{_encoder_forward.3} parent=1 // pred_check_branch
      %31 = sbr.rel (0) target = $region29
    $region28: #{_encoder_forward.3} parent=1 // pred_region
      _
    $region29: #{_encoder_forward.3} parent=1 // pred_fallthru
      _
    // Predicated region
    $region30: #{_encoder_forward.3} parent=1 // pred_check
      _
    $region31: #{_encoder_forward.3} parent=1 // pred_check_branch
      %33 = sbr.rel (0) target = $region33
    $region32: #{_encoder_forward.3} parent=1 // pred_region
      _
    $region33: #{_encoder_forward.3} parent=1 // pred_fallthru
      _
    // Predicated region
    $region34: #{_encoder_forward.3} parent=1 // pred_check
      _
    $region35: #{_encoder_forward.3} parent=1 // pred_check_branch
      %35 = sbr.rel (0) target = $region37
    $region36: #{_encoder_forward.3} parent=1 // pred_region
      _
    $region37: #{_encoder_forward.3} parent=1 // pred_fallthru
      _
    // Predicated region
    $region38: #{_encoder_forward.3} parent=1 // pred_check
      _
    $region39: #{_encoder_forward.3} parent=1 // pred_check_branch
      %37 = sbr.rel (0) target = $region41
    $region40: #{_encoder_forward.3} parent=1 // pred_region
      _
    $region41: #{_encoder_forward.3} parent=1 // pred_fallthru
      _
    // Predicated region
    $region42: #{_encoder_forward.3} parent=1 // pred_check
      _
    $region43: #{_encoder_forward.3} parent=1 // pred_check_branch
      %39 = sbr.rel (0) target = $region45
    $region44: #{_encoder_forward.3} parent=1 // pred_region
      _
    $region45: #{_encoder_forward.3} parent=1 // pred_fallthru
      _
    // Predicated region
    $region46: #{_encoder_forward.3} parent=1 // pred_check
      _
    $region47: #{_encoder_forward.3} parent=1 // pred_check_branch
      %41 = sbr.rel (0) target = $region49
    $region48: #{_encoder_forward.3} parent=1 // pred_region
      _
    $region49: #{_encoder_forward.3} parent=1 // pred_fallthru
      _
    %v42 = vld [vmem:[%s0] sm:$0xff]
    %v43 = vld [vmem:[%s0 + $0x8] sm:$0xff]
    %v44 = vld [vmem:[%s1] sm:$0xff]
    %v45 = vld [vmem:[%s1 + $0x8] sm:$0xff]
    %v46 = vld [vmem:[%s2] sm:$0xff]
    %v47 = vld [vmem:[%s2 + $0x8] sm:$0xff]
    %v48 = vld [vmem:[%s2 + $0x10] sm:$0xff]
    %v49 = vld [vmem:[%s2 + $0x18] sm:$0xff]
    %v50 = vld [vmem:[%s3] sm:$0x1]
    %v52 = vlaneseq
    %v53 = vshrl.u32 %v52, 7
    %v54 = vsub.s32 0, %v53
    %v55 = vrot.slane %v50, %v54
    %vm57 = vcmask 261120
    %v59 = vsel %vm57, %v42, 0
    %v62 = vsel %vm57, %v43, 0
    %64 = vmatprep.subr.mxu0 0.0
    %65 = vmatpush1.msra.mxu0 %v46
    %66 = vmatprep.subr.mxu0 0.0
    %67 = vmatpush1.msra.mxu0 %v47
    %68 = vmatprep.subr.mxu0 0.0
    %69 = vmatpush1.msra.mxu0 %v48
    %70 = vmatprep.subr.mxu0 0.0
    %71 = vmatpush1.msra.mxu0 %v49
    %72 = vmatprep.subr.mxu0 0.0
    %73 = vmatpush1.msra.mxu0 0.0
    %74 = vmatprep.subr.mxu0 0.0
    %75 = vmatpush1.msra.mxu0 0.0
    %76 = vmatprep.subr.mxu0 0.0
    %77 = vmatpush1.msra.mxu0 0.0
    %78 = vmatprep.subr.mxu0 0.0
    %79 = vmatpush1.msra.mxu0 0.0
    %80 = vmatprep.subr.mxu0 0.0
    %81 = vmatpush1.msra.mxu0 0.0
    %82 = vmatprep.subr.mxu0 0.0
    %83 = vmatpush1.msra.mxu0 0.0
    %84 = vmatprep.subr.mxu0 0.0
    %85 = vmatpush1.msra.mxu0 0.0
    %86 = vmatprep.subr.mxu0 0.0
    %87 = vmatpush1.msra.mxu0 0.0
    %88 = vmatprep.subr.mxu0 0.0
    %89 = vmatpush1.msra.mxu0 0.0
    %90 = vmatprep.subr.mxu0 0.0
    %91 = vmatpush1.msra.mxu0 0.0
    %92 = vmatprep.subr.mxu0 0.0
    %93 = vmatpush1.msra.mxu0 0.0
    %94 = vmatprep.subr.mxu0 0.0
    %95 = vmatpush1.msra.mxu0 0.0
    %96 = vmatprep.subr.mxu0 0.0
    %97 = vmatpush1.msra.mxu0 0.0
    %98 = vmatprep.subr.mxu0 0.0
    %99 = vmatpush1.msra.mxu0 0.0
    %100 = vmatprep.subr.mxu0 0.0
    %101 = vmatpush1.msra.mxu0 0.0
    %102 = vmatprep.subr.mxu0 0.0
    %103 = vmatpush1.msra.mxu0 0.0
    %104 = vmatprep.subr.mxu0 0.0
    %105 = vmatpush1.msra.mxu0 0.0
    %106 = vmatprep.subr.mxu0 0.0
    %107 = vmatpush1.msra.mxu0 0.0
    %108 = vmatprep.subr.mxu0 0.0
    %109 = vmatpush1.msra.mxu0 0.0
    %110 = vmatprep.subr.mxu0 0.0
    %111 = vmatpush1.msra.mxu0 0.0
    %112 = vmatprep.subr.mxu0 0.0
    %113 = vmatpush1.msra.mxu0 0.0
    %114 = vmatprep.subr.mxu0 0.0
    %115 = vmatpush1.msra.mxu0 0.0
    %116 = vmatprep.subr.mxu0 0.0
    %117 = vmatpush1.msra.mxu0 0.0
    %118 = vmatprep.subr.mxu0 0.0
    %119 = vmatpush1.msra.mxu0 0.0
    %120 = vmatprep.subr.mxu0 0.0
    %121 = vmatpush1.msra.mxu0 0.0
    %122 = vmatprep.subr.mxu0 0.0
    %123 = vmatpush1.msra.mxu0 0.0
    %124 = vmatprep.subr.mxu0 0.0
    %125 = vmatpush1.msra.mxu0 0.0
    %126 = vmatprep.subr.mxu0 0.0
    %127 = vmatpush1.msra.mxu0 0.0
    %128 = vmatprep.mubr.f32.mxu0 0.0
    %129 = vmatmul.mubr.f32.gmra.mrb[0].mxu0 %v59
    %v130 = vpop.f32.mrb[0].mxu0
    %v131 = vadd.f32 %v55, %v130
    %v132 = vpop.f32.mrb[0].mxu0
    %133 = vmatprep.mubr.f32.mxu0 0.0
    %134 = vmatmul.mubr.f32.gmra.mrb[0].mxu0 %v62
    %v135 = vpop.f32.mrb[0].mxu0
    %v136 = vadd.f32 %v55, %v135
    %v137 = vpop.f32.mrb[0].mxu0
    %138 = vdwg.mxu0
    %v139 = vadd.f32 %v131, %v44
    %v140 = vadd.f32 %v136, %v45
    %v141 = vsel %vm57, %v139, 0.0
    %142 = vadd.xlane.f32.xlu0 %v141
    %v143 = vpop.xlane.xlu0 %142
    %v144 = vsel %vm57, %v140, 0.0
    %145 = vadd.xlane.f32.xlu0 %v144
    %v146 = vpop.xlane.xlu0 %145
    %v147 = vrcp.pop 32.0
    %v148 = vmul.f32 %v143, %v147
    %v149 = vmul.f32 %v146, %v147
    %v150 = vsub.f32 %v139, %v148
    %v151 = vsub.f32 %v140, %v149
    %v152 = vmul.f32 %v150, %v150
    %v153 = vmul.f32 %v151, %v151
    %v154 = vsel %vm57, %v152, 0.0
    %155 = vadd.xlane.f32.xlu0 %v154
    %v156 = vpop.xlane.xlu0 %155
    %v157 = vsel %vm57, %v153, 0.0
    %158 = vadd.xlane.f32.xlu0 %v157
    %v159 = vpop.xlane.xlu0 %158
    %v160 = vmul.f32 %v156, %v147
    %v161 = vmul.f32 %v159, %v147
    %v162 = vrsqrt.pop %v160
    %v163 = vmul.f32 %v160, %v162
    %vm164 = vcmp.eq.f32.partialorder %v160, inf
    %v165 = vsel %vm164, %v160, %v163
    %vm166 = vcmp.eq.f32.partialorder %v160, 0.0
    %v167 = vand.u32 %v160, 2147483648
    %v168 = vsel %vm166, %v167, %v165
    %v169 = vrsqrt.pop %v161
    %v170 = vmul.f32 %v161, %v169
    %vm171 = vcmp.eq.f32.partialorder %v161, inf
    %v172 = vsel %vm171, %v161, %v170
    %vm173 = vcmp.eq.f32.partialorder %v161, 0.0
    %v174 = vand.u32 %v161, 2147483648
    %v175 = vsel %vm173, %v174, %v172
    %v176 = vld [vmem:[%s4] sm:$0x1]
    %v178 = vlaneseq
    %v179 = vshrl.u32 %v178, 7
    %v180 = vsub.s32 0, %v179
    %v181 = vrot.slane %v176, %v180
    %v183 = vmul.f32 %v181, %v150
    %v184 = vmul.f32 %v181, %v151
    %v185 = vadd.f32 %v168, 1e-10
    %v186 = vadd.f32 %v175, 1e-10
    %v187 = vrcp.pop %v185
    %v188 = vmul.f32 %v183, %v187
    %v189 = vrcp.pop %v186
    %v190 = vmul.f32 %v184, %v189
    %v191 = vld [vmem:[%s5] sm:$0x1]
    %v193 = vlaneseq
    %v194 = vshrl.u32 %v193, 7
    %v195 = vsub.s32 0, %v194
    %v196 = vrot.slane %v191, %v195
    %v198 = vadd.f32 %v188, %v196
    %v199 = vadd.f32 %v190, %v196
    %v200 = vld [vmem:[%s6] sm:$0xff]
    %v201 = vld [vmem:[%s6 + $0x8] sm:$0xff]
    %v202 = vld [vmem:[%s6 + $0x10] sm:$0xff]
    %v203 = vld [vmem:[%s6 + $0x18] sm:$0xff]
    %v204 = vld [vmem:[%s7] sm:$0x1]
    %v206 = vlaneseq
    %v207 = vshrl.u32 %v206, 7
    %v208 = vsub.s32 0, %v207
    %v209 = vrot.slane %v204, %v208
    %v212 = vsel %vm57, %v198, 0
    %v215 = vsel %vm57, %v199, 0
    %217 = vmatprep.subr.mxu0 0.0
    %218 = vmatpush1.msra.mxu0 %v200
    %219 = vmatprep.subr.mxu0 0.0
    %220 = vmatpush1.msra.mxu0 %v201
    %221 = vmatprep.subr.mxu0 0.0
    %222 = vmatpush1.msra.mxu0 %v202
    %223 = vmatprep.subr.mxu0 0.0
    %224 = vmatpush1.msra.mxu0 %v203
    %225 = vmatprep.subr.mxu0 0.0
    %226 = vmatpush1.msra.mxu0 0.0
    %227 = vmatprep.subr.mxu0 0.0
    %228 = vmatpush1.msra.mxu0 0.0
    %229 = vmatprep.subr.mxu0 0.0
    %230 = vmatpush1.msra.mxu0 0.0
    %231 = vmatprep.subr.mxu0 0.0
    %232 = vmatpush1.msra.mxu0 0.0
    %233 = vmatprep.subr.mxu0 0.0
    %234 = vmatpush1.msra.mxu0 0.0
    %235 = vmatprep.subr.mxu0 0.0
    %236 = vmatpush1.msra.mxu0 0.0
    %237 = vmatprep.subr.mxu0 0.0
    %238 = vmatpush1.msra.mxu0 0.0
    %239 = vmatprep.subr.mxu0 0.0
    %240 = vmatpush1.msra.mxu0 0.0
    %241 = vmatprep.subr.mxu0 0.0
    %242 = vmatpush1.msra.mxu0 0.0
    %243 = vmatprep.subr.mxu0 0.0
    %244 = vmatpush1.msra.mxu0 0.0
    %245 = vmatprep.subr.mxu0 0.0
    %246 = vmatpush1.msra.mxu0 0.0
    %247 = vmatprep.subr.mxu0 0.0
    %248 = vmatpush1.msra.mxu0 0.0
    %249 = vmatprep.subr.mxu0 0.0
    %250 = vmatpush1.msra.mxu0 0.0
    %251 = vmatprep.subr.mxu0 0.0
    %252 = vmatpush1.msra.mxu0 0.0
    %253 = vmatprep.subr.mxu0 0.0
    %254 = vmatpush1.msra.mxu0 0.0
    %255 = vmatprep.subr.mxu0 0.0
    %256 = vmatpush1.msra.mxu0 0.0
    %257 = vmatprep.subr.mxu0 0.0
    %258 = vmatpush1.msra.mxu0 0.0
    %259 = vmatprep.subr.mxu0 0.0
    %260 = vmatpush1.msra.mxu0 0.0
    %261 = vmatprep.subr.mxu0 0.0
    %262 = vmatpush1.msra.mxu0 0.0
    %263 = vmatprep.subr.mxu0 0.0
    %264 = vmatpush1.msra.mxu0 0.0
    %265 = vmatprep.subr.mxu0 0.0
    %266 = vmatpush1.msra.mxu0 0.0
    %267 = vmatprep.subr.mxu0 0.0
    %268 = vmatpush1.msra.mxu0 0.0
    %269 = vmatprep.subr.mxu0 0.0
    %270 = vmatpush1.msra.mxu0 0.0
    %271 = vmatprep.subr.mxu0 0.0
    %272 = vmatpush1.msra.mxu0 0.0
    %273 = vmatprep.subr.mxu0 0.0
    %274 = vmatpush1.msra.mxu0 0.0
    %275 = vmatprep.subr.mxu0 0.0
    %276 = vmatpush1.msra.mxu0 0.0
    %277 = vmatprep.subr.mxu0 0.0
    %278 = vmatpush1.msra.mxu0 0.0
    %279 = vmatprep.subr.mxu0 0.0
    %280 = vmatpush1.msra.mxu0 0.0
    %281 = vmatprep.mubr.f32.mxu0 0.0
    %282 = vmatmul.mubr.f32.gmra.mrb[0].mxu0 %v212
    %v283 = vpop.f32.mrb[0].mxu0
    %v284 = vadd.f32 %v209, %v283
    %v285 = vpop.f32.mrb[0].mxu0
    %286 = vmatprep.mubr.f32.mxu0 0.0
    %287 = vmatmul.mubr.f32.gmra.mrb[0].mxu0 %v215
    %v288 = vpop.f32.mrb[0].mxu0
    %v289 = vadd.f32 %v209, %v288
    %v290 = vpop.f32.mrb[0].mxu0
    %291 = vdwg.mxu0
    %v292 = vmax.f32 %v284, 0.0
    %v293 = vmax.f32 %v289, 0.0
    %v294 = vld [vmem:[%s8] sm:$0xff]
    %v295 = vld [vmem:[%s8 + $0x8] sm:$0xff]
    %v296 = vld [vmem:[%s8 + $0x10] sm:$0xff]
    %v297 = vld [vmem:[%s8 + $0x18] sm:$0xff]
    %v298 = vld [vmem:[%s8 + $0x20] sm:$0xff]
    %v299 = vld [vmem:[%s8 + $0x28] sm:$0xff]
    %v300 = vld [vmem:[%s8 + $0x30] sm:$0xff]
    %v301 = vld [vmem:[%s8 + $0x38] sm:$0xff]
    %v302 = vld [vmem:[%s9] sm:$0x1]
    %v304 = vlaneseq
    %v305 = vshrl.u32 %v304, 7
    %v306 = vsub.s32 0, %v305
    %v307 = vrot.slane %v302, %v306
    %vm309 = vcmask 523264
    %v311 = vsel %vm309, %v292, 0
    %v314 = vsel %vm309, %v293, 0
    %316 = vmatprep.subr.mxu0 0.0
    %317 = vmatpush1.msra.mxu0 %v294
    %318 = vmatprep.subr.mxu0 0.0
    %319 = vmatpush1.msra.mxu0 %v295
    %320 = vmatprep.subr.mxu0 0.0
    %321 = vmatpush1.msra.mxu0 %v296
    %322 = vmatprep.subr.mxu0 0.0
    %323 = vmatpush1.msra.mxu0 %v297
    %324 = vmatprep.subr.mxu0 0.0
    %325 = vmatpush1.msra.mxu0 %v298
    %326 = vmatprep.subr.mxu0 0.0
    %327 = vmatpush1.msra.mxu0 %v299
    %328 = vmatprep.subr.mxu0 0.0
    %329 = vmatpush1.msra.mxu0 %v300
    %330 = vmatprep.subr.mxu0 0.0
    %331 = vmatpush1.msra.mxu0 %v301
    %332 = vmatprep.subr.mxu0 0.0
    %333 = vmatpush1.msra.mxu0 0.0
    %334 = vmatprep.subr.mxu0 0.0
    %335 = vmatpush1.msra.mxu0 0.0
    %336 = vmatprep.subr.mxu0 0.0
    %337 = vmatpush1.msra.mxu0 0.0
    %338 = vmatprep.subr.mxu0 0.0
    %339 = vmatpush1.msra.mxu0 0.0
    %340 = vmatprep.subr.mxu0 0.0
    %341 = vmatpush1.msra.mxu0 0.0
    %342 = vmatprep.subr.mxu0 0.0
    %343 = vmatpush1.msra.mxu0 0.0
    %344 = vmatprep.subr.mxu0 0.0
    %345 = vmatpush1.msra.mxu0 0.0
    %346 = vmatprep.subr.mxu0 0.0
    %347 = vmatpush1.msra.mxu0 0.0
    %348 = vmatprep.subr.mxu0 0.0
    %349 = vmatpush1.msra.mxu0 0.0
    %350 = vmatprep.subr.mxu0 0.0
    %351 = vmatpush1.msra.mxu0 0.0
    %352 = vmatprep.subr.mxu0 0.0
    %353 = vmatpush1.msra.mxu0 0.0
    %354 = vmatprep.subr.mxu0 0.0
    %355 = vmatpush1.msra.mxu0 0.0
    %356 = vmatprep.subr.mxu0 0.0
    %357 = vmatpush1.msra.mxu0 0.0
    %358 = vmatprep.subr.mxu0 0.0
    %359 = vmatpush1.msra.mxu0 0.0
    %360 = vmatprep.subr.mxu0 0.0
    %361 = vmatpush1.msra.mxu0 0.0
    %362 = vmatprep.subr.mxu0 0.0
    %363 = vmatpush1.msra.mxu0 0.0
    %364 = vmatprep.subr.mxu0 0.0
    %365 = vmatpush1.msra.mxu0 0.0
    %366 = vmatprep.subr.mxu0 0.0
    %367 = vmatpush1.msra.mxu0 0.0
    %368 = vmatprep.subr.mxu0 0.0
    %369 = vmatpush1.msra.mxu0 0.0
    %370 = vmatprep.subr.mxu0 0.0
    %371 = vmatpush1.msra.mxu0 0.0
    %372 = vmatprep.subr.mxu0 0.0
    %373 = vmatpush1.msra.mxu0 0.0
    %374 = vmatprep.subr.mxu0 0.0
    %375 = vmatpush1.msra.mxu0 0.0
    %376 = vmatprep.subr.mxu0 0.0
    %377 = vmatpush1.msra.mxu0 0.0
    %378 = vmatprep.subr.mxu0 0.0
    %379 = vmatpush1.msra.mxu0 0.0
    %380 = vmatprep.mubr.f32.mxu0 0.0
    %381 = vmatmul.mubr.f32.gmra.mrb[0].mxu0 %v311
    %v382 = vpop.f32.mrb[0].mxu0
    %v383 = vadd.f32 %v307, %v382
    %v384 = vpop.f32.mrb[0].mxu0
    %385 = vmatprep.mubr.f32.mxu0 0.0
    %386 = vmatmul.mubr.f32.gmra.mrb[0].mxu0 %v314
    %v387 = vpop.f32.mrb[0].mxu0
    %v388 = vadd.f32 %v307, %v387
    %v389 = vpop.f32.mrb[0].mxu0
    %390 = vdwg.mxu0
    %v391 = vadd.f32 %v198, %v383
    %v392 = vadd.f32 %v199, %v388
    %v393 = vsel %vm57, %v391, 0.0
    %394 = vadd.xlane.f32.xlu0 %v393
    %v395 = vpop.xlane.xlu0 %394
    %v396 = vsel %vm57, %v392, 0.0
    %397 = vadd.xlane.f32.xlu0 %v396
    %v398 = vpop.xlane.xlu0 %397
    %v399 = vmul.f32 %v395, %v147
    %v400 = vmul.f32 %v398, %v147
    %v401 = vsub.f32 %v391, %v399
    %v402 = vsub.f32 %v392, %v400
    %v403 = vmul.f32 %v401, %v401
    %v404 = vmul.f32 %v402, %v402
    %v405 = vsel %vm57, %v403, 0.0
    %406 = vadd.xlane.f32.xlu0 %v405
    %v407 = vpop.xlane.xlu0 %406
    %v408 = vsel %vm57, %v404, 0.0
    %409 = vadd.xlane.f32.xlu0 %v408
    %v410 = vpop.xlane.xlu0 %409
    %v411 = vmul.f32 %v407, %v147
    %v412 = vmul.f32 %v410, %v147
    %v413 = vrsqrt.pop %v411
    %v414 = vmul.f32 %v411, %v413
    %vm415 = vcmp.eq.f32.partialorder %v411, inf
    %v416 = vsel %vm415, %v411, %v414
    %vm417 = vcmp.eq.f32.partialorder %v411, 0.0
    %v418 = vand.u32 %v411, 2147483648
    %v419 = vsel %vm417, %v418, %v416
    %v420 = vrsqrt.pop %v412
    %v421 = vmul.f32 %v412, %v420
    %vm422 = vcmp.eq.f32.partialorder %v412, inf
    %v423 = vsel %vm422, %v412, %v421
    %vm424 = vcmp.eq.f32.partialorder %v412, 0.0
    %v425 = vand.u32 %v412, 2147483648
    %v426 = vsel %vm424, %v425, %v423
    %v427 = vld [vmem:[%s10] sm:$0x1]
    %v429 = vlaneseq
    %v430 = vshrl.u32 %v429, 7
    %v431 = vsub.s32 0, %v430
    %v432 = vrot.slane %v427, %v431
    %v434 = vmul.f32 %v432, %v401
    %v435 = vmul.f32 %v432, %v402
    %v436 = vadd.f32 %v419, 1e-10
    %v437 = vadd.f32 %v426, 1e-10
    %v438 = vrcp.pop %v436
    %v439 = vmul.f32 %v434, %v438
    %v440 = vrcp.pop %v437
    %v441 = vmul.f32 %v435, %v440
    %v442 = vld [vmem:[%s11] sm:$0x1]
    %v444 = vlaneseq
    %v445 = vshrl.u32 %v444, 7
    %v446 = vsub.s32 0, %v445
    %v447 = vrot.slane %v442, %v446
    %v449 = vadd.f32 %v439, %v447
    %v450 = vadd.f32 %v441, %v447
    %451 = vst.msk [vmem:[#allocation2] sm:$0xff] %vm57, %v449
    %452 = vst.msk [vmem:[#allocation2 + $0x8] sm:$0xff] %vm57, %v450
    // Predicated region
    $region50: #{_encoder_forward.3} parent=1 // pred_check
      _
    $region51: #{_encoder_forward.3} parent=1 // pred_check_branch
      %454 = sbr.rel (0) target = $region53
    $region52: #{_encoder_forward.3} parent=1 // pred_region
      %s456 = ssub.s32 256, 256
      %457 = vsyncadd [#allocation3], %s456
      %s458 = sshll.u32 [#allocation2], 4
      %s459 = int_to_ptr.vmem [resolvable:$true] %s458
      %464 = dma.vmem_to_hbm [thread:$0]  %s459, 256, %s12, [#allocation3], 128, 128, 8
    $region53: #{_encoder_forward.3} parent=1 // pred_fallthru
      _
    // Predicated region
    $region54: #{_encoder_forward.3} parent=1 // pred_check
      _
    $region55: #{_encoder_forward.3} parent=1 // pred_check_branch
      %466 = sbr.rel (0) target = $region57
    $region56: #{_encoder_forward.3} parent=1 // pred_region
      %467 = dma.done [#allocation3], 256
    $region57: #{_encoder_forward.3} parent=1 // pred_fallthru
      _
    %468 = vsyncpa [#allocation3], 1

// kernel: _encoder_forward.3
$region0: #{_encoder_forward.3}
  #allocation0 [shape = 'u32[]', space=smem, size = 0x4, offset = 0x4, fixed_abs, tag = 'smem constant byte address 0x4 - core index']
  #allocation1 [shape = 'u32[144,128]{1,0:T(1,128)}', space=vmem, size = 0x12000, scoped, tag = 'internal scratch']
  %s0 = inlined_call_operand.vmem [shape: f32[16,32], index: 0, kind: input, shape index: {}]
  %s1 = inlined_call_operand.vmem [shape: f32[16,32], index: 1, kind: input, shape index: {}]
  %s2 = inlined_call_operand.vmem [shape: f32[32,32], index: 2, kind: input, shape index: {}]
  %s3 = inlined_call_operand.vmem [shape: f32[1,32], index: 3, kind: input, shape index: {}]
  %s4 = inlined_call_operand.vmem [shape: f32[1,32], index: 4, kind: input, shape index: {}]
  %s5 = inlined_call_operand.vmem [shape: f32[1,32], index: 5, kind: input, shape index: {}]
  %s6 = inlined_call_operand.vmem [shape: f32[32,64], index: 6, kind: input, shape index: {}]
  %s7 = inlined_call_operand.vmem [shape: f32[1,64], index: 7, kind: input, shape index: {}]
  %s8 = inlined_call_operand.vmem [shape: f32[64,32], index: 8, kind: input, shape index: {}]
  %s9 = inlined_call_operand.vmem [shape: f32[1,32], index: 9, kind: input, shape index: {}]
  %s10 = inlined_call_operand.vmem [shape: f32[1,32], index: 10, kind: input, shape index: {}]
  %s11 = inlined_call_operand.vmem [shape: f32[1,32], index: 11, kind: input, shape index: {}]
  %s12 = inlined_call_operand.hbm [shape: f32[16,32], index: 12, kind: output, shape index: {}]
  %s13 = sld [smem:[#allocation0]]
  $region58: #{_encoder_forward.3} parent=0
    _
  %s15 = ssub.s32 1, %s13
  %s16 = scalar_select 0, %s15, %s13
  $region1: #{_encoder_forward.3} parent=0
    #allocation2 [shape = 'u8[8192]{0}', space=vmem, size = 0x2000, scoped, tag = 'output window, operand 0, single buffered']
    #allocation3 [shape = 's32[1]{0}', space=sflag, size = 0x4, scoped, tag = 'scoped memory for _encoder_forward.3']
    %17 = vsyncpa [#allocation3], 0
    // Predicated region
    $region2: #{_encoder_forward.3} parent=1 // pred_check
      _
    $region3: #{_encoder_forward.3} parent=1 // pred_check_branch
      %19 = sbr.rel (0) target = $region5
    $region4: #{_encoder_forward.3} parent=1 // pred_region
      _
    $region5: #{_encoder_forward.3} parent=1 // pred_fallthru
      _
    // Predicated region
    $region6: #{_encoder_forward.3} parent=1 // pred_check
      _
    $region7: #{_encoder_forward.3} parent=1 // pred_check_branch
      %21 = sbr.rel (0) target = $region9
    $region8: #{_encoder_forward.3} parent=1 // pred_region
      _
    $region9: #{_encoder_forward.3} parent=1 // pred_fallthru
      _
    // Predicated region
    $region10: #{_encoder_forward.3} parent=1 // pred_check
      _
    $region11: #{_encoder_forward.3} parent=1 // pred_check_branch
      %23 = sbr.rel (0) target = $region13
    $region12: #{_encoder_forward.3} parent=1 // pred_region
      _
    $region13: #{_encoder_forward.3} parent=1 // pred_fallthru
      _
    // Predicated region
    $region14: #{_encoder_forward.3} parent=1 // pred_check
      _
    $region15: #{_encoder_forward.3} parent=1 // pred_check_branch
      %25 = sbr.rel (0) target = $region17
    $region16: #{_encoder_forward.3} parent=1 // pred_region
      _
    $region17: #{_encoder_forward.3} parent=1 // pred_fallthru
      _
    // Predicated region
    $region18: #{_encoder_forward.3} parent=1 // pred_check
      _
    $region19: #{_encoder_forward.3} parent=1 // pred_check_branch
      %27 = sbr.rel (0) target = $region21
    $region20: #{_encoder_forward.3} parent=1 // pred_region
      _
    $region21: #{_encoder_forward.3} parent=1 // pred_fallthru
      _
    // Predicated region
    $region22: #{_encoder_forward.3} parent=1 // pred_check
      _
    $region23: #{_encoder_forward.3} parent=1 // pred_check_branch
      %29 = sbr.rel (0) target = $region25
    $region24: #{_encoder_forward.3} parent=1 // pred_region
      _
    $region25: #{_encoder_forward.3} parent=1 // pred_fallthru
      _
    // Predicated region
    $region26: #{_encoder_forward.3} parent=1 // pred_check
      _
    $region27: #{_encoder_forward.3} parent=1 // pred_check_branch
      %31 = sbr.rel (0) target = $region29
    $region28: #{_encoder_forward.3} parent=1 // pred_region
      _
    $region29: #{_encoder_forward.3} parent=1 // pred_fallthru
      _
    // Predicated region
    $region30: #{_encoder_forward.3} parent=1 // pred_check
      _
    $region31: #{_encoder_forward.3} parent=1 // pred_check_branch
      %33 = sbr.rel (0) target = $region33
    $region32: #{_encoder_forward.3} parent=1 // pred_region
      _
    $region33: #{_encoder_forward.3} parent=1 // pred_fallthru
      _
    // Predicated region
    $region34: #{_encoder_forward.3} parent=1 // pred_check
      _
    $region35: #{_encoder_forward.3} parent=1 // pred_check_branch
      %35 = sbr.rel (0) target = $region37
    $region36: #{_encoder_forward.3} parent=1 // pred_region
      _
    $region37: #{_encoder_forward.3} parent=1 // pred_fallthru
      _
    // Predicated region
    $region38: #{_encoder_forward.3} parent=1 // pred_check
      _
    $region39: #{_encoder_forward.3} parent=1 // pred_check_branch
      %37 = sbr.rel (0) target = $region41
    $region40: #{_encoder_forward.3} parent=1 // pred_region
      _
    $region41: #{_encoder_forward.3} parent=1 // pred_fallthru
      _
    // Predicated region
    $region42: #{_encoder_forward.3} parent=1 // pred_check
      _
    $region43: #{_encoder_forward.3} parent=1 // pred_check_branch
      %39 = sbr.rel (0) target = $region45
    $region44: #{_encoder_forward.3} parent=1 // pred_region
      _
    $region45: #{_encoder_forward.3} parent=1 // pred_fallthru
      _
    // Predicated region
    $region46: #{_encoder_forward.3} parent=1 // pred_check
      _
    $region47: #{_encoder_forward.3} parent=1 // pred_check_branch
      %41 = sbr.rel (0) target = $region49
    $region48: #{_encoder_forward.3} parent=1 // pred_region
      _
    $region49: #{_encoder_forward.3} parent=1 // pred_fallthru
      _
    %v42 = vld [vmem:[%s0] sm:$0xff]
    %v43 = vld [vmem:[%s0 + $0x8] sm:$0xff]
    %v44 = vld [vmem:[%s1] sm:$0xff]
    %v45 = vld [vmem:[%s1 + $0x8] sm:$0xff]
    %v46 = vld [vmem:[%s2] sm:$0xff]
    %v47 = vld [vmem:[%s2 + $0x8] sm:$0xff]
    %v48 = vld [vmem:[%s2 + $0x10] sm:$0xff]
    %v49 = vld [vmem:[%s2 + $0x18] sm:$0xff]
    %v50 = vld [vmem:[%s3] sm:$0x1]
    %v52 = vlaneseq
    %v53 = vshrl.u32 %v52, 7
    %v54 = vsub.s32 0, %v53
    %v55 = vrot.slane %v50, %v54
    %vm57 = vcmask 261120
    %v59 = vsel %vm57, %v42, 0
    %v62 = vsel %vm57, %v43, 0
    %64 = vmatprep.subr.mxu0 0.0
    %65 = vmatpush1.msra.mxu0 %v46
    %66 = vmatprep.subr.mxu0 0.0
    %67 = vmatpush1.msra.mxu0 %v47
    %68 = vmatprep.subr.mxu0 0.0
    %69 = vmatpush1.msra.mxu0 %v48
    %70 = vmatprep.subr.mxu0 0.0
    %71 = vmatpush1.msra.mxu0 %v49
    %72 = vmatprep.subr.mxu0 0.0
    %73 = vmatpush1.msra.mxu0 0.0
    %74 = vmatprep.subr.mxu0 0.0
    %75 = vmatpush1.msra.mxu0 0.0
    %76 = vmatprep.subr.mxu0 0.0
    %77 = vmatpush1.msra.mxu0 0.0
    %78 = vmatprep.subr.mxu0 0.0
    %79 = vmatpush1.msra.mxu0 0.0
    %80 = vmatprep.subr.mxu0 0.0
    %81 = vmatpush1.msra.mxu0 0.0
    %82 = vmatprep.subr.mxu0 0.0
    %83 = vmatpush1.msra.mxu0 0.0
    %84 = vmatprep.subr.mxu0 0.0
    %85 = vmatpush1.msra.mxu0 0.0
    %86 = vmatprep.subr.mxu0 0.0
    %87 = vmatpush1.msra.mxu0 0.0
    %88 = vmatprep.subr.mxu0 0.0
    %89 = vmatpush1.msra.mxu0 0.0
    %90 = vmatprep.subr.mxu0 0.0
    %91 = vmatpush1.msra.mxu0 0.0
    %92 = vmatprep.subr.mxu0 0.0
    %93 = vmatpush1.msra.mxu0 0.0
    %94 = vmatprep.subr.mxu0 0.0
    %95 = vmatpush1.msra.mxu0 0.0
    %96 = vmatprep.subr.mxu0 0.0
    %97 = vmatpush1.msra.mxu0 0.0
    %98 = vmatprep.subr.mxu0 0.0
    %99 = vmatpush1.msra.mxu0 0.0
    %100 = vmatprep.subr.mxu0 0.0
    %101 = vmatpush1.msra.mxu0 0.0
    %102 = vmatprep.subr.mxu0 0.0
    %103 = vmatpush1.msra.mxu0 0.0
    %104 = vmatprep.subr.mxu0 0.0
    %105 = vmatpush1.msra.mxu0 0.0
    %106 = vmatprep.subr.mxu0 0.0
    %107 = vmatpush1.msra.mxu0 0.0
    %108 = vmatprep.subr.mxu0 0.0
    %109 = vmatpush1.msra.mxu0 0.0
    %110 = vmatprep.subr.mxu0 0.0
    %111 = vmatpush1.msra.mxu0 0.0
    %112 = vmatprep.subr.mxu0 0.0
    %113 = vmatpush1.msra.mxu0 0.0
    %114 = vmatprep.subr.mxu0 0.0
    %115 = vmatpush1.msra.mxu0 0.0
    %116 = vmatprep.subr.mxu0 0.0
    %117 = vmatpush1.msra.mxu0 0.0
    %118 = vmatprep.subr.mxu0 0.0
    %119 = vmatpush1.msra.mxu0 0.0
    %120 = vmatprep.subr.mxu0 0.0
    %121 = vmatpush1.msra.mxu0 0.0
    %122 = vmatprep.subr.mxu0 0.0
    %123 = vmatpush1.msra.mxu0 0.0
    %124 = vmatprep.subr.mxu0 0.0
    %125 = vmatpush1.msra.mxu0 0.0
    %126 = vmatprep.subr.mxu0 0.0
    %127 = vmatpush1.msra.mxu0 0.0
    %128 = vmatprep.mubr.f32.mxu0 0.0
    %129 = vmatmul.mubr.f32.gmra.mrb[0].mxu0 %v59
    %v130 = vpop.f32.mrb[0].mxu0
    %v131 = vadd.f32 %v55, %v130
    %v132 = vpop.f32.mrb[0].mxu0
    %133 = vmatprep.mubr.f32.mxu0 0.0
    %134 = vmatmul.mubr.f32.gmra.mrb[0].mxu0 %v62
    %v135 = vpop.f32.mrb[0].mxu0
    %v136 = vadd.f32 %v55, %v135
    %v137 = vpop.f32.mrb[0].mxu0
    %138 = vdwg.mxu0
    %v139 = vadd.f32 %v131, %v44
    %v140 = vadd.f32 %v136, %v45
    %v141 = vsel %vm57, %v139, 0.0
    %142 = vadd.xlane.f32.xlu0 %v141
    %v143 = vpop.xlane.xlu0 %142
    %v144 = vsel %vm57, %v140, 0.0
    %145 = vadd.xlane.f32.xlu0 %v144
    %v146 = vpop.xlane.xlu0 %145
    %v147 = vrcp.pop 32.0
    %v148 = vmul.f32 %v143, %v147
    %v149 = vmul.f32 %v146, %v147
    %v150 = vsub.f32 %v139, %v148
    %v151 = vsub.f32 %v140, %v149
    %v152 = vmul.f32 %v150, %v150
    %v153 = vmul.f32 %v151, %v151
    %v154 = vsel %vm57, %v152, 0.0
    %155 = vadd.xlane.f32.xlu0 %v154
    %v156 = vpop.xlane.xlu0 %155
    %v157 = vsel %vm57, %v153, 0.0
    %158 = vadd.xlane.f32.xlu0 %v157
    %v159 = vpop.xlane.xlu0 %158
    %v160 = vmul.f32 %v156, %v147
    %v161 = vmul.f32 %v159, %v147
    %v162 = vrsqrt.pop %v160
    %v163 = vmul.f32 %v160, %v162
    %vm164 = vcmp.eq.f32.partialorder %v160, inf
    %v165 = vsel %vm164, %v160, %v163
    %vm166 = vcmp.eq.f32.partialorder %v160, 0.0
    %v167 = vand.u32 %v160, 2147483648
    %v168 = vsel %vm166, %v167, %v165
    %v169 = vrsqrt.pop %v161
    %v170 = vmul.f32 %v161, %v169
    %vm171 = vcmp.eq.f32.partialorder %v161, inf
    %v172 = vsel %vm171, %v161, %v170
    %vm173 = vcmp.eq.f32.partialorder %v161, 0.0
    %v174 = vand.u32 %v161, 2147483648
    %v175 = vsel %vm173, %v174, %v172
    %v176 = vld [vmem:[%s4] sm:$0x1]
    %v178 = vlaneseq
    %v179 = vshrl.u32 %v178, 7
    %v180 = vsub.s32 0, %v179
    %v181 = vrot.slane %v176, %v180
    %v183 = vmul.f32 %v181, %v150
    %v184 = vmul.f32 %v181, %v151
    %v185 = vadd.f32 %v168, 1e-10
    %v186 = vadd.f32 %v175, 1e-10
    %v187 = vrcp.pop %v185
    %v188 = vmul.f32 %v183, %v187
    %v189 = vrcp.pop %v186
    %v190 = vmul.f32 %v184, %v189
    %v191 = vld [vmem:[%s5] sm:$0x1]
    %v193 = vlaneseq
    %v194 = vshrl.u32 %v193, 7
    %v195 = vsub.s32 0, %v194
    %v196 = vrot.slane %v191, %v195
    %v198 = vadd.f32 %v188, %v196
    %v199 = vadd.f32 %v190, %v196
    %v200 = vld [vmem:[%s6] sm:$0xff]
    %v201 = vld [vmem:[%s6 + $0x8] sm:$0xff]
    %v202 = vld [vmem:[%s6 + $0x10] sm:$0xff]
    %v203 = vld [vmem:[%s6 + $0x18] sm:$0xff]
    %v204 = vld [vmem:[%s7] sm:$0x1]
    %v206 = vlaneseq
    %v207 = vshrl.u32 %v206, 7
    %v208 = vsub.s32 0, %v207
    %v209 = vrot.slane %v204, %v208
    %v212 = vsel %vm57, %v198, 0
    %v215 = vsel %vm57, %v199, 0
    %217 = vmatprep.subr.mxu0 0.0
    %218 = vmatpush1.msra.mxu0 %v200
    %219 = vmatprep.subr.mxu0 0.0
    %220 = vmatpush1.msra.mxu0 %v201
    %221 = vmatprep.subr.mxu0 0.0
    %222 = vmatpush1.msra.mxu0 %v202
    %223 = vmatprep.subr.mxu0 0.0
    %224 = vmatpush1.msra.mxu0 %v203
    %225 = vmatprep.subr.mxu0 0.0
    %226 = vmatpush1.msra.mxu0 0.0
    %227 = vmatprep.subr.mxu0 0.0
    %228 = vmatpush1.msra.mxu0 0.0
    %229 = vmatprep.subr.mxu0 0.0
    %230 = vmatpush1.msra.mxu0 0.0
    %231 = vmatprep.subr.mxu0 0.0
    %232 = vmatpush1.msra.mxu0 0.0
    %233 = vmatprep.subr.mxu0 0.0
    %234 = vmatpush1.msra.mxu0 0.0
    %235 = vmatprep.subr.mxu0 0.0
    %236 = vmatpush1.msra.mxu0 0.0
    %237 = vmatprep.subr.mxu0 0.0
    %238 = vmatpush1.msra.mxu0 0.0
    %239 = vmatprep.subr.mxu0 0.0
    %240 = vmatpush1.msra.mxu0 0.0
    %241 = vmatprep.subr.mxu0 0.0
    %242 = vmatpush1.msra.mxu0 0.0
    %243 = vmatprep.subr.mxu0 0.0
    %244 = vmatpush1.msra.mxu0 0.0
    %245 = vmatprep.subr.mxu0 0.0
    %246 = vmatpush1.msra.mxu0 0.0
    %247 = vmatprep.subr.mxu0 0.0
    %248 = vmatpush1.msra.mxu0 0.0
    %249 = vmatprep.subr.mxu0 0.0
    %250 = vmatpush1.msra.mxu0 0.0
    %251 = vmatprep.subr.mxu0 0.0
    %252 = vmatpush1.msra.mxu0 0.0
    %253 = vmatprep.subr.mxu0 0.0
    %254 = vmatpush1.msra.mxu0 0.0
    %255 = vmatprep.subr.mxu0 0.0
    %256 = vmatpush1.msra.mxu0 0.0
    %257 = vmatprep.subr.mxu0 0.0
    %258 = vmatpush1.msra.mxu0 0.0
    %259 = vmatprep.subr.mxu0 0.0
    %260 = vmatpush1.msra.mxu0 0.0
    %261 = vmatprep.subr.mxu0 0.0
    %262 = vmatpush1.msra.mxu0 0.0
    %263 = vmatprep.subr.mxu0 0.0
    %264 = vmatpush1.msra.mxu0 0.0
    %265 = vmatprep.subr.mxu0 0.0
    %266 = vmatpush1.msra.mxu0 0.0
    %267 = vmatprep.subr.mxu0 0.0
    %268 = vmatpush1.msra.mxu0 0.0
    %269 = vmatprep.subr.mxu0 0.0
    %270 = vmatpush1.msra.mxu0 0.0
    %271 = vmatprep.subr.mxu0 0.0
    %272 = vmatpush1.msra.mxu0 0.0
    %273 = vmatprep.subr.mxu0 0.0
    %274 = vmatpush1.msra.mxu0 0.0
    %275 = vmatprep.subr.mxu0 0.0
    %276 = vmatpush1.msra.mxu0 0.0
    %277 = vmatprep.subr.mxu0 0.0
    %278 = vmatpush1.msra.mxu0 0.0
    %279 = vmatprep.subr.mxu0 0.0
    %280 = vmatpush1.msra.mxu0 0.0
    %281 = vmatprep.mubr.f32.mxu0 0.0
    %282 = vmatmul.mubr.f32.gmra.mrb[0].mxu0 %v212
    %v283 = vpop.f32.mrb[0].mxu0
    %v284 = vadd.f32 %v209, %v283
    %v285 = vpop.f32.mrb[0].mxu0
    %286 = vmatprep.mubr.f32.mxu0 0.0
    %287 = vmatmul.mubr.f32.gmra.mrb[0].mxu0 %v215
    %v288 = vpop.f32.mrb[0].mxu0
    %v289 = vadd.f32 %v209, %v288
    %v290 = vpop.f32.mrb[0].mxu0
    %291 = vdwg.mxu0
    %v292 = vmax.f32 %v284, 0.0
    %v293 = vmax.f32 %v289, 0.0
    %v294 = vld [vmem:[%s8] sm:$0xff]
    %v295 = vld [vmem:[%s8 + $0x8] sm:$0xff]
    %v296 = vld [vmem:[%s8 + $0x10] sm:$0xff]
    %v297 = vld [vmem:[%s8 + $0x18] sm:$0xff]
    %v298 = vld [vmem:[%s8 + $0x20] sm:$0xff]
    %v299 = vld [vmem:[%s8 + $0x28] sm:$0xff]
    %v300 = vld [vmem:[%s8 + $0x30] sm:$0xff]
    %v301 = vld [vmem:[%s8 + $0x38] sm:$0xff]
    %v302 = vld [vmem:[%s9] sm:$0x1]
    %v304 = vlaneseq
    %v305 = vshrl.u32 %v304, 7
    %v306 = vsub.s32 0, %v305
    %v307 = vrot.slane %v302, %v306
    %vm309 = vcmask 523264
    %v311 = vsel %vm309, %v292, 0
    %v314 = vsel %vm309, %v293, 0
    %316 = vmatprep.subr.mxu0 0.0
    %317 = vmatpush1.msra.mxu0 %v294
    %318 = vmatprep.subr.mxu0 0.0
    %319 = vmatpush1.msra.mxu0 %v295
    %320 = vmatprep.subr.mxu0 0.0
    %321 = vmatpush1.msra.mxu0 %v296
    %322 = vmatprep.subr.mxu0 0.0
    %323 = vmatpush1.msra.mxu0 %v297
    %324 = vmatprep.subr.mxu0 0.0
    %325 = vmatpush1.msra.mxu0 %v298
    %326 = vmatprep.subr.mxu0 0.0
    %327 = vmatpush1.msra.mxu0 %v299
    %328 = vmatprep.subr.mxu0 0.0
    %329 = vmatpush1.msra.mxu0 %v300
    %330 = vmatprep.subr.mxu0 0.0
    %331 = vmatpush1.msra.mxu0 %v301
    %332 = vmatprep.subr.mxu0 0.0
    %333 = vmatpush1.msra.mxu0 0.0
    %334 = vmatprep.subr.mxu0 0.0
    %335 = vmatpush1.msra.mxu0 0.0
    %336 = vmatprep.subr.mxu0 0.0
    %337 = vmatpush1.msra.mxu0 0.0
    %338 = vmatprep.subr.mxu0 0.0
    %339 = vmatpush1.msra.mxu0 0.0
    %340 = vmatprep.subr.mxu0 0.0
    %341 = vmatpush1.msra.mxu0 0.0
    %342 = vmatprep.subr.mxu0 0.0
    %343 = vmatpush1.msra.mxu0 0.0
    %344 = vmatprep.subr.mxu0 0.0
    %345 = vmatpush1.msra.mxu0 0.0
    %346 = vmatprep.subr.mxu0 0.0
    %347 = vmatpush1.msra.mxu0 0.0
    %348 = vmatprep.subr.mxu0 0.0
    %349 = vmatpush1.msra.mxu0 0.0
    %350 = vmatprep.subr.mxu0 0.0
    %351 = vmatpush1.msra.mxu0 0.0
    %352 = vmatprep.subr.mxu0 0.0
    %353 = vmatpush1.msra.mxu0 0.0
    %354 = vmatprep.subr.mxu0 0.0
    %355 = vmatpush1.msra.mxu0 0.0
    %356 = vmatprep.subr.mxu0 0.0
    %357 = vmatpush1.msra.mxu0 0.0
    %358 = vmatprep.subr.mxu0 0.0
    %359 = vmatpush1.msra.mxu0 0.0
    %360 = vmatprep.subr.mxu0 0.0
    %361 = vmatpush1.msra.mxu0 0.0
    %362 = vmatprep.subr.mxu0 0.0
    %363 = vmatpush1.msra.mxu0 0.0
    %364 = vmatprep.subr.mxu0 0.0
    %365 = vmatpush1.msra.mxu0 0.0
    %366 = vmatprep.subr.mxu0 0.0
    %367 = vmatpush1.msra.mxu0 0.0
    %368 = vmatprep.subr.mxu0 0.0
    %369 = vmatpush1.msra.mxu0 0.0
    %370 = vmatprep.subr.mxu0 0.0
    %371 = vmatpush1.msra.mxu0 0.0
    %372 = vmatprep.subr.mxu0 0.0
    %373 = vmatpush1.msra.mxu0 0.0
    %374 = vmatprep.subr.mxu0 0.0
    %375 = vmatpush1.msra.mxu0 0.0
    %376 = vmatprep.subr.mxu0 0.0
    %377 = vmatpush1.msra.mxu0 0.0
    %378 = vmatprep.subr.mxu0 0.0
    %379 = vmatpush1.msra.mxu0 0.0
    %380 = vmatprep.mubr.f32.mxu0 0.0
    %381 = vmatmul.mubr.f32.gmra.mrb[0].mxu0 %v311
    %v382 = vpop.f32.mrb[0].mxu0
    %v383 = vadd.f32 %v307, %v382
    %v384 = vpop.f32.mrb[0].mxu0
    %385 = vmatprep.mubr.f32.mxu0 0.0
    %386 = vmatmul.mubr.f32.gmra.mrb[0].mxu0 %v314
    %v387 = vpop.f32.mrb[0].mxu0
    %v388 = vadd.f32 %v307, %v387
    %v389 = vpop.f32.mrb[0].mxu0
    %390 = vdwg.mxu0
    %v391 = vadd.f32 %v198, %v383
    %v392 = vadd.f32 %v199, %v388
    %v393 = vsel %vm57, %v391, 0.0
    %394 = vadd.xlane.f32.xlu0 %v393
    %v395 = vpop.xlane.xlu0 %394
    %v396 = vsel %vm57, %v392, 0.0
    %397 = vadd.xlane.f32.xlu0 %v396
    %v398 = vpop.xlane.xlu0 %397
    %v399 = vmul.f32 %v395, %v147
    %v400 = vmul.f32 %v398, %v147
    %v401 = vsub.f32 %v391, %v399
    %v402 = vsub.f32 %v392, %v400
    %v403 = vmul.f32 %v401, %v401
    %v404 = vmul.f32 %v402, %v402
    %v405 = vsel %vm57, %v403, 0.0
    %406 = vadd.xlane.f32.xlu0 %v405
    %v407 = vpop.xlane.xlu0 %406
    %v408 = vsel %vm57, %v404, 0.0
    %409 = vadd.xlane.f32.xlu0 %v408
    %v410 = vpop.xlane.xlu0 %409
    %v411 = vmul.f32 %v407, %v147
    %v412 = vmul.f32 %v410, %v147
    %v413 = vrsqrt.pop %v411
    %v414 = vmul.f32 %v411, %v413
    %vm415 = vcmp.eq.f32.partialorder %v411, inf
    %v416 = vsel %vm415, %v411, %v414
    %vm417 = vcmp.eq.f32.partialorder %v411, 0.0
    %v418 = vand.u32 %v411, 2147483648
    %v419 = vsel %vm417, %v418, %v416
    %v420 = vrsqrt.pop %v412
    %v421 = vmul.f32 %v412, %v420
    %vm422 = vcmp.eq.f32.partialorder %v412, inf
    %v423 = vsel %vm422, %v412, %v421
    %vm424 = vcmp.eq.f32.partialorder %v412, 0.0
    %v425 = vand.u32 %v412, 2147483648
    %v426 = vsel %vm424, %v425, %v423
    %v427 = vld [vmem:[%s10] sm:$0x1]
    %v429 = vlaneseq
    %v430 = vshrl.u32 %v429, 7
    %v431 = vsub.s32 0, %v430
    %v432 = vrot.slane %v427, %v431
    %v434 = vmul.f32 %v432, %v401
    %v435 = vmul.f32 %v432, %v402
    %v436 = vadd.f32 %v419, 1e-10
    %v437 = vadd.f32 %v426, 1e-10
    %v438 = vrcp.pop %v436
    %v439 = vmul.f32 %v434, %v438
    %v440 = vrcp.pop %v437
    %v441 = vmul.f32 %v435, %v440
    %v442 = vld [vmem:[%s11] sm:$0x1]
    %v444 = vlaneseq
    %v445 = vshrl.u32 %v444, 7
    %v446 = vsub.s32 0, %v445
    %v447 = vrot.slane %v442, %v446
    %v449 = vadd.f32 %v439, %v447
    %v450 = vadd.f32 %v441, %v447
    %451 = vst.msk [vmem:[#allocation2] sm:$0xff] %vm57, %v449
    %452 = vst.msk [vmem:[#allocation2 + $0x8] sm:$0xff] %vm57, %v450
    // Predicated region
    $region50: #{_encoder_forward.3} parent=1 // pred_check
      _
    $region51: #{_encoder_forward.3} parent=1 // pred_check_branch
      %454 = sbr.rel (0) target = $region53
    $region52: #{_encoder_forward.3} parent=1 // pred_region
      %s456 = ssub.s32 256, 256
      %457 = vsyncadd [#allocation3], %s456
      %s458 = sshll.u32 [#allocation2], 4
      %s459 = int_to_ptr.vmem [resolvable:$true] %s458
      %464 = dma.vmem_to_hbm [thread:$0]  %s459, 256, %s12, [#allocation3], 128, 128, 8
    $region53: #{_encoder_forward.3} parent=1 // pred_fallthru
      _
    // Predicated region
    $region54: #{_encoder_forward.3} parent=1 // pred_check
      _
    $region55: #{_encoder_forward.3} parent=1 // pred_check_branch
      %466 = sbr.rel (0) target = $region57
    $region56: #{_encoder_forward.3} parent=1 // pred_region
      %467 = dma.done [#allocation3], 256
    $region57: #{_encoder_forward.3} parent=1 // pred_fallthru
      _
    %468 = vsyncpa [#allocation3], 1

// kernel: _encoder_forward.2
$region0: #{_encoder_forward.2}
  #allocation0 [shape = 'u32[]', space=smem, size = 0x4, offset = 0x4, fixed_abs, tag = 'smem constant byte address 0x4 - core index']
  #allocation1 [shape = 'u32[144,128]{1,0:T(1,128)}', space=vmem, size = 0x12000, scoped, tag = 'internal scratch']
  %s0 = inlined_call_operand.vmem [shape: f32[2,8,32], index: 0, kind: input, shape index: {}]
  %s1 = inlined_call_operand.vmem [shape: f32[4,32,8], index: 1, kind: input, shape index: {}]
  %s2 = inlined_call_operand.vmem [shape: f32[4,1,8], index: 2, kind: input, shape index: {}]
  %s3 = inlined_call_operand.vmem [shape: f32[4,32,8], index: 3, kind: input, shape index: {}]
  %s4 = inlined_call_operand.vmem [shape: f32[4,1,8], index: 4, kind: input, shape index: {}]
  %s5 = inlined_call_operand.vmem [shape: f32[4,32,8], index: 5, kind: input, shape index: {}]
  %s6 = inlined_call_operand.vmem [shape: f32[4,1,8], index: 6, kind: input, shape index: {}]
  %s7 = inlined_call_operand.vmem [shape: f32[2,4,8,8], index: 7, kind: output, shape index: {}]
  %s8 = sld [smem:[#allocation0]]
  $region61: #{_encoder_forward.2} parent=0
    _
  %s10 = ssub.s32 1, %s8
  %s11 = scalar_select 0, %s10, %s8
  loop: start=0, step=1, limit=10
  $region2: #{_encoder_forward.2} parent=0 // loop_pre_header
    _
  $region3: #{_encoder_forward.2} parent=0 // loop_header
    %s13 = sphi 0, %s17
    %p14 = scmp.ge.s32.totalorder %s13, 10
    %s20 = sphi 0, %s32
    %s21 = sphi 0, %s28
    %s22 = sphi 0, %s20
    %s23 = sphi 0, %s21
    %s24 = sphi 0, %s22
    %s25 = sphi 0, %s23
    %s35 = sphi 0, %s37
    %s38 = sphi 0, %s35
    %s39 = sphi 0, %s38
    %s55 = sphi 0, %s39
    %s61 = sphi 0, %s63
    %s64 = sphi 0, %s61
    %s65 = sphi 0, %s64
    %s81 = sphi 0, %s65
    %s87 = sphi 0, %s89
    %s90 = sphi 0, %s87
    %s91 = sphi 0, %s90
    %s107 = sphi 0, %s91
    %s113 = sphi 0, %s115
    %s116 = sphi 0, %s113
    %s117 = sphi 0, %s116
    %s133 = sphi 0, %s117
    %s139 = sphi 0, %s141
    %s142 = sphi 0, %s139
    %s143 = sphi 0, %s142
    %s159 = sphi 0, %s143
    %s165 = sphi 0, %s167
    %s168 = sphi 0, %s165
    %s169 = sphi 0, %s168
    %s185 = sphi 0, %s169
    %s191 = sphi 0, %s193
    %s194 = sphi 0, %s191
    %s195 = sphi 0, %s194
    %s211 = sphi 0, %s195
    %s219 = sphi 0, %s221
    %s222 = sphi 0, %s219
    %s223 = sphi 0, %s222
    %s239 = sphi 0, %s223
  $region4: #{_encoder_forward.2} parent=0 // loop_header_branch
    %16 = sbr.rel (%p14) target = $region8
  $region5: #{_encoder_forward.2} parent=0 // loop_body
    %s18 = ssub.s32 %s13, 1
    %s19 = ssub.s32 %s13, 2
    %s26 = sadd.s32 1, %s21
    %p27 = scmp.ge.s32.totalorder %s26, 4
    %s28 = scalar_select %p27, 0, %s26
    %s29 = sadd.s32 1, %s20
    %s30 = scalar_select %p27, %s29, %s20
    %p31 = scmp.ge.s32.totalorder %s30, 2
    %s32 = scalar_select %p31, 0, %s30
    %s33 = ssub.s32 %s20, %s32
    %p34 = scmp.eq.s32.totalorder %s33, 0
    %s36 = sadd.s32 %s35, 1
    %s37 = scalar_select %p34, %s35, %s36
    %p40 = pneg %p34
    %p41 = scmp.eq.s32.totalorder %s13, 7
    %p42 = por %p40, %p41
    %p43 = scmp.ne.s32.totalorder %s35, %s38
    %p44 = scmp.eq.s32.totalorder %s13, 0
    %p45 = por %p43, %p44
    %p46 = scmp.ne.s32.totalorder %s35, %s38
    %p47 = scmp.eq.s32.totalorder %s18, 7
    %p48 = por %p46, %p47
    %p49 = scmp.ne.s32.totalorder %s38, %s39
    %p50 = scmp.eq.s32.totalorder %s18, 0
    %p51 = por %p49, %p50
    %p52 = scmp.ne.s32.totalorder %s38, %s39
    %p53 = scmp.eq.s32.totalorder %s19, 7
    %p54 = por %p52, %p53
    %p56 = scmp.ne.s32.totalorder %s39, %s55
    %p57 = scmp.eq.s32.totalorder %s19, 0
    %p58 = por %p56, %p57
    %s59 = ssub.s32 %s21, %s28
    %p60 = scmp.eq.s32.totalorder %s59, 0
    %s62 = sadd.s32 %s61, 1
    %s63 = scalar_select %p60, %s61, %s62
    %p66 = pneg %p60
    %p67 = scmp.eq.s32.totalorder %s13, 7
    %p68 = por %p66, %p67
    %p69 = scmp.ne.s32.totalorder %s61, %s64
    %p70 = scmp.eq.s32.totalorder %s13, 0
    %p71 = por %p69, %p70
    %p72 = scmp.ne.s32.totalorder %s61, %s64
    %p73 = scmp.eq.s32.totalorder %s18, 7
    %p74 = por %p72, %p73
    %p75 = scmp.ne.s32.totalorder %s64, %s65
    %p76 = scmp.eq.s32.totalorder %s18, 0
    %p77 = por %p75, %p76
    %p78 = scmp.ne.s32.totalorder %s64, %s65
    %p79 = scmp.eq.s32.totalorder %s19, 7
    %p80 = por %p78, %p79
    %p82 = scmp.ne.s32.totalorder %s65, %s81
    %p83 = scmp.eq.s32.totalorder %s19, 0
    %p84 = por %p82, %p83
    %s85 = ssub.s32 %s21, %s28
    %p86 = scmp.eq.s32.totalorder %s85, 0
    %s88 = sadd.s32 %s87, 1
    %s89 = scalar_select %p86, %s87, %s88
    %p92 = pneg %p86
    %p93 = scmp.eq.s32.totalorder %s13, 7
    %p94 = por %p92, %p93
    %p95 = scmp.ne.s32.totalorder %s87, %s90
    %p96 = scmp.eq.s32.totalorder %s13, 0
    %p97 = por %p95, %p96
    %p98 = scmp.ne.s32.totalorder %s87, %s90
    %p99 = scmp.eq.s32.totalorder %s18, 7
    %p100 = por %p98, %p99
    %p101 = scmp.ne.s32.totalorder %s90, %s91
    %p102 = scmp.eq.s32.totalorder %s18, 0
    %p103 = por %p101, %p102
    %p104 = scmp.ne.s32.totalorder %s90, %s91
    %p105 = scmp.eq.s32.totalorder %s19, 7
    %p106 = por %p104, %p105
    %p108 = scmp.ne.s32.totalorder %s91, %s107
    %p109 = scmp.eq.s32.totalorder %s19, 0
    %p110 = por %p108, %p109
    %s111 = ssub.s32 %s21, %s28
    %p112 = scmp.eq.s32.totalorder %s111, 0
    %s114 = sadd.s32 %s113, 1
    %s115 = scalar_select %p112, %s113, %s114
    %p118 = pneg %p112
    %p119 = scmp.eq.s32.totalorder %s13, 7
    %p120 = por %p118, %p119
    %p121 = scmp.ne.s32.totalorder %s113, %s116
    %p122 = scmp.eq.s32.totalorder %s13, 0
    %p123 = por %p121, %p122
    %p124 = scmp.ne.s32.totalorder %s113, %s116
    %p125 = scmp.eq.s32.totalorder %s18, 7
    %p126 = por %p124, %p125
    %p127 = scmp.ne.s32.totalorder %s116, %s117
    %p128 = scmp.eq.s32.totalorder %s18, 0
    %p129 = por %p127, %p128
    %p130 = scmp.ne.s32.totalorder %s116, %s117
    %p131 = scmp.eq.s32.totalorder %s19, 7
    %p132 = por %p130, %p131
    %p134 = scmp.ne.s32.totalorder %s117, %s133
    %p135 = scmp.eq.s32.totalorder %s19, 0
    %p136 = por %p134, %p135
    %s137 = ssub.s32 %s21, %s28
    %p138 = scmp.eq.s32.totalorder %s137, 0
    %s140 = sadd.s32 %s139, 1
    %s141 = scalar_select %p138, %s139, %s140
    %p144 = pneg %p138
    %p145 = scmp.eq.s32.totalorder %s13, 7
    %p146 = por %p144, %p145
    %p147 = scmp.ne.s32.totalorder %s139, %s142
    %p148 = scmp.eq.s32.totalorder %s13, 0
    %p149 = por %p147, %p148
    %p150 = scmp.ne.s32.totalorder %s139, %s142
    %p151 = scmp.eq.s32.totalorder %s18, 7
    %p152 = por %p150, %p151
    %p153 = scmp.ne.s32.totalorder %s142, %s143
    %p154 = scmp.eq.s32.totalorder %s18, 0
    %p155 = por %p153, %p154
    %p156 = scmp.ne.s32.totalorder %s142, %s143
    %p157 = scmp.eq.s32.totalorder %s19, 7
    %p158 = por %p156, %p157
    %p160 = scmp.ne.s32.totalorder %s143, %s159
    %p161 = scmp.eq.s32.totalorder %s19, 0
    %p162 = por %p160, %p161
    %s163 = ssub.s32 %s21, %s28
    %p164 = scmp.eq.s32.totalorder %s163, 0
    %s166 = sadd.s32 %s165, 1
    %s167 = scalar_select %p164, %s165, %s166
    %p170 = pneg %p164
    %p171 = scmp.eq.s32.totalorder %s13, 7
    %p172 = por %p170, %p171
    %p173 = scmp.ne.s32.totalorder %s165, %s168
    %p174 = scmp.eq.s32.totalorder %s13, 0
    %p175 = por %p173, %p174
    %p176 = scmp.ne.s32.totalorder %s165, %s168
    %p177 = scmp.eq.s32.totalorder %s18, 7
    %p178 = por %p176, %p177
    %p179 = scmp.ne.s32.totalorder %s168, %s169
    %p180 = scmp.eq.s32.totalorder %s18, 0
    %p181 = por %p179, %p180
    %p182 = scmp.ne.s32.totalorder %s168, %s169
    %p183 = scmp.eq.s32.totalorder %s19, 7
    %p184 = por %p182, %p183
    %p186 = scmp.ne.s32.totalorder %s169, %s185
    %p187 = scmp.eq.s32.totalorder %s19, 0
    %p188 = por %p186, %p187
    %s189 = ssub.s32 %s21, %s28
    %p190 = scmp.eq.s32.totalorder %s189, 0
    %s192 = sadd.s32 %s191, 1
    %s193 = scalar_select %p190, %s191, %s192
    %p196 = pneg %p190
    %p197 = scmp.eq.s32.totalorder %s13, 7
    %p198 = por %p196, %p197
    %p199 = scmp.ne.s32.totalorder %s191, %s194
    %p200 = scmp.eq.s32.totalorder %s13, 0
    %p201 = por %p199, %p200
    %p202 = scmp.ne.s32.totalorder %s191, %s194
    %p203 = scmp.eq.s32.totalorder %s18, 7
    %p204 = por %p202, %p203
    %p205 = scmp.ne.s32.totalorder %s194, %s195
    %p206 = scmp.eq.s32.totalorder %s18, 0
    %p207 = por %p205, %p206
    %p208 = scmp.ne.s32.totalorder %s194, %s195
    %p209 = scmp.eq.s32.totalorder %s19, 7
    %p210 = por %p208, %p209
    %p212 = scmp.ne.s32.totalorder %s195, %s211
    %p213 = scmp.eq.s32.totalorder %s19, 0
    %p214 = por %p212, %p213
    %s215 = ssub.s32 %s20, %s32
    %s216 = ssub.s32 %s21, %s28
    %s217 = sor.u32 %s215, %s216
    %p218 = scmp.eq.s32.totalorder %s217, 0
    %s220 = sadd.s32 %s219, 1
    %s221 = scalar_select %p218, %s219, %s220
    %p224 = pneg %p218
    %p225 = scmp.eq.s32.totalorder %s13, 7
    %p226 = por %p224, %p225
    %p227 = scmp.ne.s32.totalorder %s219, %s222
    %p228 = scmp.eq.s32.totalorder %s13, 0
    %p229 = por %p227, %p228
    %p230 = scmp.ne.s32.totalorder %s219, %s222
    %p231 = scmp.eq.s32.totalorder %s18, 7
    %p232 = por %p230, %p231
    %p233 = scmp.ne.s32.totalorder %s222, %s223
    %p234 = scmp.eq.s32.totalorder %s18, 0
    %p235 = por %p233, %p234
    %p236 = scmp.ne.s32.totalorder %s222, %s223
    %p237 = scmp.eq.s32.totalorder %s19, 7
    %p238 = por %p236, %p237
    %p240 = scmp.ne.s32.totalorder %s223, %s239
    %p241 = scmp.eq.s32.totalorder %s19, 0
    %p242 = por %p240, %p241
    %p243 = scmp.le.s32.totalorder 1, %s13
    %p244 = scmp.lt.s32.totalorder %s13, 9
    %p245 = pnand %p243, %p244
    %p246 = pneg %p245
    // Predicated region
    $region9: #{_encoder_forward.2} parent=5 // pred_check
      _
    $region10: #{_encoder_forward.2} parent=5 // pred_check_branch
      %248 = sbr.rel (%p245) target = $region12
    $region11: #{_encoder_forward.2} parent=5 // pred_region
      %s249 = ssub.s32 %s13, 1
    $region12: #{_encoder_forward.2} parent=5 // pred_fallthru
      _
    %p250 = scmp.lt.s32.totalorder %s13, 8
    // Predicated region
    $region13: #{_encoder_forward.2} parent=5 // pred_check
      %p251 = pneg %p250
    $region14: #{_encoder_forward.2} parent=5 // pred_check_branch
      %253 = sbr.rel (%p251) target = $region16
    $region15: #{_encoder_forward.2} parent=5 // pred_region
      // Predicated region
      $region17: #{_encoder_forward.2} parent=15 // pred_check
        %p254 = pneg %p45
      $region18: #{_encoder_forward.2} parent=15 // pred_check_branch
        %256 = sbr.rel (%p254) target = $region20
      $region19: #{_encoder_forward.2} parent=15 // pred_region
        %p257 = scmp.lt.s32.totalorder %s20, 1
        %s258 = scalar_select %p257, %s20, 1
        %s259 = smul.addr %s258, 8
        %s260 = scalar_lea.vmem %s0, %s259
      $region20: #{_encoder_forward.2} parent=15 // pred_fallthru
        _
      // Predicated region
      $region21: #{_encoder_forward.2} parent=15 // pred_check
        %p261 = pneg %p71
      $region22: #{_encoder_forward.2} parent=15 // pred_check_branch
        %263 = sbr.rel (%p261) target = $region24
      $region23: #{_encoder_forward.2} parent=15 // pred_region
        %p264 = scmp.lt.s32.totalorder %s21, 3
        %s265 = scalar_select %p264, %s21, 3
        %s266 = smul.addr %s265, 4
        %s267 = smul.addr %s266, 8
        %s268 = scalar_lea.vmem %s1, %s267
      $region24: #{_encoder_forward.2} parent=15 // pred_fallthru
        _
      // Predicated region
      $region25: #{_encoder_forward.2} parent=15 // pred_check
        %p269 = pneg %p97
      $region26: #{_encoder_forward.2} parent=15 // pred_check_branch
        %271 = sbr.rel (%p269) target = $region28
      $region27: #{_encoder_forward.2} parent=15 // pred_region
        %p272 = scmp.lt.s32.totalorder %s21, 3
        %s273 = scalar_select %p272, %s21, 3
        %s274 = scalar_lea.vmem %s2, %s273
      $region28: #{_encoder_forward.2} parent=15 // pred_fallthru
        _
      // Predicated region
      $region29: #{_encoder_forward.2} parent=15 // pred_check
        %p275 = pneg %p123
      $region30: #{_encoder_forward.2} parent=15 // pred_check_branch
        %277 = sbr.rel (%p275) target = $region32
      $region31: #{_encoder_forward.2} parent=15 // pred_region
        %p278 = scmp.lt.s32.totalorder %s21, 3
        %s279 = scalar_select %p278, %s21, 3
        %s280 = smul.addr %s279, 4
        %s281 = smul.addr %s280, 8
        %s282 = scalar_lea.vmem %s3, %s281
      $region32: #{_encoder_forward.2} parent=15 // pred_fallthru
        _
      // Predicated region
      $region33: #{_encoder_forward.2} parent=15 // pred_check
        %p283 = pneg %p149
      $region34: #{_encoder_forward.2} parent=15 // pred_check_branch
        %285 = sbr.rel (%p283) target = $region36
      $region35: #{_encoder_forward.2} parent=15 // pred_region
        %p286 = scmp.lt.s32.totalorder %s21, 3
        %s287 = scalar_select %p286, %s21, 3
        %s288 = scalar_lea.vmem %s4, %s287
      $region36: #{_encoder_forward.2} parent=15 // pred_fallthru
        _
      // Predicated region
      $region37: #{_encoder_forward.2} parent=15 // pred_check
        %p289 = pneg %p175
      $region38: #{_encoder_forward.2} parent=15 // pred_check_branch
        %291 = sbr.rel (%p289) target = $region40
      $region39: #{_encoder_forward.2} parent=15 // pred_region
        %p292 = scmp.lt.s32.totalorder %s21, 3
        %s293 = scalar_select %p292, %s21, 3
        %s294 = smul.addr %s293, 4
        %s295 = smul.addr %s294, 8
        %s296 = scalar_lea.vmem %s5, %s295
      $region40: #{_encoder_forward.2} parent=15 // pred_fallthru
        _
      // Predicated region
      $region41: #{_encoder_forward.2} parent=15 // pred_check
        %p297 = pneg %p201
      $region42: #{_encoder_forward.2} parent=15 // pred_check_branch
        %299 = sbr.rel (%p297) target = $region44
      $region43: #{_encoder_forward.2} parent=15 // pred_region
        %p300 = scmp.lt.s32.totalorder %s21, 3
        %s301 = scalar_select %p300, %s21, 3
        %s302 = scalar_lea.vmem %s6, %s301
      $region44: #{_encoder_forward.2} parent=15 // pred_fallthru
        _
    $region16: #{_encoder_forward.2} parent=5 // pred_fallthru
      _
    %p303 = scmp.le.s32.totalorder 1, %s13
    %p304 = scmp.lt.s32.totalorder %s13, 9
    %p305 = pnand %p303, %p304
    %p306 = pneg %p305
    // Predicated region
    $region45: #{_encoder_forward.2} parent=5 // pred_check
      _
    $region46: #{_encoder_forward.2} parent=5 // pred_check_branch
      %308 = sbr.rel (%p305) target = $region48
    $region47: #{_encoder_forward.2} parent=5 // pred_region
      %s309 = ssub.s32 %s13, 1
      %p310 = scmp.lt.s32.totalorder %s22, 1
      %s311 = scalar_select %p310, %s22, 1
      %s312 = smul.addr %s311, 8
      %s313 = scalar_lea.vmem %s0, %s312
      %p314 = pneg %p51
      %p315 = pneg %p48
      %p316 = scmp.lt.s32.totalorder %s23, 3
      %s317 = scalar_select %p316, %s23, 3
      %s318 = smul.addr %s317, 4
      %s319 = smul.addr %s318, 8
      %s320 = scalar_lea.vmem %s1, %s319
      %p321 = pneg %p77
      %p322 = pneg %p74
      %p323 = scmp.lt.s32.totalorder %s23, 3
      %s324 = scalar_select %p323, %s23, 3
      %s325 = scalar_lea.vmem %s2, %s324
      %p326 = pneg %p103
      %p327 = pneg %p100
      %p328 = scmp.lt.s32.totalorder %s23, 3
      %s329 = scalar_select %p328, %s23, 3
      %s330 = smul.addr %s329, 4
      %s331 = smul.addr %s330, 8
      %s332 = scalar_lea.vmem %s3, %s331
      %p333 = pneg %p129
      %p334 = pneg %p126
      %p335 = scmp.lt.s32.totalorder %s23, 3
      %s336 = scalar_select %p335, %s23, 3
      %s337 = scalar_lea.vmem %s4, %s336
      %p338 = pneg %p155
      %p339 = pneg %p152
      %p340 = scmp.lt.s32.totalorder %s23, 3
      %s341 = scalar_select %p340, %s23, 3
      %s342 = smul.addr %s341, 4
      %s343 = smul.addr %s342, 8
      %s344 = scalar_lea.vmem %s5, %s343
      %p345 = pneg %p181
      %p346 = pneg %p178
      %p347 = scmp.lt.s32.totalorder %s23, 3
      %s348 = scalar_select %p347, %s23, 3
      %s349 = scalar_lea.vmem %s6, %s348
      %p350 = pneg %p207
      %p351 = pneg %p204
      %p352 = pneg %p235
      %p353 = pneg %p232
      %p354 = scmp.lt.s32.totalorder %s22, 1
      %s355 = scalar_select %p354, %s22, 1
      %p356 = scmp.lt.s32.totalorder %s23, 3
      %s357 = scalar_select %p356, %s23, 3
      %s358 = smul.addr %s355, 4
      %s359 = sadd.s32 %s357, %s358
      %s360 = smul.addr %s359, 8
      %s361 = scalar_lea.vmem %s7, %s360
      %p362 = scmp.lt.s32.totalorder %s22, 1
      %s363 = scalar_select %p362, %s22, 1
      %s364 = smul.addr %s363, 8
      %s365 = scalar_lea.vmem %s0, %s364
      %p366 = scmp.lt.s32.totalorder %s23, 3
      %s367 = scalar_select %p366, %s23, 3
      %s368 = smul.addr %s367, 4
      %s369 = smul.addr %s368, 8
      %s370 = scalar_lea.vmem %s1, %s369
      %p371 = scmp.lt.s32.totalorder %s23, 3
      %s372 = scalar_select %p371, %s23, 3
      %s373 = scalar_lea.vmem %s2, %s372
      %p374 = scmp.lt.s32.totalorder %s23, 3
      %s375 = scalar_select %p374, %s23, 3
      %s376 = smul.addr %s375, 4
      %s377 = smul.addr %s376, 8
      %s378 = scalar_lea.vmem %s3, %s377
      %p379 = scmp.lt.s32.totalorder %s23, 3
      %s380 = scalar_select %p379, %s23, 3
      %s381 = scalar_lea.vmem %s4, %s380
      %p382 = scmp.lt.s32.totalorder %s23, 3
      %s383 = scalar_select %p382, %s23, 3
      %s384 = smul.addr %s383, 4
      %s385 = smul.addr %s384, 8
      %s386 = scalar_lea.vmem %s5, %s385
      %p387 = scmp.lt.s32.totalorder %s23, 3
      %s388 = scalar_select %p387, %s23, 3
      %s389 = scalar_lea.vmem %s6, %s388
      %p390 = scmp.lt.s32.totalorder %s22, 1
      %s391 = scalar_select %p390, %s22, 1
      %p392 = scmp.lt.s32.totalorder %s23, 3
      %s393 = scalar_select %p392, %s23, 3
      %s394 = smul.addr %s391, 4
      %s395 = sadd.s32 %s393, %s394
      %s396 = smul.addr %s395, 8
      %s397 = scalar_lea.vmem %s7, %s396
      %v398 = vld [vmem:[%s365] sm:$0xff]
      %v399 = vld [vmem:[%s370] sm:$0xff]
      %v400 = vld [vmem:[%s370 + $0x8] sm:$0xff]
      %v401 = vld [vmem:[%s370 + $0x10] sm:$0xff]
      %v402 = vld [vmem:[%s370 + $0x18] sm:$0xff]
      %v403 = vld [vmem:[%s373] sm:$0x1]
      %v405 = vlaneseq
      %v406 = vshrl.u32 %v405, 7
      %v407 = vsub.s32 0, %v406
      %v408 = vrot.slane %v403, %v407
      %vm410 = vcmask 261120
      %v412 = vsel %vm410, %v398, 0
      %414 = vmatprep.subr.mxu0 0.0
      %415 = vmatpush1.msra.mxu0 %v399
      %416 = vmatprep.subr.mxu0 0.0
      %417 = vmatpush1.msra.mxu0 %v400
      %418 = vmatprep.subr.mxu0 0.0
      %419 = vmatpush1.msra.mxu0 %v401
      %420 = vmatprep.subr.mxu0 0.0
      %421 = vmatpush1.msra.mxu0 %v402
      %422 = vmatprep.subr.mxu0 0.0
      %423 = vmatpush1.msra.mxu0 0.0
      %424 = vmatprep.subr.mxu0 0.0
      %425 = vmatpush1.msra.mxu0 0.0
      %426 = vmatprep.subr.mxu0 0.0
      %427 = vmatpush1.msra.mxu0 0.0
      %428 = vmatprep.subr.mxu0 0.0
      %429 = vmatpush1.msra.mxu0 0.0
      %430 = vmatprep.subr.mxu0 0.0
      %431 = vmatpush1.msra.mxu0 0.0
      %432 = vmatprep.subr.mxu0 0.0
      %433 = vmatpush1.msra.mxu0 0.0
      %434 = vmatprep.subr.mxu0 0.0
      %435 = vmatpush1.msra.mxu0 0.0
      %436 = vmatprep.subr.mxu0 0.0
      %437 = vmatpush1.msra.mxu0 0.0
      %438 = vmatprep.subr.mxu0 0.0
      %439 = vmatpush1.msra.mxu0 0.0
      %440 = vmatprep.subr.mxu0 0.0
      %441 = vmatpush1.msra.mxu0 0.0
      %442 = vmatprep.subr.mxu0 0.0
      %443 = vmatpush1.msra.mxu0 0.0
      %444 = vmatprep.subr.mxu0 0.0
      %445 = vmatpush1.msra.mxu0 0.0
      %446 = vmatprep.subr.mxu0 0.0
      %447 = vmatpush1.msra.mxu0 0.0
      %448 = vmatprep.subr.mxu0 0.0
      %449 = vmatpush1.msra.mxu0 0.0
      %450 = vmatprep.subr.mxu0 0.0
      %451 = vmatpush1.msra.mxu0 0.0
      %452 = vmatprep.subr.mxu0 0.0
      %453 = vmatpush1.msra.mxu0 0.0
      %454 = vmatprep.subr.mxu0 0.0
      %455 = vmatpush1.msra.mxu0 0.0
      %456 = vmatprep.subr.mxu0 0.0
      %457 = vmatpush1.msra.mxu0 0.0
      %458 = vmatprep.subr.mxu0 0.0
      %459 = vmatpush1.msra.mxu0 0.0
      %460 = vmatprep.subr.mxu0 0.0
      %461 = vmatpush1.msra.mxu0 0.0
      %462 = vmatprep.subr.mxu0 0.0
      %463 = vmatpush1.msra.mxu0 0.0
      %464 = vmatprep.subr.mxu0 0.0
      %465 = vmatpush1.msra.mxu0 0.0
      %466 = vmatprep.subr.mxu0 0.0
      %467 = vmatpush1.msra.mxu0 0.0
      %468 = vmatprep.subr.mxu0 0.0
      %469 = vmatpush1.msra.mxu0 0.0
      %470 = vmatprep.subr.mxu0 0.0
      %471 = vmatpush1.msra.mxu0 0.0
      %472 = vmatprep.subr.mxu0 0.0
      %473 = vmatpush1.msra.mxu0 0.0
      %474 = vmatprep.subr.mxu0 0.0
      %475 = vmatpush1.msra.mxu0 0.0
      %476 = vmatprep.subr.mxu0 0.0
      %477 = vmatpush1.msra.mxu0 0.0
      %478 = vmatprep.mubr.f32.mxu0 0.0
      %479 = vmatmul.mubr.f32.gmra.mrb[0].mxu0 %v412
      %v480 = vpop.f32.mrb[0].mxu0
      %v481 = vadd.f32 %v408, %v480
      %v482 = vpop.f32.mrb[0].mxu0
      %483 = vdwg.mxu0
      %v484 = vld [vmem:[%s378] sm:$0xff]
      %v485 = vld [vmem:[%s378 + $0x8] sm:$0xff]
      %v486 = vld [vmem:[%s378 + $0x10] sm:$0xff]
      %v487 = vld [vmem:[%s378 + $0x18] sm:$0xff]
      %v488 = vld [vmem:[%s381] sm:$0x1]
      %v490 = vlaneseq
      %v491 = vshrl.u32 %v490, 7
      %v492 = vsub.s32 0, %v491
      %v493 = vrot.slane %v488, %v492
      %495 = vmatprep.subr.mxu0 0.0
      %496 = vmatpush1.msra.mxu0 %v484
      %497 = vmatprep.subr.mxu0 0.0
      %498 = vmatpush1.msra.mxu0 %v485
      %499 = vmatprep.subr.mxu0 0.0
      %500 = vmatpush1.msra.mxu0 %v486
      %501 = vmatprep.subr.mxu0 0.0
      %502 = vmatpush1.msra.mxu0 %v487
      %503 = vmatprep.subr.mxu0 0.0
      %504 = vmatpush1.msra.mxu0 0.0
      %505 = vmatprep.subr.mxu0 0.0
      %506 = vmatpush1.msra.mxu0 0.0
      %507 = vmatprep.subr.mxu0 0.0
      %508 = vmatpush1.msra.mxu0 0.0
      %509 = vmatprep.subr.mxu0 0.0
      %510 = vmatpush1.msra.mxu0 0.0
      %511 = vmatprep.subr.mxu0 0.0
      %512 = vmatpush1.msra.mxu0 0.0
      %513 = vmatprep.subr.mxu0 0.0
      %514 = vmatpush1.msra.mxu0 0.0
      %515 = vmatprep.subr.mxu0 0.0
      %516 = vmatpush1.msra.mxu0 0.0
      %517 = vmatprep.subr.mxu0 0.0
      %518 = vmatpush1.msra.mxu0 0.0
      %519 = vmatprep.subr.mxu0 0.0
      %520 = vmatpush1.msra.mxu0 0.0
      %521 = vmatprep.subr.mxu0 0.0
      %522 = vmatpush1.msra.mxu0 0.0
      %523 = vmatprep.subr.mxu0 0.0
      %524 = vmatpush1.msra.mxu0 0.0
      %525 = vmatprep.subr.mxu0 0.0
      %526 = vmatpush1.msra.mxu0 0.0
      %527 = vmatprep.subr.mxu0 0.0
      %528 = vmatpush1.msra.mxu0 0.0
      %529 = vmatprep.subr.mxu0 0.0
      %530 = vmatpush1.msra.mxu0 0.0
      %531 = vmatprep.subr.mxu0 0.0
      %532 = vmatpush1.msra.mxu0 0.0
      %533 = vmatprep.subr.mxu0 0.0
      %534 = vmatpush1.msra.mxu0 0.0
      %535 = vmatprep.subr.mxu0 0.0
      %536 = vmatpush1.msra.mxu0 0.0
      %537 = vmatprep.subr.mxu0 0.0
      %538 = vmatpush1.msra.mxu0 0.0
      %539 = vmatprep.subr.mxu0 0.0
      %540 = vmatpush1.msra.mxu0 0.0
      %541 = vmatprep.subr.mxu0 0.0
      %542 = vmatpush1.msra.mxu0 0.0
      %543 = vmatprep.subr.mxu0 0.0
      %544 = vmatpush1.msra.mxu0 0.0
      %545 = vmatprep.subr.mxu0 0.0
      %546 = vmatpush1.msra.mxu0 0.0
      %547 = vmatprep.subr.mxu0 0.0
      %548 = vmatpush1.msra.mxu0 0.0
      %549 = vmatprep.subr.mxu0 0.0
      %550 = vmatpush1.msra.mxu0 0.0
      %551 = vmatprep.subr.mxu0 0.0
      %552 = vmatpush1.msra.mxu0 0.0
      %553 = vmatprep.subr.mxu0 0.0
      %554 = vmatpush1.msra.mxu0 0.0
      %555 = vmatprep.subr.mxu0 0.0
      %556 = vmatpush1.msra.mxu0 0.0
      %557 = vmatprep.subr.mxu0 0.0
      %558 = vmatpush1.msra.mxu0 0.0
      %559 = vmatprep.mubr.f32.mxu0 0.0
      %560 = vmatmul.mubr.f32.gmra.mrb[0].mxu0 %v412
      %v561 = vpop.f32.mrb[0].mxu0
      %v562 = vadd.f32 %v493, %v561
      %v563 = vpop.f32.mrb[0].mxu0
      %564 = vdwg.mxu0
      %v565 = vld [vmem:[%s386] sm:$0xff]
      %v566 = vld [vmem:[%s386 + $0x8] sm:$0xff]
      %v567 = vld [vmem:[%s386 + $0x10] sm:$0xff]
      %v568 = vld [vmem:[%s386 + $0x18] sm:$0xff]
      %v569 = vld [vmem:[%s389] sm:$0x1]
      %v571 = vlaneseq
      %v572 = vshrl.u32 %v571, 7
      %v573 = vsub.s32 0, %v572
      %v574 = vrot.slane %v569, %v573
      %576 = vmatprep.subr.mxu0 0.0
      %577 = vmatpush1.msra.mxu0 %v565
      %578 = vmatprep.subr.mxu0 0.0
      %579 = vmatpush1.msra.mxu0 %v566
      %580 = vmatprep.subr.mxu0 0.0
      %581 = vmatpush1.msra.mxu0 %v567
      %582 = vmatprep.subr.mxu0 0.0
      %583 = vmatpush1.msra.mxu0 %v568
      %584 = vmatprep.subr.mxu0 0.0
      %585 = vmatpush1.msra.mxu0 0.0
      %586 = vmatprep.subr.mxu0 0.0
      %587 = vmatpush1.msra.mxu0 0.0
      %588 = vmatprep.subr.mxu0 0.0
      %589 = vmatpush1.msra.mxu0 0.0
      %590 = vmatprep.subr.mxu0 0.0
      %591 = vmatpush1.msra.mxu0 0.0
      %592 = vmatprep.subr.mxu0 0.0
      %593 = vmatpush1.msra.mxu0 0.0
      %594 = vmatprep.subr.mxu0 0.0
      %595 = vmatpush1.msra.mxu0 0.0
      %596 = vmatprep.subr.mxu0 0.0
      %597 = vmatpush1.msra.mxu0 0.0
      %598 = vmatprep.subr.mxu0 0.0
      %599 = vmatpush1.msra.mxu0 0.0
      %600 = vmatprep.subr.mxu0 0.0
      %601 = vmatpush1.msra.mxu0 0.0
      %602 = vmatprep.subr.mxu0 0.0
      %603 = vmatpush1.msra.mxu0 0.0
      %604 = vmatprep.subr.mxu0 0.0
      %605 = vmatpush1.msra.mxu0 0.0
      %606 = vmatprep.subr.mxu0 0.0
      %607 = vmatpush1.msra.mxu0 0.0
      %608 = vmatprep.subr.mxu0 0.0
      %609 = vmatpush1.msra.mxu0 0.0
      %610 = vmatprep.subr.mxu0 0.0
      %611 = vmatpush1.msra.mxu0 0.0
      %612 = vmatprep.subr.mxu0 0.0
      %613 = vmatpush1.msra.mxu0 0.0
      %614 = vmatprep.subr.mxu0 0.0
      %615 = vmatpush1.msra.mxu0 0.0
      %616 = vmatprep.subr.mxu0 0.0
      %617 = vmatpush1.msra.mxu0 0.0
      %618 = vmatprep.subr.mxu0 0.0
      %619 = vmatpush1.msra.mxu0 0.0
      %620 = vmatprep.subr.mxu0 0.0
      %621 = vmatpush1.msra.mxu0 0.0
      %622 = vmatprep.subr.mxu0 0.0
      %623 = vmatpush1.msra.mxu0 0.0
      %624 = vmatprep.subr.mxu0 0.0
      %625 = vmatpush1.msra.mxu0 0.0
      %626 = vmatprep.subr.mxu0 0.0
      %627 = vmatpush1.msra.mxu0 0.0
      %628 = vmatprep.subr.mxu0 0.0
      %629 = vmatpush1.msra.mxu0 0.0
      %630 = vmatprep.subr.mxu0 0.0
      %631 = vmatpush1.msra.mxu0 0.0
      %632 = vmatprep.subr.mxu0 0.0
      %633 = vmatpush1.msra.mxu0 0.0
      %634 = vmatprep.subr.mxu0 0.0
      %635 = vmatpush1.msra.mxu0 0.0
      %636 = vmatprep.subr.mxu0 0.0
      %637 = vmatpush1.msra.mxu0 0.0
      %638 = vmatprep.subr.mxu0 0.0
      %639 = vmatpush1.msra.mxu0 0.0
      %640 = vmatprep.mubr.f32.mxu0 0.0
      %641 = vmatmul.mubr.f32.gmra.mrb[0].mxu0 %v412
      %v642 = vpop.f32.mrb[0].mxu0
      %v643 = vadd.f32 %v574, %v642
      %v644 = vpop.f32.mrb[0].mxu0
      %645 = vdwg.mxu0
      %vm646 = vcmask 64512
      %v648 = vsel %vm646, %v481, 0
      %v651 = vsel %vm646, %v562, 0
      %653 = vmatprep.subr.mxu0 0.0
      %654 = vmatpush1.xpose.msra.mxu0 %v651
      %655 = vmatprep.subr.mxu0 0.0
      %656 = vmatpush1.xpose.msra.mxu0 0.0
      %657 = vmatprep.subr.mxu0 0.0
      %658 = vmatpush1.xpose.msra.mxu0 0.0
      %659 = vmatprep.subr.mxu0 0.0
      %660 = vmatpush1.xpose.msra.mxu0 0.0
      %661 = vmatprep.subr.mxu0 0.0
      %662 = vmatpush1.xpose.msra.mxu0 0.0
      %663 = vmatprep.subr.mxu0 0.0
      %664 = vmatpush1.xpose.msra.mxu0 0.0
      %665 = vmatprep.subr.mxu0 0.0
      %666 = vmatpush1.xpose.msra.mxu0 0.0
      %667 = vmatprep.subr.mxu0 0.0
      %668 = vmatpush1.xpose.msra.mxu0 0.0
      %669 = vmatprep.subr.mxu0 0.0
      %670 = vmatpush1.xpose.msra.mxu0 0.0
      %671 = vmatprep.subr.mxu0 0.0
      %672 = vmatpush1.xpose.msra.mxu0 0.0
      %673 = vmatprep.subr.mxu0 0.0
      %674 = vmatpush1.xpose.msra.mxu0 0.0
      %675 = vmatprep.subr.mxu0 0.0
      %676 = vmatpush1.xpose.msra.mxu0 0.0
      %677 = vmatprep.subr.mxu0 0.0
      %678 = vmatpush1.xpose.msra.mxu0 0.0
      %679 = vmatprep.subr.mxu0 0.0
      %680 = vmatpush1.xpose.msra.mxu0 0.0
      %681 = vmatprep.subr.mxu0 0.0
      %682 = vmatpush1.xpose.msra.mxu0 0.0
      %683 = vmatprep.subr.mxu0 0.0
      %684 = vmatpush1.xpose.msra.mxu0 0.0
      %685 = vmatprep.subr.mxu0 0.0
      %686 = vmatpush1.xpose.msra.mxu0 0.0
      %687 = vmatprep.subr.mxu0 0.0
      %688 = vmatpush1.xpose.msra.mxu0 0.0
      %689 = vmatprep.subr.mxu0 0.0
      %690 = vmatpush1.xpose.msra.mxu0 0.0
      %691 = vmatprep.subr.mxu0 0.0
      %692 = vmatpush1.xpose.msra.mxu0 0.0
      %693 = vmatprep.subr.mxu0 0.0
      %694 = vmatpush1.xpose.msra.mxu0 0.0
      %695 = vmatprep.subr.mxu0 0.0
      %696 = vmatpush1.xpose.msra.mxu0 0.0
      %697 = vmatprep.subr.mxu0 0.0
      %698 = vmatpush1.xpose.msra.mxu0 0.0
      %699 = vmatprep.subr.mxu0 0.0
      %700 = vmatpush1.xpose.msra.mxu0 0.0
      %701 = vmatprep.subr.mxu0 0.0
      %702 = vmatpush1.xpose.msra.mxu0 0.0
      %703 = vmatprep.subr.mxu0 0.0
      %704 = vmatpush1.xpose.msra.mxu0 0.0
      %705 = vmatprep.subr.mxu0 0.0
      %706 = vmatpush1.xpose.msra.mxu0 0.0
      %707 = vmatprep.subr.mxu0 0.0
      %708 = vmatpush1.xpose.msra.mxu0 0.0
      %709 = vmatprep.subr.mxu0 0.0
      %710 = vmatpush1.xpose.msra.mxu0 0.0
      %711 = vmatprep.subr.mxu0 0.0
      %712 = vmatpush1.xpose.msra.mxu0 0.0
      %713 = vmatprep.subr.mxu0 0.0
      %714 = vmatpush1.xpose.msra.mxu0 0.0
      %715 = vmatprep.subr.mxu0 0.0
      %716 = vmatpush1.xpose.msra.mxu0 0.0
      %717 = vmatprep.mubr.f32.mxu0 0.0
      %718 = vmatmul.mubr.f32.gmra.mrb[0].mxu0 %v648
      %v719 = vpop.f32.mrb[0].mxu0
      %v720 = vadd.f32 0.0, %v719
      %v721 = vpop.f32.mrb[0].mxu0
      %722 = vdwg.mxu0
      %v723 = vmul.f32 %v720, 0.35355338
      %v724 = vsel %vm646, %v723, -inf
      %725 = vmax.xlane.f32.xlu0 %v724
      %v726 = vpop.xlane.xlu0 %725
      %v727 = vsub.f32 %v723, %v726
      %v728 = vmul.f32 %v727, 1.442695
      %v729 = vpow.pop %v728
      %v730 = vsel %vm646, %v729, 0.0
      %731 = vadd.xlane.f32.xlu0 %v730
      %v732 = vpop.xlane.xlu0 %731
      %v733 = vrcp.pop %v732
      %v734 = vmul.f32 %v729, %v733
      %v736 = vsel %vm646, %v734, 0
      %738 = vmatprep.subr.mxu0 0.0
      %739 = vmatpush1.msra.mxu0 %v643
      %740 = vmatprep.subr.mxu0 0.0
      %741 = vmatpush1.msra.mxu0 0.0
      %742 = vmatprep.subr.mxu0 0.0
      %743 = vmatpush1.msra.mxu0 0.0
      %744 = vmatprep.subr.mxu0 0.0
      %745 = vmatpush1.msra.mxu0 0.0
      %746 = vmatprep.subr.mxu0 0.0
      %747 = vmatpush1.msra.mxu0 0.0
      %748 = vmatprep.subr.mxu0 0.0
      %749 = vmatpush1.msra.mxu0 0.0
      %750 = vmatprep.subr.mxu0 0.0
      %751 = vmatpush1.msra.mxu0 0.0
      %752 = vmatprep.subr.mxu0 0.0
      %753 = vmatpush1.msra.mxu0 0.0
      %754 = vmatprep.subr.mxu0 0.0
      %755 = vmatpush1.msra.mxu0 0.0
      %756 = vmatprep.subr.mxu0 0.0
      %757 = vmatpush1.msra.mxu0 0.0
      %758 = vmatprep.subr.mxu0 0.0
      %759 = vmatpush1.msra.mxu0 0.0
      %760 = vmatprep.subr.mxu0 0.0
      %761 = vmatpush1.msra.mxu0 0.0
      %762 = vmatprep.subr.mxu0 0.0
      %763 = vmatpush1.msra.mxu0 0.0
      %764 = vmatprep.subr.mxu0 0.0
      %765 = vmatpush1.msra.mxu0 0.0
      %766 = vmatprep.subr.mxu0 0.0
      %767 = vmatpush1.msra.mxu0 0.0
      %768 = vmatprep.subr.mxu0 0.0
      %769 = vmatpush1.msra.mxu0 0.0
      %770 = vmatprep.subr.mxu0 0.0
      %771 = vmatpush1.msra.mxu0 0.0
      %772 = vmatprep.subr.mxu0 0.0
      %773 = vmatpush1.msra.mxu0 0.0
      %774 = vmatprep.subr.mxu0 0.0
      %775 = vmatpush1.msra.mxu0 0.0
      %776 = vmatprep.subr.mxu0 0.0
      %777 = vmatpush1.msra.mxu0 0.0
      %778 = vmatprep.subr.mxu0 0.0
      %779 = vmatpush1.msra.mxu0 0.0
      %780 = vmatprep.subr.mxu0 0.0
      %781 = vmatpush1.msra.mxu0 0.0
      %782 = vmatprep.subr.mxu0 0.0
      %783 = vmatpush1.msra.mxu0 0.0
      %784 = vmatprep.subr.mxu0 0.0
      %785 = vmatpush1.msra.mxu0 0.0
      %786 = vmatprep.subr.mxu0 0.0
      %787 = vmatpush1.msra.mxu0 0.0
      %788 = vmatprep.subr.mxu0 0.0
      %789 = vmatpush1.msra.mxu0 0.0
      %790 = vmatprep.subr.mxu0 0.0
      %791 = vmatpush1.msra.mxu0 0.0
      %792 = vmatprep.subr.mxu0 0.0
      %793 = vmatpush1.msra.mxu0 0.0
      %794 = vmatprep.subr.mxu0 0.0
      %795 = vmatpush1.msra.mxu0 0.0
      %796 = vmatprep.subr.mxu0 0.0
      %797 = vmatpush1.msra.mxu0 0.0
      %798 = vmatprep.subr.mxu0 0.0
      %799 = vmatpush1.msra.mxu0 0.0
      %800 = vmatprep.subr.mxu0 0.0
      %801 = vmatpush1.msra.mxu0 0.0
      %802 = vmatprep.mubr.f32.mxu0 0.0
      %803 = vmatmul.mubr.f32.gmra.mrb[0].mxu0 %v736
      %v804 = vpop.f32.mrb[0].mxu0
      %v805 = vadd.f32 0.0, %v804
      %v806 = vpop.f32.mrb[0].mxu0
      %807 = vdwg.mxu0
      %808 = vst.msk [vmem:[%s397] sm:$0xff] %vm646, %v805
      %p809 = scmp.lt.s32.totalorder %s22, 1
      %s810 = scalar_select %p809, %s22, 1
      %p811 = scmp.lt.s32.totalorder %s23, 3
      %s812 = scalar_select %p811, %s23, 3
      %s813 = smul.addr %s810, 4
      %s814 = sadd.s32 %s812, %s813
      %s815 = smul.addr %s814, 8
      %s816 = scalar_lea.vmem %s7, %s815
      // Predicated region
      $region49: #{_encoder_forward.2} parent=47 // pred_check
        %p817 = pneg %p232
      $region50: #{_encoder_forward.2} parent=47 // pred_check_branch
        %819 = sbr.rel (%p817) target = $region52
      $region51: #{_encoder_forward.2} parent=47 // pred_region
        _
      $region52: #{_encoder_forward.2} parent=47 // pred_fallthru
        _
    $region48: #{_encoder_forward.2} parent=5 // pred_fallthru
      _
    %p820 = scmp.le.s32.totalorder 2, %s13
    // Predicated region
    $region53: #{_encoder_forward.2} parent=5 // pred_check
      %p821 = pneg %p820
    $region54: #{_encoder_forward.2} parent=5 // pred_check_branch
      %823 = sbr.rel (%p821) target = $region56
    $region55: #{_encoder_forward.2} parent=5 // pred_region
      %s824 = ssub.s32 %s13, 2
      // Predicated region
      $region57: #{_encoder_forward.2} parent=55 // pred_check
        %p825 = pneg %p238
      $region58: #{_encoder_forward.2} parent=55 // pred_check_branch
        %827 = sbr.rel (%p825) target = $region60
      $region59: #{_encoder_forward.2} parent=55 // pred_region
        %p828 = scmp.lt.s32.totalorder %s24, 1
        %s829 = scalar_select %p828, %s24, 1
        %p830 = scmp.lt.s32.totalorder %s25, 3
        %s831 = scalar_select %p830, %s25, 3
        %s832 = smul.addr %s829, 4
        %s833 = sadd.s32 %s831, %s832
        %s834 = smul.addr %s833, 8
        %s835 = scalar_lea.vmem %s7, %s834
      $region60: #{_encoder_forward.2} parent=55 // pred_fallthru
        _
    $region56: #{_encoder_forward.2} parent=5 // pred_fallthru
      _
  $region6: #{_encoder_forward.2} parent=0 // loop_footer
    %s17 = sadd.s32 1, %s13
  $region7: #{_encoder_forward.2} parent=0 // loop_footer_branch
    %12 = sbr.rel target = $region3
  $region8: #{_encoder_forward.2} parent=0 // loop_exit
    _

</llo_original>
